<compile_context>
chip_gen: v5e
topology: v5e:2x2
jax: 0.10.0
libtpu: 0.0.40
codegen_flags: <defaults>
</compile_context>

<pallas_src>
import jax
import jax.numpy as jnp
from jax.experimental import pallas as pl
from jax.experimental.pallas import tpu as pltpu

IMG_SHAPE = (1, 28, 28)
IMG_DIM = 1 * 28 * 28            # 784
Z_DIM = 100
H1, H2, H3, H4 = 128, 256, 512, 1024
BN_EPS = 0.8                     # nn.BatchNorm1d(out_feat, 0.8) -> eps = 0.8
LRELU_SLOPE = 0.2

# Packed layout of all small per-feature f32 vectors (one VMEM operand).
# Every offset is a multiple of 128, so the in-kernel static slices are
# lane-aligned views (no cross-lane shuffles).
_PVEC_SEGS = (
    ("b1", H1),
    ("g2", H2), ("be2", H2),
    ("g3", H3), ("be3", H3),
    ("g4", H4), ("be4", H4),
    ("b5", IMG_DIM),
)
_PVEC_OFF = {}
_off = 0
for _name, _n in _PVEC_SEGS:
    _PVEC_OFF[_name] = _off
    _off += _n
PVEC_LEN = _off                  # 4496
_PVEC_LEN_OF = dict(_PVEC_SEGS)


def _generator_kernel(z_ref, p_ref,
                      w1_ref, w2_ref, w3_ref, w4_ref, w5_ref,
                      out_ref):
    """One independent z-batch per grid step; weights stay VMEM-resident."""

    def seg(name):
        o = _PVEC_OFF[name]
        return p_ref[:, o:o + _PVEC_LEN_OF[name]]        # (1, N) f32, lane-aligned

    def linear(x, w_ref):
        # bf16 x bf16 MXU matmul, f32 accumulation.
        return jnp.dot(x.astype(jnp.bfloat16), w_ref[...],
                       preferred_element_type=jnp.float32)

    def lrelu(x):
        return jnp.where(x > 0, x, LRELU_SLOPE * x)

    def bn_lrelu(h, g, be):
        # Training-mode BatchNorm1d (biased variance) folded into one FMA.
        # var = E[h^2] - mean^2 can go slightly negative from f32 cancellation
        # when the true variance is tiny; eps = 0.8 keeps rsqrt well defined.
        inv_b = 1.0 / h.shape[0]
        mean = jnp.sum(h, axis=0, keepdims=True) * inv_b
        msq = jnp.sum(h * h, axis=0, keepdims=True) * inv_b
        var = msq - mean * mean
        scale = g * jax.lax.rsqrt(var + BN_EPS)
        shift = be - mean * scale
        return lrelu(h * scale + shift)

    x = z_ref[0].astype(jnp.float32)                     # (B, 100)

    # Block 1: Linear(100 -> 128) + bias, no normalization.
    x = lrelu(linear(x, w1_ref) + seg("b1"))
    # Blocks 2-4: Linear + BN + LeakyReLU.  Linear biases are omitted:
    # BN's batch-mean subtraction cancels any constant bias exactly.
    x = bn_lrelu(linear(x, w2_ref), seg("g2"), seg("be2"))
    x = bn_lrelu(linear(x, w3_ref), seg("g3"), seg("be3"))
    x = bn_lrelu(linear(x, w4_ref), seg("g4"), seg("be4"))
    # Head: Linear(1024 -> 784) + Tanh.  (Keep per-group batch modest; at very
    # large B the f32 activations should be chunked / BN made two-pass.)
    out_ref[0] = jnp.tanh(linear(x, w5_ref) + seg("b5"))


@jax.jit
def generator_forward(z, kparams):
    """z: (B, 100) or (G, B, 100) f32 -> (B, 1, 28, 28) or (G, B, 1, 28, 28).

    Each of the G groups is an independent generator call (its own BatchNorm
    batch statistics).  A single pallas_call handles all G groups so the bf16
    weights are loaded into VMEM once and reused across the whole grid.
    """
    squeeze = z.ndim == 2
    if squeeze:
        z = z[None]
    G, B, _ = z.shape

    weights = (kparams["w1"], kparams["w2"], kparams["w3"],
               kparams["w4"], kparams["w5"])

    const2 = lambda g: (0, 0)   # weights / packed vector: VMEM-resident blocks
    flat = pl.pallas_call(
        _generator_kernel,
        grid=(G,),
        out_shape=jax.ShapeDtypeStruct((G, B, IMG_DIM), jnp.float32),
        in_specs=[
            pl.BlockSpec((1, B, Z_DIM), lambda g: (g, 0, 0)),
            pl.BlockSpec((1, PVEC_LEN), const2),
        ] + [pl.BlockSpec(w.shape, const2) for w in weights],
        out_specs=pl.BlockSpec((1, B, IMG_DIM), lambda g: (g, 0, 0)),
        compiler_params=pltpu.CompilerParams(
            dimension_semantics=("parallel",),
            vmem_limit_bytes=16 << 20),
    )(z, kparams["pvec"], *weights)

    img = flat.reshape(G, B, *IMG_SHAPE)
    return img[0] if squeeze else img


def init_params(key):
    """Deterministic synthetic parameters with the module's shapes (f32 masters).

    b2/b3/b4 exist (nonzero) but are mathematically no-ops under the following
    training-mode BatchNorm; the kernel never receives them -- the pure-JAX
    reference keeps them to verify the cancellation.
    """
    dims = [(Z_DIM, H1), (H1, H2), (H2, H3), (H3, H4), (H4, IMG_DIM)]
    params = {}
    keys = jax.random.split(key, 4 * len(dims))
    kit = iter(keys)
    for idx, (fan_in, fan_out) in enumerate(dims, start=1):
        bound = 1.0 / jnp.sqrt(fan_in)
        params[f"w{idx}"] = jax.random.uniform(
            next(kit), (fan_in, fan_out), minval=-bound, maxval=bound,
            dtype=jnp.float32)
        params[f"b{idx}"] = jax.random.uniform(
            next(kit), (fan_out,), minval=-bound, maxval=bound,
            dtype=jnp.float32)
    # Nontrivial BatchNorm affine params for blocks 2..4.
    for idx, fan_out in ((2, H2), (3, H3), (4, H4)):
        params[f"g{idx}"] = jax.random.uniform(
            next(kit), (fan_out,), minval=0.5, maxval=1.5, dtype=jnp.float32)
        params[f"be{idx}"] = jax.random.uniform(
            next(kit), (fan_out,), minval=-0.5, maxval=0.5, dtype=jnp.float32)
    return params


def pack_params(params):
    """Kernel operand set: bf16 weights + one packed f32 per-feature vector."""
    pvec = jnp.concatenate(
        [params[name] for name, _ in _PVEC_SEGS]).reshape(1, PVEC_LEN)
    kp = {f"w{i}": params[f"w{i}"].astype(jnp.bfloat16) for i in range(1, 6)}
    kp["pvec"] = pvec
    return kp


def _reference_forward(z2d, p):
    """Pure-JAX reference for ONE batch.  Mirrors kernel numerics (bf16 matmul
    inputs, f32 accumulation) but uses the standard unfolded BatchNorm formula
    and DOES add b2/b3/b4 -- they must cancel under BN."""
    def linear(x, w, b):
        return jnp.dot(x.astype(jnp.bfloat16), w.astype(jnp.bfloat16),
                       preferred_element_type=jnp.float32) + b

    def lrelu(x):
        return jnp.where(x > 0, x, LRELU_SLOPE * x)

    def bn(h, g, be):
        mean = jnp.mean(h, axis=0, keepdims=True)
        var = jnp.mean((h - mean) ** 2, axis=0, keepdims=True)
        return (h - mean) / jnp.sqrt(var + BN_EPS) * g + be

    x = lrelu(linear(z2d, p["w1"], p["b1"]))
    x = lrelu(bn(linear(x, p["w2"], p["b2"]), p["g2"], p["be2"]))
    x = lrelu(bn(linear(x, p["w3"], p["b3"]), p["g3"], p["be3"]))
    x = lrelu(bn(linear(x, p["w4"], p["b4"]), p["g4"], p["be4"]))
    x = jnp.tanh(linear(x, p["w5"], p["b5"]))
    return x.reshape(z2d.shape[0], *IMG_SHAPE)


if __name__ == "__main__":
    key = jax.random.PRNGKey(0)
    k_param, k_z = jax.random.split(key)

    groups, batch = 4, 8          # 4 independent generator batches of 8 samples
    params = init_params(k_param)
    kparams = pack_params(params)
    z = jax.random.normal(k_z, (groups, batch, Z_DIM), dtype=jnp.float32)

    img = generator_forward(z, kparams)
    img = jax.block_until_ready(img)
    assert img.shape == (groups, batch, *IMG_SHAPE), img.shape

    ref = jnp.stack([_reference_forward(z[g], params) for g in range(groups)])
    # bf16 matmul inputs on both sides; residual differences are MXU-vs-XLA
    # rounding, the folded-BN variance formula (tiny with eps = 0.8), and the
    # exact-but-f32-rounded cancellation of b2/b3/b4 under BatchNorm.
    err = float(jnp.max(jnp.abs(img - ref)))
    assert jnp.allclose(img, ref, atol=1e-2, rtol=1e-2), err

    print("KERNEL_OK")
</pallas_src>

<mosaic_0001>
module attributes {stable_mosaic.version = 11 : i64} {
  func.func @_generator_kernel(%arg0: i32, %arg1: memref<1x8x100xf32, #tpu.memory_space<vmem>>, %arg2: memref<1x4496xf32, #tpu.memory_space<vmem>>, %arg3: memref<100x128xbf16, #tpu.memory_space<vmem>>, %arg4: memref<128x256xbf16, #tpu.memory_space<vmem>>, %arg5: memref<256x512xbf16, #tpu.memory_space<vmem>>, %arg6: memref<512x1024xbf16, #tpu.memory_space<vmem>>, %arg7: memref<1024x784xbf16, #tpu.memory_space<vmem>>, %arg8: memref<1x8x784xf32, #tpu.memory_space<vmem>>) attributes {dimension_semantics = [#tpu.dimension_semantics<parallel>], iteration_bounds = array<i64: 4>, scalar_prefetch = 0 : i64, scratch_operands = 0 : i64, tpu.core_type = #tpu.core_type<tc>, window_params = [{transform_indices = @transform_0, window_bounds = array<i64: 1, 8, 100>}, {pipeline_mode = #tpu.pipeline_mode<synchronous>, transform_indices = @transform_1, window_bounds = array<i64: 1, 4496>}, {pipeline_mode = #tpu.pipeline_mode<synchronous>, transform_indices = @transform_2, window_bounds = array<i64: 100, 128>}, {pipeline_mode = #tpu.pipeline_mode<synchronous>, transform_indices = @transform_3, window_bounds = array<i64: 128, 256>}, {pipeline_mode = #tpu.pipeline_mode<synchronous>, transform_indices = @transform_4, window_bounds = array<i64: 256, 512>}, {pipeline_mode = #tpu.pipeline_mode<synchronous>, transform_indices = @transform_5, window_bounds = array<i64: 512, 1024>}, {pipeline_mode = #tpu.pipeline_mode<synchronous>, transform_indices = @transform_6, window_bounds = array<i64: 1024, 784>}, {transform_indices = @transform_7, window_bounds = array<i64: 1, 8, 784>}]} {
    %c0 = arith.constant 0 : index
    %c0_0 = arith.constant 0 : index
    %c0_1 = arith.constant 0 : index
    %0 = vector.load %arg1[%c0, %c0_0, %c0_1] : memref<1x8x100xf32, #tpu.memory_space<vmem>>, vector<1x8x100xf32>
    %1 = vector.shape_cast %0 : vector<1x8x100xf32> to vector<8x100xf32>
    %2 = arith.truncf %1 : vector<8x100xf32> to vector<8x100xbf16>
    %c0_2 = arith.constant 0 : index
    %c0_3 = arith.constant 0 : index
    %3 = vector.load %arg3[%c0_2, %c0_3] : memref<100x128xbf16, #tpu.memory_space<vmem>>, vector<100x128xbf16>
    %cst = arith.constant dense<0.000000e+00> : vector<8x128xf32>
    %4 = tpu.matmul %2, %3, %cst {dimension_numbers = #tpu.dot_dimension_numbers<[1], [0], [0], [1], [0, 0, 1, 1], [], []>} : vector<8x100xbf16>, vector<100x128xbf16>, vector<8x128xf32> -> vector<8x128xf32>
    %c0_4 = arith.constant 0 : index
    %c0_5 = arith.constant 0 : index
    %5 = vector.load %arg2[%c0_4, %c0_5] : memref<1x4496xf32, #tpu.memory_space<vmem>>, vector<1x128xf32>
    %6 = vector.broadcast %5 : vector<1x128xf32> to vector<8x128xf32>
    %7 = arith.addf %4, %6 : vector<8x128xf32>
    %cst_6 = arith.constant 0.000000e+00 : f32
    %8 = vector.broadcast %cst_6 : f32 to vector<8x128xf32>
    %9 = arith.cmpf ogt, %7, %8 : vector<8x128xf32>
    %cst_7 = arith.constant 2.000000e-01 : f32
    %10 = vector.broadcast %cst_7 : f32 to vector<8x128xf32>
    %11 = arith.mulf %10, %7 : vector<8x128xf32>
    %12 = arith.select %9, %7, %11 : vector<8x128xi1>, vector<8x128xf32>
    %13 = arith.truncf %12 : vector<8x128xf32> to vector<8x128xbf16>
    %c0_8 = arith.constant 0 : index
    %c0_9 = arith.constant 0 : index
    %14 = vector.load %arg4[%c0_8, %c0_9] : memref<128x256xbf16, #tpu.memory_space<vmem>>, vector<128x256xbf16>
    %cst_10 = arith.constant dense<0.000000e+00> : vector<8x256xf32>
    %15 = tpu.matmul %13, %14, %cst_10 {dimension_numbers = #tpu.dot_dimension_numbers<[1], [0], [0], [1], [0, 0, 1, 1], [], []>} : vector<8x128xbf16>, vector<128x256xbf16>, vector<8x256xf32> -> vector<8x256xf32>
    %c0_11 = arith.constant 0 : index
    %c128 = arith.constant 128 : index
    %16 = vector.load %arg2[%c0_11, %c128] : memref<1x4496xf32, #tpu.memory_space<vmem>>, vector<1x256xf32>
    %c0_12 = arith.constant 0 : index
    %c384 = arith.constant 384 : index
    %17 = vector.load %arg2[%c0_12, %c384] : memref<1x4496xf32, #tpu.memory_space<vmem>>, vector<1x256xf32>
    %cst_13 = arith.constant dense<0.000000e+00> : vector<256xf32>
    %18 = vector.multi_reduction <add>, %15, %cst_13 [0] : vector<8x256xf32> to vector<256xf32>
    %19 = vector.shape_cast %18 : vector<256xf32> to vector<1x256xf32>
    %cst_14 = arith.constant 1.250000e-01 : f32
    %20 = vector.broadcast %cst_14 : f32 to vector<1x256xf32>
    %21 = arith.mulf %19, %20 : vector<1x256xf32>
    %22 = arith.mulf %15, %15 : vector<8x256xf32>
    %cst_15 = arith.constant dense<0.000000e+00> : vector<256xf32>
    %23 = vector.multi_reduction <add>, %22, %cst_15 [0] : vector<8x256xf32> to vector<256xf32>
    %24 = vector.shape_cast %23 : vector<256xf32> to vector<1x256xf32>
    %cst_16 = arith.constant 1.250000e-01 : f32
    %25 = vector.broadcast %cst_16 : f32 to vector<1x256xf32>
    %26 = arith.mulf %24, %25 : vector<1x256xf32>
    %27 = arith.mulf %21, %21 : vector<1x256xf32>
    %28 = arith.subf %26, %27 : vector<1x256xf32>
    %cst_17 = arith.constant 8.000000e-01 : f32
    %29 = vector.broadcast %cst_17 : f32 to vector<1x256xf32>
    %30 = arith.addf %28, %29 : vector<1x256xf32>
    %31 = math.rsqrt %30 : vector<1x256xf32>
    %32 = arith.mulf %16, %31 : vector<1x256xf32>
    %33 = arith.mulf %21, %32 : vector<1x256xf32>
    %34 = arith.subf %17, %33 : vector<1x256xf32>
    %35 = vector.broadcast %32 : vector<1x256xf32> to vector<8x256xf32>
    %36 = arith.mulf %15, %35 : vector<8x256xf32>
    %37 = vector.broadcast %34 : vector<1x256xf32> to vector<8x256xf32>
    %38 = arith.addf %36, %37 : vector<8x256xf32>
    %cst_18 = arith.constant 0.000000e+00 : f32
    %39 = vector.broadcast %cst_18 : f32 to vector<8x256xf32>
    %40 = arith.cmpf ogt, %38, %39 : vector<8x256xf32>
    %cst_19 = arith.constant 2.000000e-01 : f32
    %41 = vector.broadcast %cst_19 : f32 to vector<8x256xf32>
    %42 = arith.mulf %41, %38 : vector<8x256xf32>
    %43 = arith.select %40, %38, %42 : vector<8x256xi1>, vector<8x256xf32>
    %44 = arith.truncf %43 : vector<8x256xf32> to vector<8x256xbf16>
    %c0_20 = arith.constant 0 : index
    %c0_21 = arith.constant 0 : index
    %45 = vector.load %arg5[%c0_20, %c0_21] : memref<256x512xbf16, #tpu.memory_space<vmem>>, vector<256x512xbf16>
    %cst_22 = arith.constant dense<0.000000e+00> : vector<8x512xf32>
    %46 = tpu.matmul %44, %45, %cst_22 {dimension_numbers = #tpu.dot_dimension_numbers<[1], [0], [0], [1], [0, 0, 1, 1], [], []>} : vector<8x256xbf16>, vector<256x512xbf16>, vector<8x512xf32> -> vector<8x512xf32>
    %c0_23 = arith.constant 0 : index
    %c640 = arith.constant 640 : index
    %47 = vector.load %arg2[%c0_23, %c640] : memref<1x4496xf32, #tpu.memory_space<vmem>>, vector<1x512xf32>
    %c0_24 = arith.constant 0 : index
    %c1152 = arith.constant 1152 : index
    %48 = vector.load %arg2[%c0_24, %c1152] : memref<1x4496xf32, #tpu.memory_space<vmem>>, vector<1x512xf32>
    %cst_25 = arith.constant dense<0.000000e+00> : vector<512xf32>
    %49 = vector.multi_reduction <add>, %46, %cst_25 [0] : vector<8x512xf32> to vector<512xf32>
    %50 = vector.shape_cast %49 : vector<512xf32> to vector<1x512xf32>
    %cst_26 = arith.constant 1.250000e-01 : f32
    %51 = vector.broadcast %cst_26 : f32 to vector<1x512xf32>
    %52 = arith.mulf %50, %51 : vector<1x512xf32>
    %53 = arith.mulf %46, %46 : vector<8x512xf32>
    %cst_27 = arith.constant dense<0.000000e+00> : vector<512xf32>
    %54 = vector.multi_reduction <add>, %53, %cst_27 [0] : vector<8x512xf32> to vector<512xf32>
    %55 = vector.shape_cast %54 : vector<512xf32> to vector<1x512xf32>
    %cst_28 = arith.constant 1.250000e-01 : f32
    %56 = vector.broadcast %cst_28 : f32 to vector<1x512xf32>
    %57 = arith.mulf %55, %56 : vector<1x512xf32>
    %58 = arith.mulf %52, %52 : vector<1x512xf32>
    %59 = arith.subf %57, %58 : vector<1x512xf32>
    %cst_29 = arith.constant 8.000000e-01 : f32
    %60 = vector.broadcast %cst_29 : f32 to vector<1x512xf32>
    %61 = arith.addf %59, %60 : vector<1x512xf32>
    %62 = math.rsqrt %61 : vector<1x512xf32>
    %63 = arith.mulf %47, %62 : vector<1x512xf32>
    %64 = arith.mulf %52, %63 : vector<1x512xf32>
    %65 = arith.subf %48, %64 : vector<1x512xf32>
    %66 = vector.broadcast %63 : vector<1x512xf32> to vector<8x512xf32>
    %67 = arith.mulf %46, %66 : vector<8x512xf32>
    %68 = vector.broadcast %65 : vector<1x512xf32> to vector<8x512xf32>
    %69 = arith.addf %67, %68 : vector<8x512xf32>
    %cst_30 = arith.constant 0.000000e+00 : f32
    %70 = vector.broadcast %cst_30 : f32 to vector<8x512xf32>
    %71 = arith.cmpf ogt, %69, %70 : vector<8x512xf32>
    %cst_31 = arith.constant 2.000000e-01 : f32
    %72 = vector.broadcast %cst_31 : f32 to vector<8x512xf32>
    %73 = arith.mulf %72, %69 : vector<8x512xf32>
    %74 = arith.select %71, %69, %73 : vector<8x512xi1>, vector<8x512xf32>
    %75 = arith.truncf %74 : vector<8x512xf32> to vector<8x512xbf16>
    %c0_32 = arith.constant 0 : index
    %c0_33 = arith.constant 0 : index
    %76 = vector.load %arg6[%c0_32, %c0_33] : memref<512x1024xbf16, #tpu.memory_space<vmem>>, vector<512x1024xbf16>
    %cst_34 = arith.constant dense<0.000000e+00> : vector<8x1024xf32>
    %77 = tpu.matmul %75, %76, %cst_34 {dimension_numbers = #tpu.dot_dimension_numbers<[1], [0], [0], [1], [0, 0, 1, 1], [], []>} : vector<8x512xbf16>, vector<512x1024xbf16>, vector<8x1024xf32> -> vector<8x1024xf32>
    %c0_35 = arith.constant 0 : index
    %c1664 = arith.constant 1664 : index
    %78 = vector.load %arg2[%c0_35, %c1664] : memref<1x4496xf32, #tpu.memory_space<vmem>>, vector<1x1024xf32>
    %c0_36 = arith.constant 0 : index
    %c2688 = arith.constant 2688 : index
    %79 = vector.load %arg2[%c0_36, %c2688] : memref<1x4496xf32, #tpu.memory_space<vmem>>, vector<1x1024xf32>
    %cst_37 = arith.constant dense<0.000000e+00> : vector<1024xf32>
    %80 = vector.multi_reduction <add>, %77, %cst_37 [0] : vector<8x1024xf32> to vector<1024xf32>
    %81 = vector.shape_cast %80 : vector<1024xf32> to vector<1x1024xf32>
    %cst_38 = arith.constant 1.250000e-01 : f32
    %82 = vector.broadcast %cst_38 : f32 to vector<1x1024xf32>
    %83 = arith.mulf %81, %82 : vector<1x1024xf32>
    %84 = arith.mulf %77, %77 : vector<8x1024xf32>
    %cst_39 = arith.constant dense<0.000000e+00> : vector<1024xf32>
    %85 = vector.multi_reduction <add>, %84, %cst_39 [0] : vector<8x1024xf32> to vector<1024xf32>
    %86 = vector.shape_cast %85 : vector<1024xf32> to vector<1x1024xf32>
    %cst_40 = arith.constant 1.250000e-01 : f32
    %87 = vector.broadcast %cst_40 : f32 to vector<1x1024xf32>
    %88 = arith.mulf %86, %87 : vector<1x1024xf32>
    %89 = arith.mulf %83, %83 : vector<1x1024xf32>
    %90 = arith.subf %88, %89 : vector<1x1024xf32>
    %cst_41 = arith.constant 8.000000e-01 : f32
    %91 = vector.broadcast %cst_41 : f32 to vector<1x1024xf32>
    %92 = arith.addf %90, %91 : vector<1x1024xf32>
    %93 = math.rsqrt %92 : vector<1x1024xf32>
    %94 = arith.mulf %78, %93 : vector<1x1024xf32>
    %95 = arith.mulf %83, %94 : vector<1x1024xf32>
    %96 = arith.subf %79, %95 : vector<1x1024xf32>
    %97 = vector.broadcast %94 : vector<1x1024xf32> to vector<8x1024xf32>
    %98 = arith.mulf %77, %97 : vector<8x1024xf32>
    %99 = vector.broadcast %96 : vector<1x1024xf32> to vector<8x1024xf32>
    %100 = arith.addf %98, %99 : vector<8x1024xf32>
    %cst_42 = arith.constant 0.000000e+00 : f32
    %101 = vector.broadcast %cst_42 : f32 to vector<8x1024xf32>
    %102 = arith.cmpf ogt, %100, %101 : vector<8x1024xf32>
    %cst_43 = arith.constant 2.000000e-01 : f32
    %103 = vector.broadcast %cst_43 : f32 to vector<8x1024xf32>
    %104 = arith.mulf %103, %100 : vector<8x1024xf32>
    %105 = arith.select %102, %100, %104 : vector<8x1024xi1>, vector<8x1024xf32>
    %106 = arith.truncf %105 : vector<8x1024xf32> to vector<8x1024xbf16>
    %c0_44 = arith.constant 0 : index
    %c0_45 = arith.constant 0 : index
    %107 = vector.load %arg7[%c0_44, %c0_45] : memref<1024x784xbf16, #tpu.memory_space<vmem>>, vector<1024x784xbf16>
    %cst_46 = arith.constant dense<0.000000e+00> : vector<8x784xf32>
    %108 = tpu.matmul %106, %107, %cst_46 {dimension_numbers = #tpu.dot_dimension_numbers<[1], [0], [0], [1], [0, 0, 1, 1], [], []>} : vector<8x1024xbf16>, vector<1024x784xbf16>, vector<8x784xf32> -> vector<8x784xf32>
    %c0_47 = arith.constant 0 : index
    %c3712 = arith.constant 3712 : index
    %109 = vector.load %arg2[%c0_47, %c3712] : memref<1x4496xf32, #tpu.memory_space<vmem>>, vector<1x784xf32>
    %110 = vector.broadcast %109 : vector<1x784xf32> to vector<8x784xf32>
    %111 = arith.addf %108, %110 : vector<8x784xf32>
    %112 = math.tanh %111 : vector<8x784xf32>
    %c0_48 = arith.constant 0 : index
    %c0_49 = arith.constant 0 : index
    %c0_50 = arith.constant 0 : index
    %113 = vector.load %arg8[%c0_48, %c0_49, %c0_50] : memref<1x8x784xf32, #tpu.memory_space<vmem>>, vector<1x8x784xf32>
    %114 = vector.shape_cast %113 : vector<1x8x784xf32> to vector<8x784xf32>
    %115 = vector.shape_cast %112 : vector<8x784xf32> to vector<1x8x784xf32>
    tpu.vector_store %arg8[%c0_48, %c0_49, %c0_50], %115 {strides = array<i32>} : memref<1x8x784xf32, #tpu.memory_space<vmem>>, vector<1x8x784xf32>,
    return
  }
  func.func @transform_0(%arg0: i32) -> (i32, i32, i32) {
    %c0_i32 = arith.constant 0 : i32
    %c0_i32_0 = arith.constant 0 : i32
    %c0_i32_1 = arith.constant 0 : i32
    return %arg0, %c0_i32, %c0_i32_0 : i32, i32, i32
  }
  func.func @transform_1(%arg0: i32) -> (i32, i32) {
    %c0_i32 = arith.constant 0 : i32
    %c0_i32_0 = arith.constant 0 : i32
    %c0_i32_1 = arith.constant 0 : i32
    return %c0_i32, %c0_i32_0 : i32, i32
  }
  func.func @transform_2(%arg0: i32) -> (i32, i32) {
    %c0_i32 = arith.constant 0 : i32
    %c0_i32_0 = arith.constant 0 : i32
    %c0_i32_1 = arith.constant 0 : i32
    return %c0_i32, %c0_i32_0 : i32, i32
  }
  func.func @transform_3(%arg0: i32) -> (i32, i32) {
    %c0_i32 = arith.constant 0 : i32
    %c0_i32_0 = arith.constant 0 : i32
    %c0_i32_1 = arith.constant 0 : i32
    return %c0_i32, %c0_i32_0 : i32, i32
  }
  func.func @transform_4(%arg0: i32) -> (i32, i32) {
    %c0_i32 = arith.constant 0 : i32
    %c0_i32_0 = arith.constant 0 : i32
    %c0_i32_1 = arith.constant 0 : i32
    return %c0_i32, %c0_i32_0 : i32, i32
  }
  func.func @transform_5(%arg0: i32) -> (i32, i32) {
    %c0_i32 = arith.constant 0 : i32
    %c0_i32_0 = arith.constant 0 : i32
    %c0_i32_1 = arith.constant 0 : i32
    return %c0_i32, %c0_i32_0 : i32, i32
  }
  func.func @transform_6(%arg0: i32) -> (i32, i32) {
    %c0_i32 = arith.constant 0 : i32
    %c0_i32_0 = arith.constant 0 : i32
    %c0_i32_1 = arith.constant 0 : i32
    return %c0_i32, %c0_i32_0 : i32, i32
  }
  func.func @transform_7(%arg0: i32) -> (i32, i32, i32) {
    %c0_i32 = arith.constant 0 : i32
    %c0_i32_0 = arith.constant 0 : i32
    %c0_i32_1 = arith.constant 0 : i32
    return %arg0, %c0_i32, %c0_i32_0 : i32, i32, i32
  }
}

</mosaic_0001>

<llo_original>
// kernel: generator_forward.1
$region0: #{generator_forward.1}
  #allocation0 [shape = 'u32[]', space=smem, size = 0x4, offset = 0x4, fixed_abs, tag = 'smem constant byte address 0x4 - core index']
  #allocation1 [shape = 'u32[72,128]{1,0:T(1,128)}', space=vmem, size = 0x9000, scoped, tag = 'internal scratch']
  %s0 = inlined_call_operand.vmem [shape: f32[4,8,100], index: 0, kind: input, shape index: {}]
  %s1 = inlined_call_operand.vmem [shape: f32[1,4496], index: 1, kind: input, shape index: {}]
  %s2 = inlined_call_operand.vmem [shape: bf16[100,128], index: 2, kind: input, shape index: {}]
  %s3 = inlined_call_operand.vmem [shape: bf16[128,256], index: 3, kind: input, shape index: {}]
  %s4 = inlined_call_operand.vmem [shape: bf16[256,512], index: 4, kind: input, shape index: {}]
  %s5 = inlined_call_operand.vmem [shape: bf16[512,1024], index: 5, kind: input, shape index: {}]
  %s6 = inlined_call_operand.vmem [shape: bf16[1024,784], index: 6, kind: input, shape index: {}]
  %s7 = inlined_call_operand.vmem [shape: f32[4,8,784], index: 7, kind: output, shape index: {}]
  %s8 = sld [smem:[#allocation0]]
  $region61: #{generator_forward.1} parent=0
    _
  %s10 = ssub.s32 1, %s8
  %s11 = scalar_select 0, %s10, %s8
  loop: start=0, step=1, limit=6
  $region2: #{generator_forward.1} parent=0 // loop_pre_header
    _
  $region3: #{generator_forward.1} parent=0 // loop_header
    %s13 = sphi 0, %s17
    %p14 = scmp.ge.s32.totalorder %s13, 6
    %s23 = sphi 0, %s25
    %s26 = sphi 0, %s23
    %s27 = sphi 0, %s26
    %s43 = sphi 0, %s27
    %s47 = sphi 0, %s47
    %s49 = sphi 0, %s47
    %s50 = sphi 0, %s49
    %s64 = sphi 0, %s50
    %s68 = sphi 0, %s68
    %s70 = sphi 0, %s68
    %s71 = sphi 0, %s70
    %s85 = sphi 0, %s71
    %s89 = sphi 0, %s89
    %s91 = sphi 0, %s89
    %s92 = sphi 0, %s91
    %s106 = sphi 0, %s92
    %s110 = sphi 0, %s110
    %s112 = sphi 0, %s110
    %s113 = sphi 0, %s112
    %s127 = sphi 0, %s113
    %s131 = sphi 0, %s131
    %s133 = sphi 0, %s131
    %s134 = sphi 0, %s133
    %s148 = sphi 0, %s134
    %s152 = sphi 0, %s152
    %s154 = sphi 0, %s152
    %s155 = sphi 0, %s154
    %s169 = sphi 0, %s155
    %s175 = sphi 0, %s177
    %s178 = sphi 0, %s175
    %s179 = sphi 0, %s178
    %s195 = sphi 0, %s179
  $region4: #{generator_forward.1} parent=0 // loop_header_branch
    %16 = sbr.rel (%p14) target = $region8
  $region5: #{generator_forward.1} parent=0 // loop_body
    %s18 = ssub.s32 %s13, 1
    %s19 = ssub.s32 %s13, 2
    %s20 = sadd.s32 %s13, 1
    %s21 = ssub.s32 %s13, %s20
    %p22 = scmp.eq.s32.totalorder %s21, 0
    %s24 = sadd.s32 %s23, 1
    %s25 = scalar_select %p22, %s23, %s24
    %p28 = pneg %p22
    %p29 = scmp.eq.s32.totalorder %s13, 3
    %p30 = por %p28, %p29
    %p31 = scmp.ne.s32.totalorder %s23, %s26
    %p32 = scmp.eq.s32.totalorder %s13, 0
    %p33 = por %p31, %p32
    %p34 = scmp.ne.s32.totalorder %s23, %s26
    %p35 = scmp.eq.s32.totalorder %s18, 3
    %p36 = por %p34, %p35
    %p37 = scmp.ne.s32.totalorder %s26, %s27
    %p38 = scmp.eq.s32.totalorder %s18, 0
    %p39 = por %p37, %p38
    %p40 = scmp.ne.s32.totalorder %s26, %s27
    %p41 = scmp.eq.s32.totalorder %s19, 3
    %p42 = por %p40, %p41
    %p44 = scmp.ne.s32.totalorder %s27, %s43
    %p45 = scmp.eq.s32.totalorder %s19, 0
    %p46 = por %p44, %p45
    %s48 = sadd.s32 %s47, 1
    %p51 = scmp.eq.s32.totalorder %s13, 3
    %p52 = scmp.ne.s32.totalorder %s47, %s49
    %p53 = scmp.eq.s32.totalorder %s13, 0
    %p54 = por %p52, %p53
    %p55 = scmp.ne.s32.totalorder %s47, %s49
    %p56 = scmp.eq.s32.totalorder %s18, 3
    %p57 = por %p55, %p56
    %p58 = scmp.ne.s32.totalorder %s49, %s50
    %p59 = scmp.eq.s32.totalorder %s18, 0
    %p60 = por %p58, %p59
    %p61 = scmp.ne.s32.totalorder %s49, %s50
    %p62 = scmp.eq.s32.totalorder %s19, 3
    %p63 = por %p61, %p62
    %p65 = scmp.ne.s32.totalorder %s50, %s64
    %p66 = scmp.eq.s32.totalorder %s19, 0
    %p67 = por %p65, %p66
    %s69 = sadd.s32 %s68, 1
    %p72 = scmp.eq.s32.totalorder %s13, 3
    %p73 = scmp.ne.s32.totalorder %s68, %s70
    %p74 = scmp.eq.s32.totalorder %s13, 0
    %p75 = por %p73, %p74
    %p76 = scmp.ne.s32.totalorder %s68, %s70
    %p77 = scmp.eq.s32.totalorder %s18, 3
    %p78 = por %p76, %p77
    %p79 = scmp.ne.s32.totalorder %s70, %s71
    %p80 = scmp.eq.s32.totalorder %s18, 0
    %p81 = por %p79, %p80
    %p82 = scmp.ne.s32.totalorder %s70, %s71
    %p83 = scmp.eq.s32.totalorder %s19, 3
    %p84 = por %p82, %p83
    %p86 = scmp.ne.s32.totalorder %s71, %s85
    %p87 = scmp.eq.s32.totalorder %s19, 0
    %p88 = por %p86, %p87
    %s90 = sadd.s32 %s89, 1
    %p93 = scmp.eq.s32.totalorder %s13, 3
    %p94 = scmp.ne.s32.totalorder %s89, %s91
    %p95 = scmp.eq.s32.totalorder %s13, 0
    %p96 = por %p94, %p95
    %p97 = scmp.ne.s32.totalorder %s89, %s91
    %p98 = scmp.eq.s32.totalorder %s18, 3
    %p99 = por %p97, %p98
    %p100 = scmp.ne.s32.totalorder %s91, %s92
    %p101 = scmp.eq.s32.totalorder %s18, 0
    %p102 = por %p100, %p101
    %p103 = scmp.ne.s32.totalorder %s91, %s92
    %p104 = scmp.eq.s32.totalorder %s19, 3
    %p105 = por %p103, %p104
    %p107 = scmp.ne.s32.totalorder %s92, %s106
    %p108 = scmp.eq.s32.totalorder %s19, 0
    %p109 = por %p107, %p108
    %s111 = sadd.s32 %s110, 1
    %p114 = scmp.eq.s32.totalorder %s13, 3
    %p115 = scmp.ne.s32.totalorder %s110, %s112
    %p116 = scmp.eq.s32.totalorder %s13, 0
    %p117 = por %p115, %p116
    %p118 = scmp.ne.s32.totalorder %s110, %s112
    %p119 = scmp.eq.s32.totalorder %s18, 3
    %p120 = por %p118, %p119
    %p121 = scmp.ne.s32.totalorder %s112, %s113
    %p122 = scmp.eq.s32.totalorder %s18, 0
    %p123 = por %p121, %p122
    %p124 = scmp.ne.s32.totalorder %s112, %s113
    %p125 = scmp.eq.s32.totalorder %s19, 3
    %p126 = por %p124, %p125
    %p128 = scmp.ne.s32.totalorder %s113, %s127
    %p129 = scmp.eq.s32.totalorder %s19, 0
    %p130 = por %p128, %p129
    %s132 = sadd.s32 %s131, 1
    %p135 = scmp.eq.s32.totalorder %s13, 3
    %p136 = scmp.ne.s32.totalorder %s131, %s133
    %p137 = scmp.eq.s32.totalorder %s13, 0
    %p138 = por %p136, %p137
    %p139 = scmp.ne.s32.totalorder %s131, %s133
    %p140 = scmp.eq.s32.totalorder %s18, 3
    %p141 = por %p139, %p140
    %p142 = scmp.ne.s32.totalorder %s133, %s134
    %p143 = scmp.eq.s32.totalorder %s18, 0
    %p144 = por %p142, %p143
    %p145 = scmp.ne.s32.totalorder %s133, %s134
    %p146 = scmp.eq.s32.totalorder %s19, 3
    %p147 = por %p145, %p146
    %p149 = scmp.ne.s32.totalorder %s134, %s148
    %p150 = scmp.eq.s32.totalorder %s19, 0
    %p151 = por %p149, %p150
    %s153 = sadd.s32 %s152, 1
    %p156 = scmp.eq.s32.totalorder %s13, 3
    %p157 = scmp.ne.s32.totalorder %s152, %s154
    %p158 = scmp.eq.s32.totalorder %s13, 0
    %p159 = por %p157, %p158
    %p160 = scmp.ne.s32.totalorder %s152, %s154
    %p161 = scmp.eq.s32.totalorder %s18, 3
    %p162 = por %p160, %p161
    %p163 = scmp.ne.s32.totalorder %s154, %s155
    %p164 = scmp.eq.s32.totalorder %s18, 0
    %p165 = por %p163, %p164
    %p166 = scmp.ne.s32.totalorder %s154, %s155
    %p167 = scmp.eq.s32.totalorder %s19, 3
    %p168 = por %p166, %p167
    %p170 = scmp.ne.s32.totalorder %s155, %s169
    %p171 = scmp.eq.s32.totalorder %s19, 0
    %p172 = por %p170, %p171
    %s173 = ssub.s32 %s13, %s20
    %p174 = scmp.eq.s32.totalorder %s173, 0
    %s176 = sadd.s32 %s175, 1
    %s177 = scalar_select %p174, %s175, %s176
    %p180 = pneg %p174
    %p181 = scmp.eq.s32.totalorder %s13, 3
    %p182 = por %p180, %p181
    %p183 = scmp.ne.s32.totalorder %s175, %s178
    %p184 = scmp.eq.s32.totalorder %s13, 0
    %p185 = por %p183, %p184
    %p186 = scmp.ne.s32.totalorder %s175, %s178
    %p187 = scmp.eq.s32.totalorder %s18, 3
    %p188 = por %p186, %p187
    %p189 = scmp.ne.s32.totalorder %s178, %s179
    %p190 = scmp.eq.s32.totalorder %s18, 0
    %p191 = por %p189, %p190
    %p192 = scmp.ne.s32.totalorder %s178, %s179
    %p193 = scmp.eq.s32.totalorder %s19, 3
    %p194 = por %p192, %p193
    %p196 = scmp.ne.s32.totalorder %s179, %s195
    %p197 = scmp.eq.s32.totalorder %s19, 0
    %p198 = por %p196, %p197
    %p199 = scmp.le.s32.totalorder 1, %s13
    %p200 = scmp.lt.s32.totalorder %s13, 5
    %p201 = pnand %p199, %p200
    %p202 = pneg %p201
    // Predicated region
    $region9: #{generator_forward.1} parent=5 // pred_check
      _
    $region10: #{generator_forward.1} parent=5 // pred_check_branch
      %204 = sbr.rel (%p201) target = $region12
    $region11: #{generator_forward.1} parent=5 // pred_region
      %s205 = ssub.s32 %s13, 1
      // Predicated region
      $region13: #{generator_forward.1} parent=11 // pred_check
        %p206 = pneg %p60
      $region14: #{generator_forward.1} parent=11 // pred_check_branch
        %208 = sbr.rel (%p206) target = $region16
      $region15: #{generator_forward.1} parent=11 // pred_region
        _
      $region16: #{generator_forward.1} parent=11 // pred_fallthru
        _
      // Predicated region
      $region17: #{generator_forward.1} parent=11 // pred_check
        %p209 = pneg %p81
      $region18: #{generator_forward.1} parent=11 // pred_check_branch
        %211 = sbr.rel (%p209) target = $region20
      $region19: #{generator_forward.1} parent=11 // pred_region
        _
      $region20: #{generator_forward.1} parent=11 // pred_fallthru
        _
      // Predicated region
      $region21: #{generator_forward.1} parent=11 // pred_check
        %p212 = pneg %p102
      $region22: #{generator_forward.1} parent=11 // pred_check_branch
        %214 = sbr.rel (%p212) target = $region24
      $region23: #{generator_forward.1} parent=11 // pred_region
        _
      $region24: #{generator_forward.1} parent=11 // pred_fallthru
        _
      // Predicated region
      $region25: #{generator_forward.1} parent=11 // pred_check
        %p215 = pneg %p123
      $region26: #{generator_forward.1} parent=11 // pred_check_branch
        %217 = sbr.rel (%p215) target = $region28
      $region27: #{generator_forward.1} parent=11 // pred_region
        _
      $region28: #{generator_forward.1} parent=11 // pred_fallthru
        _
      // Predicated region
      $region29: #{generator_forward.1} parent=11 // pred_check
        %p218 = pneg %p144
      $region30: #{generator_forward.1} parent=11 // pred_check_branch
        %220 = sbr.rel (%p218) target = $region32
      $region31: #{generator_forward.1} parent=11 // pred_region
        _
      $region32: #{generator_forward.1} parent=11 // pred_fallthru
        _
      // Predicated region
      $region33: #{generator_forward.1} parent=11 // pred_check
        %p221 = pneg %p165
      $region34: #{generator_forward.1} parent=11 // pred_check_branch
        %223 = sbr.rel (%p221) target = $region36
      $region35: #{generator_forward.1} parent=11 // pred_region
        _
      $region36: #{generator_forward.1} parent=11 // pred_fallthru
        _
    $region12: #{generator_forward.1} parent=5 // pred_fallthru
      _
    %p224 = scmp.lt.s32.totalorder %s13, 4
    // Predicated region
    $region37: #{generator_forward.1} parent=5 // pred_check
      %p225 = pneg %p224
    $region38: #{generator_forward.1} parent=5 // pred_check_branch
      %227 = sbr.rel (%p225) target = $region40
    $region39: #{generator_forward.1} parent=5 // pred_region
      // Predicated region
      $region41: #{generator_forward.1} parent=39 // pred_check
        %p228 = pneg %p33
      $region42: #{generator_forward.1} parent=39 // pred_check_branch
        %230 = sbr.rel (%p228) target = $region44
      $region43: #{generator_forward.1} parent=39 // pred_region
        %p231 = scmp.lt.s32.totalorder %s13, 3
        %s232 = scalar_select %p231, %s13, 3
        %s233 = smul.addr %s232, 8
        %s234 = scalar_lea.vmem %s0, %s233
      $region44: #{generator_forward.1} parent=39 // pred_fallthru
        _
    $region40: #{generator_forward.1} parent=5 // pred_fallthru
      _
    %p235 = scmp.le.s32.totalorder 1, %s13
    %p236 = scmp.lt.s32.totalorder %s13, 5
    %p237 = pnand %p235, %p236
    %p238 = pneg %p237
    // Predicated region
    $region45: #{generator_forward.1} parent=5 // pred_check
      _
    $region46: #{generator_forward.1} parent=5 // pred_check_branch
      %240 = sbr.rel (%p237) target = $region48
    $region47: #{generator_forward.1} parent=5 // pred_region
      %s241 = ssub.s32 %s13, 1
      %p242 = scmp.lt.s32.totalorder %s18, 3
      %s243 = scalar_select %p242, %s18, 3
      %s244 = smul.addr %s243, 8
      %s245 = scalar_lea.vmem %s0, %s244
      %p246 = pneg %p39
      %p247 = pneg %p36
      %p248 = pneg %p60
      %p249 = pneg %p57
      %p250 = pneg %p81
      %p251 = pneg %p78
      %p252 = pneg %p102
      %p253 = pneg %p99
      %p254 = pneg %p123
      %p255 = pneg %p120
      %p256 = pneg %p144
      %p257 = pneg %p141
      %p258 = pneg %p165
      %p259 = pneg %p162
      %p260 = pneg %p191
      %p261 = pneg %p188
      %p262 = scmp.lt.s32.totalorder %s18, 3
      %s263 = scalar_select %p262, %s18, 3
      %s264 = smul.addr %s263, 7
      %s265 = smul.addr %s264, 8
      %s266 = scalar_lea.vmem %s7, %s265
      %p267 = scmp.lt.s32.totalorder %s18, 3
      %s268 = scalar_select %p267, %s18, 3
      %s269 = smul.addr %s268, 8
      %s270 = scalar_lea.vmem %s0, %s269
      %p271 = scmp.lt.s32.totalorder %s18, 3
      %s272 = scalar_select %p271, %s18, 3
      %s273 = smul.addr %s272, 7
      %s274 = smul.addr %s273, 8
      %s275 = scalar_lea.vmem %s7, %s274
      %v277 = vld [vmem:[%s270] sm:$0xff]
      %v278 = vpack.c.bf16 %v277, %v277
      %v279 = vld [vmem:[%s2] sm:$0xf]
      %v280 = vld [vmem:[%s2 + $0x4] sm:$0xf]
      %v281 = vld [vmem:[%s2 + $0x8] sm:$0xf]
      %v282 = vld [vmem:[%s2 + $0xc] sm:$0xf]
      %v283 = vld [vmem:[%s2 + $0x10] sm:$0xf]
      %v284 = vld [vmem:[%s2 + $0x14] sm:$0xf]
      %v285 = vld [vmem:[%s2 + $0x18] sm:$0xf]
      %v286 = vld [vmem:[%s2 + $0x1c] sm:$0xf]
      %v287 = vld [vmem:[%s2 + $0x20] sm:$0xf]
      %v288 = vld [vmem:[%s2 + $0x24] sm:$0xf]
      %v289 = vld [vmem:[%s2 + $0x28] sm:$0xf]
      %v290 = vld [vmem:[%s2 + $0x2c] sm:$0xf]
      %v291 = vld [vmem:[%s2 + $0x30] sm:$0x3]
      %v292 = vld [vmem:[%s1] sm:$0x1]
      %v294 = vperm.slane %v292, 0
      %v309 = vunpack.c.l.b16 %v279
      %v310 = vunpack.c.l.b16 %v280
      %v311 = vunpack.c.l.b16 %v281
      %v312 = vunpack.c.l.b16 %v282
      %v313 = vunpack.c.l.b16 %v283
      %v314 = vunpack.c.l.b16 %v284
      %v315 = vunpack.c.l.b16 %v285
      %v316 = vunpack.c.l.b16 %v286
      %v317 = vunpack.c.l.b16 %v287
      %v318 = vunpack.c.l.b16 %v288
      %v319 = vunpack.c.l.b16 %v289
      %v320 = vunpack.c.l.b16 %v290
      %v321 = vunpack.c.l.b16 %v291
      %v322 = vpack.c.b16 %v310, %v309
      %v323 = vpack.c.b16 %v312, %v311
      %v324 = vpack.c.b16 %v314, %v313
      %v325 = vpack.c.b16 %v316, %v315
      %v326 = vpack.c.b16 %v318, %v317
      %v327 = vpack.c.b16 %v320, %v319
      %v328 = vpack.c.b16 %v321, %v321
      %vm335 = vcmask 818176
      %v337 = vsel %vm335, %v278, 0
      %vm339 = vcmask 1041408
      %v341 = vsel %vm339, %v328, 0
      %343 = vmatpush.bf16.msra.mxu0 0
      %344 = vmatpush.bf16.msra.mxu0 %v341
      %345 = vmatpush.bf16.msra.mxu0 %v327
      %346 = vmatpush.bf16.msra.mxu0 %v326
      %347 = vmatpush.bf16.msra.mxu0 %v325
      %348 = vmatpush.bf16.msra.mxu0 %v324
      %349 = vmatpush.bf16.msra.mxu0 %v323
      %350 = vmatpush.bf16.msra.mxu0 %v322
      %351 = vmatmul.bf16.gmra.mxu0 %v337
      %v352 = vpop.f32.mrf.mxu0
      %v353 = vadd.f32 %v294, %v352
      %v354 = vpop.f32.mrf.mxu0
      %355 = vdwg.mxu0
      %vm356 = vcmp.gt.f32.partialorder %v353, 0.0
      %v357 = vmul.f32 %v353, 0.2
      %v358 = vsel %vm356, %v353, %v357
      %v359 = vpack.c.bf16 %v358, %v358
      %v360 = vld [vmem:[%s3] sm:$0xff]
      %v361 = vld [vmem:[%s3 + $0x8] sm:$0xff]
      %v362 = vld [vmem:[%s3 + $0x10] sm:$0xff]
      %v363 = vld [vmem:[%s3 + $0x18] sm:$0xff]
      %v364 = vld [vmem:[%s3 + $0x20] sm:$0xff]
      %v365 = vld [vmem:[%s3 + $0x28] sm:$0xff]
      %v366 = vld [vmem:[%s3 + $0x30] sm:$0xff]
      %v367 = vld [vmem:[%s3 + $0x38] sm:$0xff]
      %v368 = vld [vmem:[%s3 + $0x40] sm:$0xff]
      %v369 = vld [vmem:[%s3 + $0x48] sm:$0xff]
      %v370 = vld [vmem:[%s3 + $0x50] sm:$0xff]
      %v371 = vld [vmem:[%s3 + $0x58] sm:$0xff]
      %v372 = vld [vmem:[%s3 + $0x60] sm:$0xff]
      %v373 = vld [vmem:[%s3 + $0x68] sm:$0xff]
      %v374 = vld [vmem:[%s3 + $0x70] sm:$0xff]
      %v375 = vld [vmem:[%s3 + $0x78] sm:$0xff]
      %v392 = vunpack.c.l.b16 %v360
      %v393 = vunpack.c.h.b16 %v360
      %v394 = vunpack.c.l.b16 %v361
      %v395 = vunpack.c.h.b16 %v361
      %v396 = vunpack.c.l.b16 %v362
      %v397 = vunpack.c.h.b16 %v362
      %v398 = vunpack.c.l.b16 %v363
      %v399 = vunpack.c.h.b16 %v363
      %v400 = vunpack.c.l.b16 %v364
      %v401 = vunpack.c.h.b16 %v364
      %v402 = vunpack.c.l.b16 %v365
      %v403 = vunpack.c.h.b16 %v365
      %v404 = vunpack.c.l.b16 %v366
      %v405 = vunpack.c.h.b16 %v366
      %v406 = vunpack.c.l.b16 %v367
      %v407 = vunpack.c.h.b16 %v367
      %v408 = vunpack.c.l.b16 %v368
      %v409 = vunpack.c.h.b16 %v368
      %v410 = vunpack.c.l.b16 %v369
      %v411 = vunpack.c.h.b16 %v369
      %v412 = vunpack.c.l.b16 %v370
      %v413 = vunpack.c.h.b16 %v370
      %v414 = vunpack.c.l.b16 %v371
      %v415 = vunpack.c.h.b16 %v371
      %v416 = vunpack.c.l.b16 %v372
      %v417 = vunpack.c.h.b16 %v372
      %v418 = vunpack.c.l.b16 %v373
      %v419 = vunpack.c.h.b16 %v373
      %v420 = vunpack.c.l.b16 %v374
      %v421 = vunpack.c.h.b16 %v374
      %v422 = vunpack.c.l.b16 %v375
      %v423 = vunpack.c.h.b16 %v375
      %v424 = vpack.c.b16 %v394, %v392
      %v425 = vpack.c.b16 %v395, %v393
      %v426 = vpack.c.b16 %v398, %v396
      %v427 = vpack.c.b16 %v399, %v397
      %v428 = vpack.c.b16 %v402, %v400
      %v429 = vpack.c.b16 %v403, %v401
      %v430 = vpack.c.b16 %v406, %v404
      %v431 = vpack.c.b16 %v407, %v405
      %v432 = vpack.c.b16 %v410, %v408
      %v433 = vpack.c.b16 %v411, %v409
      %v434 = vpack.c.b16 %v414, %v412
      %v435 = vpack.c.b16 %v415, %v413
      %v436 = vpack.c.b16 %v418, %v416
      %v437 = vpack.c.b16 %v419, %v417
      %v438 = vpack.c.b16 %v422, %v420
      %v439 = vpack.c.b16 %v423, %v421
      %456 = vmatpush.bf16.msra.mxu0 %v438
      %457 = vmatpush.bf16.msra.mxu0 %v436
      %458 = vmatpush.bf16.msra.mxu0 %v434
      %459 = vmatpush.bf16.msra.mxu0 %v432
      %460 = vmatpush.bf16.msra.mxu0 %v430
      %461 = vmatpush.bf16.msra.mxu0 %v428
      %462 = vmatpush.bf16.msra.mxu0 %v426
      %463 = vmatpush.bf16.msra.mxu0 %v424
      %464 = vmatmul.bf16.gmra.mxu0 %v359
      %v465 = vpop.f32.mrf.mxu0
      %v466 = vadd.f32 0.0, %v465
      %v467 = vpop.f32.mrf.mxu0
      %468 = vdwg.mxu0
      %469 = vmatpush.bf16.msra.mxu0 %v439
      %470 = vmatpush.bf16.msra.mxu0 %v437
      %471 = vmatpush.bf16.msra.mxu0 %v435
      %472 = vmatpush.bf16.msra.mxu0 %v433
      %473 = vmatpush.bf16.msra.mxu0 %v431
      %474 = vmatpush.bf16.msra.mxu0 %v429
      %475 = vmatpush.bf16.msra.mxu0 %v427
      %476 = vmatpush.bf16.msra.mxu0 %v425
      %477 = vmatmul.bf16.gmra.mxu0 %v359
      %v478 = vpop.f32.mrf.mxu0
      %v479 = vadd.f32 0.0, %v478
      %v480 = vpop.f32.mrf.mxu0
      %481 = vdwg.mxu0
      %v482 = vld [vmem:[%s1 + $0x1] sm:$0x3]
      %v483 = vld [vmem:[%s1 + $0x3] sm:$0x3]
      %v484 = vrot.slane %v466, 4
      %v485 = vadd.f32 %v466, %v484
      %v486 = vrot.slane %v485, 2
      %v487 = vadd.f32 %v485, %v486
      %v488 = vrot.slane %v487, 1
      %v489 = vadd.f32 %v487, %v488
      %v490 = vrot.slane %v479, 4
      %v491 = vadd.f32 %v479, %v490
      %v492 = vrot.slane %v491, 2
      %v493 = vadd.f32 %v491, %v492
      %v494 = vrot.slane %v493, 1
      %v495 = vadd.f32 %v493, %v494
      %v496 = vmul.f32 %v489, 0.125
      %v497 = vmul.f32 %v495, 0.125
      %v498 = vmul.f32 %v466, %v466
      %v499 = vmul.f32 %v479, %v479
      %v500 = vrot.slane %v498, 4
      %v501 = vadd.f32 %v498, %v500
      %v502 = vrot.slane %v501, 2
      %v503 = vadd.f32 %v501, %v502
      %v504 = vrot.slane %v503, 1
      %v505 = vadd.f32 %v503, %v504
      %v506 = vrot.slane %v499, 4
      %v507 = vadd.f32 %v499, %v506
      %v508 = vrot.slane %v507, 2
      %v509 = vadd.f32 %v507, %v508
      %v510 = vrot.slane %v509, 1
      %v511 = vadd.f32 %v509, %v510
      %v512 = vmul.f32 %v505, 0.125
      %v513 = vmul.f32 %v511, 0.125
      %v514 = vmul.f32 %v496, %v496
      %v515 = vmul.f32 %v497, %v497
      %v516 = vsub.f32 %v512, %v514
      %v517 = vsub.f32 %v513, %v515
      %v518 = vadd.f32 %v516, 0.8
      %v519 = vadd.f32 %v517, 0.8
      %v520 = vrsqrt.pop %v518
      %v521 = vmul.f32 %v520, %v518
      %v522 = vmul.f32 %v521, %v520
      %v523 = vmul.f32 0.5, %v522
      %v524 = vsub.f32 1.5, %v523
      %v525 = vmul.f32 %v520, %v524
      %vm526 = vweird.f32 %v518
      %vm527 = vweird.f32 %v520
      %vm528 = vmor %vm526, %vm527
      %v529 = vsel %vm528, %v520, %v525
      %v530 = vrsqrt.pop %v519
      %v531 = vmul.f32 %v530, %v519
      %v532 = vmul.f32 %v531, %v530
      %v533 = vmul.f32 0.5, %v532
      %v534 = vsub.f32 1.5, %v533
      %v535 = vmul.f32 %v530, %v534
      %vm536 = vweird.f32 %v519
      %vm537 = vweird.f32 %v530
      %vm538 = vmor %vm536, %vm537
      %v539 = vsel %vm538, %v530, %v535
      %v542 = vrot.slane %v539, 7
      %vm543 = vcmask 1040384
      %v544 = vsel %vm543, %v529, %v542
      %v546 = vmul.f32 %v482, %v544
      %v548 = vperm.slane %v546, 0
      %v549 = vperm.slane %v546, 1
      %v552 = vmul.f32 %v496, %v548
      %v553 = vmul.f32 %v497, %v549
      %v556 = vrot.slane %v553, 7
      %v557 = vsel %vm543, %v552, %v556
      %v559 = vsub.f32 %v483, %v557
      %v560 = vmul.f32 %v466, %v548
      %v561 = vmul.f32 %v479, %v549
      %v563 = vperm.slane %v559, 0
      %v564 = vperm.slane %v559, 1
      %v567 = vadd.f32 %v560, %v563
      %v568 = vadd.f32 %v561, %v564
      %vm569 = vcmp.gt.f32.partialorder %v567, 0.0
      %vm570 = vcmp.gt.f32.partialorder %v568, 0.0
      %v571 = vmul.f32 %v567, 0.2
      %v572 = vmul.f32 %v568, 0.2
      %v573 = vsel %vm569, %v567, %v571
      %v574 = vsel %vm570, %v568, %v572
      %v575 = vpack.c.bf16 %v573, %v573
      %v576 = vpack.c.bf16 %v574, %v574
      %v577 = vld [vmem:[%s4] sm:$0xff]
      %v578 = vld [vmem:[%s4 + $0x8] sm:$0xff]
      %v579 = vld [vmem:[%s4 + $0x10] sm:$0xff]
      %v580 = vld [vmem:[%s4 + $0x18] sm:$0xff]
      %v581 = vld [vmem:[%s4 + $0x20] sm:$0xff]
      %v582 = vld [vmem:[%s4 + $0x28] sm:$0xff]
      %v583 = vld [vmem:[%s4 + $0x30] sm:$0xff]
      %v584 = vld [vmem:[%s4 + $0x38] sm:$0xff]
      %v585 = vld [vmem:[%s4 + $0x40] sm:$0xff]
      %v586 = vld [vmem:[%s4 + $0x48] sm:$0xff]
      %v587 = vld [vmem:[%s4 + $0x50] sm:$0xff]
      %v588 = vld [vmem:[%s4 + $0x58] sm:$0xff]
      %v589 = vld [vmem:[%s4 + $0x60] sm:$0xff]
      %v590 = vld [vmem:[%s4 + $0x68] sm:$0xff]
      %v591 = vld [vmem:[%s4 + $0x70] sm:$0xff]
      %v592 = vld [vmem:[%s4 + $0x78] sm:$0xff]
      %v593 = vld [vmem:[%s4 + $0x80] sm:$0xff]
      %v594 = vld [vmem:[%s4 + $0x88] sm:$0xff]
      %v595 = vld [vmem:[%s4 + $0x90] sm:$0xff]
      %v596 = vld [vmem:[%s4 + $0x98] sm:$0xff]
      %v597 = vld [vmem:[%s4 + $0xa0] sm:$0xff]
      %v598 = vld [vmem:[%s4 + $0xa8] sm:$0xff]
      %v599 = vld [vmem:[%s4 + $0xb0] sm:$0xff]
      %v600 = vld [vmem:[%s4 + $0xb8] sm:$0xff]
      %v601 = vld [vmem:[%s4 + $0xc0] sm:$0xff]
      %v602 = vld [vmem:[%s4 + $0xc8] sm:$0xff]
      %v603 = vld [vmem:[%s4 + $0xd0] sm:$0xff]
      %v604 = vld [vmem:[%s4 + $0xd8] sm:$0xff]
      %v605 = vld [vmem:[%s4 + $0xe0] sm:$0xff]
      %v606 = vld [vmem:[%s4 + $0xe8] sm:$0xff]
      %v607 = vld [vmem:[%s4 + $0xf0] sm:$0xff]
      %v608 = vld [vmem:[%s4 + $0xf8] sm:$0xff]
      %v609 = vld [vmem:[%s4 + $0x100] sm:$0xff]
      %v610 = vld [vmem:[%s4 + $0x108] sm:$0xff]
      %v611 = vld [vmem:[%s4 + $0x110] sm:$0xff]
      %v612 = vld [vmem:[%s4 + $0x118] sm:$0xff]
      %v613 = vld [vmem:[%s4 + $0x120] sm:$0xff]
      %v614 = vld [vmem:[%s4 + $0x128] sm:$0xff]
      %v615 = vld [vmem:[%s4 + $0x130] sm:$0xff]
      %v616 = vld [vmem:[%s4 + $0x138] sm:$0xff]
      %v617 = vld [vmem:[%s4 + $0x140] sm:$0xff]
      %v618 = vld [vmem:[%s4 + $0x148] sm:$0xff]
      %v619 = vld [vmem:[%s4 + $0x150] sm:$0xff]
      %v620 = vld [vmem:[%s4 + $0x158] sm:$0xff]
      %v621 = vld [vmem:[%s4 + $0x160] sm:$0xff]
      %v622 = vld [vmem:[%s4 + $0x168] sm:$0xff]
      %v623 = vld [vmem:[%s4 + $0x170] sm:$0xff]
      %v624 = vld [vmem:[%s4 + $0x178] sm:$0xff]
      %v625 = vld [vmem:[%s4 + $0x180] sm:$0xff]
      %v626 = vld [vmem:[%s4 + $0x188] sm:$0xff]
      %v627 = vld [vmem:[%s4 + $0x190] sm:$0xff]
      %v628 = vld [vmem:[%s4 + $0x198] sm:$0xff]
      %v629 = vld [vmem:[%s4 + $0x1a0] sm:$0xff]
      %v630 = vld [vmem:[%s4 + $0x1a8] sm:$0xff]
      %v631 = vld [vmem:[%s4 + $0x1b0] sm:$0xff]
      %v632 = vld [vmem:[%s4 + $0x1b8] sm:$0xff]
      %v633 = vld [vmem:[%s4 + $0x1c0] sm:$0xff]
      %v634 = vld [vmem:[%s4 + $0x1c8] sm:$0xff]
      %v635 = vld [vmem:[%s4 + $0x1d0] sm:$0xff]
      %v636 = vld [vmem:[%s4 + $0x1d8] sm:$0xff]
      %v637 = vld [vmem:[%s4 + $0x1e0] sm:$0xff]
      %v638 = vld [vmem:[%s4 + $0x1e8] sm:$0xff]
      %v639 = vld [vmem:[%s4 + $0x1f0] sm:$0xff]
      %v640 = vld [vmem:[%s4 + $0x1f8] sm:$0xff]
      %v705 = vunpack.c.l.b16 %v577
      %v706 = vunpack.c.h.b16 %v577
      %v707 = vunpack.c.l.b16 %v578
      %v708 = vunpack.c.h.b16 %v578
      %v709 = vunpack.c.l.b16 %v579
      %v710 = vunpack.c.h.b16 %v579
      %v711 = vunpack.c.l.b16 %v580
      %v712 = vunpack.c.h.b16 %v580
      %v713 = vunpack.c.l.b16 %v581
      %v714 = vunpack.c.h.b16 %v581
      %v715 = vunpack.c.l.b16 %v582
      %v716 = vunpack.c.h.b16 %v582
      %v717 = vunpack.c.l.b16 %v583
      %v718 = vunpack.c.h.b16 %v583
      %v719 = vunpack.c.l.b16 %v584
      %v720 = vunpack.c.h.b16 %v584
      %v721 = vunpack.c.l.b16 %v585
      %v722 = vunpack.c.h.b16 %v585
      %v723 = vunpack.c.l.b16 %v586
      %v724 = vunpack.c.h.b16 %v586
      %v725 = vunpack.c.l.b16 %v587
      %v726 = vunpack.c.h.b16 %v587
      %v727 = vunpack.c.l.b16 %v588
      %v728 = vunpack.c.h.b16 %v588
      %v729 = vunpack.c.l.b16 %v589
      %v730 = vunpack.c.h.b16 %v589
      %v731 = vunpack.c.l.b16 %v590
      %v732 = vunpack.c.h.b16 %v590
      %v733 = vunpack.c.l.b16 %v591
      %v734 = vunpack.c.h.b16 %v591
      %v735 = vunpack.c.l.b16 %v592
      %v736 = vunpack.c.h.b16 %v592
      %v737 = vunpack.c.l.b16 %v593
      %v738 = vunpack.c.h.b16 %v593
      %v739 = vunpack.c.l.b16 %v594
      %v740 = vunpack.c.h.b16 %v594
      %v741 = vunpack.c.l.b16 %v595
      %v742 = vunpack.c.h.b16 %v595
      %v743 = vunpack.c.l.b16 %v596
      %v744 = vunpack.c.h.b16 %v596
      %v745 = vunpack.c.l.b16 %v597
      %v746 = vunpack.c.h.b16 %v597
      %v747 = vunpack.c.l.b16 %v598
      %v748 = vunpack.c.h.b16 %v598
      %v749 = vunpack.c.l.b16 %v599
      %v750 = vunpack.c.h.b16 %v599
      %v751 = vunpack.c.l.b16 %v600
      %v752 = vunpack.c.h.b16 %v600
      %v753 = vunpack.c.l.b16 %v601
      %v754 = vunpack.c.h.b16 %v601
      %v755 = vunpack.c.l.b16 %v602
      %v756 = vunpack.c.h.b16 %v602
      %v757 = vunpack.c.l.b16 %v603
      %v758 = vunpack.c.h.b16 %v603
      %v759 = vunpack.c.l.b16 %v604
      %v760 = vunpack.c.h.b16 %v604
      %v761 = vunpack.c.l.b16 %v605
      %v762 = vunpack.c.h.b16 %v605
      %v763 = vunpack.c.l.b16 %v606
      %v764 = vunpack.c.h.b16 %v606
      %v765 = vunpack.c.l.b16 %v607
      %v766 = vunpack.c.h.b16 %v607
      %v767 = vunpack.c.l.b16 %v608
      %v768 = vunpack.c.h.b16 %v608
      %v769 = vunpack.c.l.b16 %v609
      %v770 = vunpack.c.h.b16 %v609
      %v771 = vunpack.c.l.b16 %v610
      %v772 = vunpack.c.h.b16 %v610
      %v773 = vunpack.c.l.b16 %v611
      %v774 = vunpack.c.h.b16 %v611
      %v775 = vunpack.c.l.b16 %v612
      %v776 = vunpack.c.h.b16 %v612
      %v777 = vunpack.c.l.b16 %v613
      %v778 = vunpack.c.h.b16 %v613
      %v779 = vunpack.c.l.b16 %v614
      %v780 = vunpack.c.h.b16 %v614
      %v781 = vunpack.c.l.b16 %v615
      %v782 = vunpack.c.h.b16 %v615
      %v783 = vunpack.c.l.b16 %v616
      %v784 = vunpack.c.h.b16 %v616
      %v785 = vunpack.c.l.b16 %v617
      %v786 = vunpack.c.h.b16 %v617
      %v787 = vunpack.c.l.b16 %v618
      %v788 = vunpack.c.h.b16 %v618
      %v789 = vunpack.c.l.b16 %v619
      %v790 = vunpack.c.h.b16 %v619
      %v791 = vunpack.c.l.b16 %v620
      %v792 = vunpack.c.h.b16 %v620
      %v793 = vunpack.c.l.b16 %v621
      %v794 = vunpack.c.h.b16 %v621
      %v795 = vunpack.c.l.b16 %v622
      %v796 = vunpack.c.h.b16 %v622
      %v797 = vunpack.c.l.b16 %v623
      %v798 = vunpack.c.h.b16 %v623
      %v799 = vunpack.c.l.b16 %v624
      %v800 = vunpack.c.h.b16 %v624
      %v801 = vunpack.c.l.b16 %v625
      %v802 = vunpack.c.h.b16 %v625
      %v803 = vunpack.c.l.b16 %v626
      %v804 = vunpack.c.h.b16 %v626
      %v805 = vunpack.c.l.b16 %v627
      %v806 = vunpack.c.h.b16 %v627
      %v807 = vunpack.c.l.b16 %v628
      %v808 = vunpack.c.h.b16 %v628
      %v809 = vunpack.c.l.b16 %v629
      %v810 = vunpack.c.h.b16 %v629
      %v811 = vunpack.c.l.b16 %v630
      %v812 = vunpack.c.h.b16 %v630
      %v813 = vunpack.c.l.b16 %v631
      %v814 = vunpack.c.h.b16 %v631
      %v815 = vunpack.c.l.b16 %v632
      %v816 = vunpack.c.h.b16 %v632
      %v817 = vunpack.c.l.b16 %v633
      %v818 = vunpack.c.h.b16 %v633
      %v819 = vunpack.c.l.b16 %v634
      %v820 = vunpack.c.h.b16 %v634
      %v821 = vunpack.c.l.b16 %v635
      %v822 = vunpack.c.h.b16 %v635
      %v823 = vunpack.c.l.b16 %v636
      %v824 = vunpack.c.h.b16 %v636
      %v825 = vunpack.c.l.b16 %v637
      %v826 = vunpack.c.h.b16 %v637
      %v827 = vunpack.c.l.b16 %v638
      %v828 = vunpack.c.h.b16 %v638
      %v829 = vunpack.c.l.b16 %v639
      %v830 = vunpack.c.h.b16 %v639
      %v831 = vunpack.c.l.b16 %v640
      %v832 = vunpack.c.h.b16 %v640
      %v833 = vpack.c.b16 %v709, %v705
      %v834 = vpack.c.b16 %v710, %v706
      %v835 = vpack.c.b16 %v711, %v707
      %v836 = vpack.c.b16 %v712, %v708
      %v837 = vpack.c.b16 %v717, %v713
      %v838 = vpack.c.b16 %v718, %v714
      %v839 = vpack.c.b16 %v719, %v715
      %v840 = vpack.c.b16 %v720, %v716
      %v841 = vpack.c.b16 %v725, %v721
      %v842 = vpack.c.b16 %v726, %v722
      %v843 = vpack.c.b16 %v727, %v723
      %v844 = vpack.c.b16 %v728, %v724
      %v845 = vpack.c.b16 %v733, %v729
      %v846 = vpack.c.b16 %v734, %v730
      %v847 = vpack.c.b16 %v735, %v731
      %v848 = vpack.c.b16 %v736, %v732
      %v849 = vpack.c.b16 %v741, %v737
      %v850 = vpack.c.b16 %v742, %v738
      %v851 = vpack.c.b16 %v743, %v739
      %v852 = vpack.c.b16 %v744, %v740
      %v853 = vpack.c.b16 %v749, %v745
      %v854 = vpack.c.b16 %v750, %v746
      %v855 = vpack.c.b16 %v751, %v747
      %v856 = vpack.c.b16 %v752, %v748
      %v857 = vpack.c.b16 %v757, %v753
      %v858 = vpack.c.b16 %v758, %v754
      %v859 = vpack.c.b16 %v759, %v755
      %v860 = vpack.c.b16 %v760, %v756
      %v861 = vpack.c.b16 %v765, %v761
      %v862 = vpack.c.b16 %v766, %v762
      %v863 = vpack.c.b16 %v767, %v763
      %v864 = vpack.c.b16 %v768, %v764
      %v865 = vpack.c.b16 %v773, %v769
      %v866 = vpack.c.b16 %v774, %v770
      %v867 = vpack.c.b16 %v775, %v771
      %v868 = vpack.c.b16 %v776, %v772
      %v869 = vpack.c.b16 %v781, %v777
      %v870 = vpack.c.b16 %v782, %v778
      %v871 = vpack.c.b16 %v783, %v779
      %v872 = vpack.c.b16 %v784, %v780
      %v873 = vpack.c.b16 %v789, %v785
      %v874 = vpack.c.b16 %v790, %v786
      %v875 = vpack.c.b16 %v791, %v787
      %v876 = vpack.c.b16 %v792, %v788
      %v877 = vpack.c.b16 %v797, %v793
      %v878 = vpack.c.b16 %v798, %v794
      %v879 = vpack.c.b16 %v799, %v795
      %v880 = vpack.c.b16 %v800, %v796
      %v881 = vpack.c.b16 %v805, %v801
      %v882 = vpack.c.b16 %v806, %v802
      %v883 = vpack.c.b16 %v807, %v803
      %v884 = vpack.c.b16 %v808, %v804
      %v885 = vpack.c.b16 %v813, %v809
      %v886 = vpack.c.b16 %v814, %v810
      %v887 = vpack.c.b16 %v815, %v811
      %v888 = vpack.c.b16 %v816, %v812
      %v889 = vpack.c.b16 %v821, %v817
      %v890 = vpack.c.b16 %v822, %v818
      %v891 = vpack.c.b16 %v823, %v819
      %v892 = vpack.c.b16 %v824, %v820
      %v893 = vpack.c.b16 %v829, %v825
      %v894 = vpack.c.b16 %v830, %v826
      %v895 = vpack.c.b16 %v831, %v827
      %v896 = vpack.c.b16 %v832, %v828
      %961 = vmatpush.bf16.msra.mxu0 %v861
      %962 = vmatpush.bf16.msra.mxu0 %v857
      %963 = vmatpush.bf16.msra.mxu0 %v853
      %964 = vmatpush.bf16.msra.mxu0 %v849
      %965 = vmatpush.bf16.msra.mxu0 %v845
      %966 = vmatpush.bf16.msra.mxu0 %v841
      %967 = vmatpush.bf16.msra.mxu0 %v837
      %968 = vmatpush.bf16.msra.mxu0 %v833
      %969 = vmatmul.bf16.gmra.mxu0 %v575
      %v970 = vpop.f32.mrf.mxu0
      %v971 = vadd.f32 0.0, %v970
      %v972 = vpop.f32.mrf.mxu0
      %973 = vdwg.mxu0
      %974 = vmatpush.bf16.msra.mxu0 %v893
      %975 = vmatpush.bf16.msra.mxu0 %v889
      %976 = vmatpush.bf16.msra.mxu0 %v885
      %977 = vmatpush.bf16.msra.mxu0 %v881
      %978 = vmatpush.bf16.msra.mxu0 %v877
      %979 = vmatpush.bf16.msra.mxu0 %v873
      %980 = vmatpush.bf16.msra.mxu0 %v869
      %981 = vmatpush.bf16.msra.mxu0 %v865
      %982 = vmatmul.bf16.gmra.mxu0 %v576
      %v983 = vpop.f32.mrf.mxu0
      %v984 = vadd.f32 %v971, %v983
      %v985 = vpop.f32.mrf.mxu0
      %986 = vdwg.mxu0
      %987 = vmatpush.bf16.msra.mxu0 %v862
      %988 = vmatpush.bf16.msra.mxu0 %v858
      %989 = vmatpush.bf16.msra.mxu0 %v854
      %990 = vmatpush.bf16.msra.mxu0 %v850
      %991 = vmatpush.bf16.msra.mxu0 %v846
      %992 = vmatpush.bf16.msra.mxu0 %v842
      %993 = vmatpush.bf16.msra.mxu0 %v838
      %994 = vmatpush.bf16.msra.mxu0 %v834
      %995 = vmatmul.bf16.gmra.mxu0 %v575
      %v996 = vpop.f32.mrf.mxu0
      %v997 = vadd.f32 0.0, %v996
      %v998 = vpop.f32.mrf.mxu0
      %999 = vdwg.mxu0
      %1000 = vmatpush.bf16.msra.mxu0 %v894
      %1001 = vmatpush.bf16.msra.mxu0 %v890
      %1002 = vmatpush.bf16.msra.mxu0 %v886
      %1003 = vmatpush.bf16.msra.mxu0 %v882
      %1004 = vmatpush.bf16.msra.mxu0 %v878
      %1005 = vmatpush.bf16.msra.mxu0 %v874
      %1006 = vmatpush.bf16.msra.mxu0 %v870
      %1007 = vmatpush.bf16.msra.mxu0 %v866
      %1008 = vmatmul.bf16.gmra.mxu0 %v576
      %v1009 = vpop.f32.mrf.mxu0
      %v1010 = vadd.f32 %v997, %v1009
      %v1011 = vpop.f32.mrf.mxu0
      %1012 = vdwg.mxu0
      %1013 = vmatpush.bf16.msra.mxu0 %v863
      %1014 = vmatpush.bf16.msra.mxu0 %v859
      %1015 = vmatpush.bf16.msra.mxu0 %v855
      %1016 = vmatpush.bf16.msra.mxu0 %v851
      %1017 = vmatpush.bf16.msra.mxu0 %v847
      %1018 = vmatpush.bf16.msra.mxu0 %v843
      %1019 = vmatpush.bf16.msra.mxu0 %v839
      %1020 = vmatpush.bf16.msra.mxu0 %v835
      %1021 = vmatmul.bf16.gmra.mxu0 %v575
      %v1022 = vpop.f32.mrf.mxu0
      %v1023 = vadd.f32 0.0, %v1022
      %v1024 = vpop.f32.mrf.mxu0
      %1025 = vdwg.mxu0
      %1026 = vmatpush.bf16.msra.mxu0 %v895
      %1027 = vmatpush.bf16.msra.mxu0 %v891
      %1028 = vmatpush.bf16.msra.mxu0 %v887
      %1029 = vmatpush.bf16.msra.mxu0 %v883
      %1030 = vmatpush.bf16.msra.mxu0 %v879
      %1031 = vmatpush.bf16.msra.mxu0 %v875
      %1032 = vmatpush.bf16.msra.mxu0 %v871
      %1033 = vmatpush.bf16.msra.mxu0 %v867
      %1034 = vmatmul.bf16.gmra.mxu0 %v576
      %v1035 = vpop.f32.mrf.mxu0
      %v1036 = vadd.f32 %v1023, %v1035
      %v1037 = vpop.f32.mrf.mxu0
      %1038 = vdwg.mxu0
      %1039 = vmatpush.bf16.msra.mxu0 %v864
      %1040 = vmatpush.bf16.msra.mxu0 %v860
      %1041 = vmatpush.bf16.msra.mxu0 %v856
      %1042 = vmatpush.bf16.msra.mxu0 %v852
      %1043 = vmatpush.bf16.msra.mxu0 %v848
      %1044 = vmatpush.bf16.msra.mxu0 %v844
      %1045 = vmatpush.bf16.msra.mxu0 %v840
      %1046 = vmatpush.bf16.msra.mxu0 %v836
      %1047 = vmatmul.bf16.gmra.mxu0 %v575
      %v1048 = vpop.f32.mrf.mxu0
      %v1049 = vadd.f32 0.0, %v1048
      %v1050 = vpop.f32.mrf.mxu0
      %1051 = vdwg.mxu0
      %1052 = vmatpush.bf16.msra.mxu0 %v896
      %1053 = vmatpush.bf16.msra.mxu0 %v892
      %1054 = vmatpush.bf16.msra.mxu0 %v888
      %1055 = vmatpush.bf16.msra.mxu0 %v884
      %1056 = vmatpush.bf16.msra.mxu0 %v880
      %1057 = vmatpush.bf16.msra.mxu0 %v876
      %1058 = vmatpush.bf16.msra.mxu0 %v872
      %1059 = vmatpush.bf16.msra.mxu0 %v868
      %1060 = vmatmul.bf16.gmra.mxu0 %v576
      %v1061 = vpop.f32.mrf.mxu0
      %v1062 = vadd.f32 %v1049, %v1061
      %v1063 = vpop.f32.mrf.mxu0
      %1064 = vdwg.mxu0
      %v1065 = vld [vmem:[%s1 + $0x5] sm:$0xf]
      %v1066 = vld [vmem:[%s1 + $0x9] sm:$0xf]
      %v1067 = vrot.slane %v984, 4
      %v1068 = vadd.f32 %v984, %v1067
      %v1069 = vrot.slane %v1068, 2
      %v1070 = vadd.f32 %v1068, %v1069
      %v1071 = vrot.slane %v1070, 1
      %v1072 = vadd.f32 %v1070, %v1071
      %v1073 = vrot.slane %v1010, 4
      %v1074 = vadd.f32 %v1010, %v1073
      %v1075 = vrot.slane %v1074, 2
      %v1076 = vadd.f32 %v1074, %v1075
      %v1077 = vrot.slane %v1076, 1
      %v1078 = vadd.f32 %v1076, %v1077
      %v1079 = vrot.slane %v1036, 4
      %v1080 = vadd.f32 %v1036, %v1079
      %v1081 = vrot.slane %v1080, 2
      %v1082 = vadd.f32 %v1080, %v1081
      %v1083 = vrot.slane %v1082, 1
      %v1084 = vadd.f32 %v1082, %v1083
      %v1085 = vrot.slane %v1062, 4
      %v1086 = vadd.f32 %v1062, %v1085
      %v1087 = vrot.slane %v1086, 2
      %v1088 = vadd.f32 %v1086, %v1087
      %v1089 = vrot.slane %v1088, 1
      %v1090 = vadd.f32 %v1088, %v1089
      %v1091 = vmul.f32 %v1072, 0.125
      %v1092 = vmul.f32 %v1078, 0.125
      %v1093 = vmul.f32 %v1084, 0.125
      %v1094 = vmul.f32 %v1090, 0.125
      %v1095 = vmul.f32 %v984, %v984
      %v1096 = vmul.f32 %v1010, %v1010
      %v1097 = vmul.f32 %v1036, %v1036
      %v1098 = vmul.f32 %v1062, %v1062
      %v1099 = vrot.slane %v1095, 4
      %v1100 = vadd.f32 %v1095, %v1099
      %v1101 = vrot.slane %v1100, 2
      %v1102 = vadd.f32 %v1100, %v1101
      %v1103 = vrot.slane %v1102, 1
      %v1104 = vadd.f32 %v1102, %v1103
      %v1105 = vrot.slane %v1096, 4
      %v1106 = vadd.f32 %v1096, %v1105
      %v1107 = vrot.slane %v1106, 2
      %v1108 = vadd.f32 %v1106, %v1107
      %v1109 = vrot.slane %v1108, 1
      %v1110 = vadd.f32 %v1108, %v1109
      %v1111 = vrot.slane %v1097, 4
      %v1112 = vadd.f32 %v1097, %v1111
      %v1113 = vrot.slane %v1112, 2
      %v1114 = vadd.f32 %v1112, %v1113
      %v1115 = vrot.slane %v1114, 1
      %v1116 = vadd.f32 %v1114, %v1115
      %v1117 = vrot.slane %v1098, 4
      %v1118 = vadd.f32 %v1098, %v1117
      %v1119 = vrot.slane %v1118, 2
      %v1120 = vadd.f32 %v1118, %v1119
      %v1121 = vrot.slane %v1120, 1
      %v1122 = vadd.f32 %v1120, %v1121
      %v1123 = vmul.f32 %v1104, 0.125
      %v1124 = vmul.f32 %v1110, 0.125
      %v1125 = vmul.f32 %v1116, 0.125
      %v1126 = vmul.f32 %v1122, 0.125
      %v1127 = vmul.f32 %v1091, %v1091
      %v1128 = vmul.f32 %v1092, %v1092
      %v1129 = vmul.f32 %v1093, %v1093
      %v1130 = vmul.f32 %v1094, %v1094
      %v1131 = vsub.f32 %v1123, %v1127
      %v1132 = vsub.f32 %v1124, %v1128
      %v1133 = vsub.f32 %v1125, %v1129
      %v1134 = vsub.f32 %v1126, %v1130
      %v1135 = vadd.f32 %v1131, 0.8
      %v1136 = vadd.f32 %v1132, 0.8
      %v1137 = vadd.f32 %v1133, 0.8
      %v1138 = vadd.f32 %v1134, 0.8
      %v1139 = vrsqrt.pop %v1135
      %v1140 = vmul.f32 %v1139, %v1135
      %v1141 = vmul.f32 %v1140, %v1139
      %v1142 = vmul.f32 0.5, %v1141
      %v1143 = vsub.f32 1.5, %v1142
      %v1144 = vmul.f32 %v1139, %v1143
      %vm1145 = vweird.f32 %v1135
      %vm1146 = vweird.f32 %v1139
      %vm1147 = vmor %vm1145, %vm1146
      %v1148 = vsel %vm1147, %v1139, %v1144
      %v1149 = vrsqrt.pop %v1136
      %v1150 = vmul.f32 %v1149, %v1136
      %v1151 = vmul.f32 %v1150, %v1149
      %v1152 = vmul.f32 0.5, %v1151
      %v1153 = vsub.f32 1.5, %v1152
      %v1154 = vmul.f32 %v1149, %v1153
      %vm1155 = vweird.f32 %v1136
      %vm1156 = vweird.f32 %v1149
      %vm1157 = vmor %vm1155, %vm1156
      %v1158 = vsel %vm1157, %v1149, %v1154
      %v1159 = vrsqrt.pop %v1137
      %v1160 = vmul.f32 %v1159, %v1137
      %v1161 = vmul.f32 %v1160, %v1159
      %v1162 = vmul.f32 0.5, %v1161
      %v1163 = vsub.f32 1.5, %v1162
      %v1164 = vmul.f32 %v1159, %v1163
      %vm1165 = vweird.f32 %v1137
      %vm1166 = vweird.f32 %v1159
      %vm1167 = vmor %vm1165, %vm1166
      %v1168 = vsel %vm1167, %v1159, %v1164
      %v1169 = vrsqrt.pop %v1138
      %v1170 = vmul.f32 %v1169, %v1138
      %v1171 = vmul.f32 %v1170, %v1169
      %v1172 = vmul.f32 0.5, %v1171
      %v1173 = vsub.f32 1.5, %v1172
      %v1174 = vmul.f32 %v1169, %v1173
      %vm1175 = vweird.f32 %v1138
      %vm1176 = vweird.f32 %v1169
      %vm1177 = vmor %vm1175, %vm1176
      %v1178 = vsel %vm1177, %v1169, %v1174
      %v1183 = vrot.slane %v1158, 7
      %v1184 = vrot.slane %v1168, 6
      %v1185 = vrot.slane %v1178, 5
      %v1186 = vsel %vm543, %v1148, %v1183
      %vm1187 = vcmask 1042434
      %v1188 = vsel %vm1187, %v1184, %v1185
      %v1189 = vsel %vm339, %v1186, %v1188
      %v1191 = vmul.f32 %v1065, %v1189
      %v1193 = vperm.slane %v1191, 0
      %v1194 = vperm.slane %v1191, 1
      %v1195 = vperm.slane %v1191, 2
      %v1196 = vperm.slane %v1191, 3
      %v1201 = vmul.f32 %v1091, %v1193
      %v1202 = vmul.f32 %v1092, %v1194
      %v1203 = vmul.f32 %v1093, %v1195
      %v1204 = vmul.f32 %v1094, %v1196
      %v1209 = vrot.slane %v1202, 7
      %v1210 = vrot.slane %v1203, 6
      %v1211 = vrot.slane %v1204, 5
      %v1212 = vsel %vm543, %v1201, %v1209
      %v1213 = vsel %vm1187, %v1210, %v1211
      %v1214 = vsel %vm339, %v1212, %v1213
      %v1216 = vsub.f32 %v1066, %v1214
      %v1217 = vmul.f32 %v984, %v1193
      %v1218 = vmul.f32 %v1010, %v1194
      %v1219 = vmul.f32 %v1036, %v1195
      %v1220 = vmul.f32 %v1062, %v1196
      %v1222 = vperm.slane %v1216, 0
      %v1223 = vperm.slane %v1216, 1
      %v1224 = vperm.slane %v1216, 2
      %v1225 = vperm.slane %v1216, 3
      %v1230 = vadd.f32 %v1217, %v1222
      %v1231 = vadd.f32 %v1218, %v1223
      %v1232 = vadd.f32 %v1219, %v1224
      %v1233 = vadd.f32 %v1220, %v1225
      %vm1234 = vcmp.gt.f32.partialorder %v1230, 0.0
      %vm1235 = vcmp.gt.f32.partialorder %v1231, 0.0
      %vm1236 = vcmp.gt.f32.partialorder %v1232, 0.0
      %vm1237 = vcmp.gt.f32.partialorder %v1233, 0.0
      %v1238 = vmul.f32 %v1230, 0.2
      %v1239 = vmul.f32 %v1231, 0.2
      %v1240 = vmul.f32 %v1232, 0.2
      %v1241 = vmul.f32 %v1233, 0.2
      %v1242 = vsel %vm1234, %v1230, %v1238
      %v1243 = vsel %vm1235, %v1231, %v1239
      %v1244 = vsel %vm1236, %v1232, %v1240
      %v1245 = vsel %vm1237, %v1233, %v1241
      %v1246 = vpack.c.bf16 %v1242, %v1242
      %v1247 = vpack.c.bf16 %v1243, %v1243
      %v1248 = vpack.c.bf16 %v1244, %v1244
      %v1249 = vpack.c.bf16 %v1245, %v1245
      %v1250 = vld [vmem:[%s5] sm:$0xff]
      %v1251 = vld [vmem:[%s5 + $0x8] sm:$0xff]
      %v1252 = vld [vmem:[%s5 + $0x10] sm:$0xff]
      %v1253 = vld [vmem:[%s5 + $0x18] sm:$0xff]
      %v1254 = vld [vmem:[%s5 + $0x20] sm:$0xff]
      %v1255 = vld [vmem:[%s5 + $0x28] sm:$0xff]
      %v1256 = vld [vmem:[%s5 + $0x30] sm:$0xff]
      %v1257 = vld [vmem:[%s5 + $0x38] sm:$0xff]
      %v1258 = vld [vmem:[%s5 + $0x40] sm:$0xff]
      %v1259 = vld [vmem:[%s5 + $0x48] sm:$0xff]
      %v1260 = vld [vmem:[%s5 + $0x50] sm:$0xff]
      %v1261 = vld [vmem:[%s5 + $0x58] sm:$0xff]
      %v1262 = vld [vmem:[%s5 + $0x60] sm:$0xff]
      %v1263 = vld [vmem:[%s5 + $0x68] sm:$0xff]
      %v1264 = vld [vmem:[%s5 + $0x70] sm:$0xff]
      %v1265 = vld [vmem:[%s5 + $0x78] sm:$0xff]
      %v1266 = vld [vmem:[%s5 + $0x80] sm:$0xff]
      %v1267 = vld [vmem:[%s5 + $0x88] sm:$0xff]
      %v1268 = vld [vmem:[%s5 + $0x90] sm:$0xff]
      %v1269 = vld [vmem:[%s5 + $0x98] sm:$0xff]
      %v1270 = vld [vmem:[%s5 + $0xa0] sm:$0xff]
      %v1271 = vld [vmem:[%s5 + $0xa8] sm:$0xff]
      %v1272 = vld [vmem:[%s5 + $0xb0] sm:$0xff]
      %v1273 = vld [vmem:[%s5 + $0xb8] sm:$0xff]
      %v1274 = vld [vmem:[%s5 + $0xc0] sm:$0xff]
      %v1275 = vld [vmem:[%s5 + $0xc8] sm:$0xff]
      %v1276 = vld [vmem:[%s5 + $0xd0] sm:$0xff]
      %v1277 = vld [vmem:[%s5 + $0xd8] sm:$0xff]
      %v1278 = vld [vmem:[%s5 + $0xe0] sm:$0xff]
      %v1279 = vld [vmem:[%s5 + $0xe8] sm:$0xff]
      %v1280 = vld [vmem:[%s5 + $0xf0] sm:$0xff]
      %v1281 = vld [vmem:[%s5 + $0xf8] sm:$0xff]
      %v1282 = vld [vmem:[%s5 + $0x100] sm:$0xff]
      %v1283 = vld [vmem:[%s5 + $0x108] sm:$0xff]
      %v1284 = vld [vmem:[%s5 + $0x110] sm:$0xff]
      %v1285 = vld [vmem:[%s5 + $0x118] sm:$0xff]
      %v1286 = vld [vmem:[%s5 + $0x120] sm:$0xff]
      %v1287 = vld [vmem:[%s5 + $0x128] sm:$0xff]
      %v1288 = vld [vmem:[%s5 + $0x130] sm:$0xff]
      %v1289 = vld [vmem:[%s5 + $0x138] sm:$0xff]
      %v1290 = vld [vmem:[%s5 + $0x140] sm:$0xff]
      %v1291 = vld [vmem:[%s5 + $0x148] sm:$0xff]
      %v1292 = vld [vmem:[%s5 + $0x150] sm:$0xff]
      %v1293 = vld [vmem:[%s5 + $0x158] sm:$0xff]
      %v1294 = vld [vmem:[%s5 + $0x160] sm:$0xff]
      %v1295 = vld [vmem:[%s5 + $0x168] sm:$0xff]
      %v1296 = vld [vmem:[%s5 + $0x170] sm:$0xff]
      %v1297 = vld [vmem:[%s5 + $0x178] sm:$0xff]
      %v1298 = vld [vmem:[%s5 + $0x180] sm:$0xff]
      %v1299 = vld [vmem:[%s5 + $0x188] sm:$0xff]
      %v1300 = vld [vmem:[%s5 + $0x190] sm:$0xff]
      %v1301 = vld [vmem:[%s5 + $0x198] sm:$0xff]
      %v1302 = vld [vmem:[%s5 + $0x1a0] sm:$0xff]
      %v1303 = vld [vmem:[%s5 + $0x1a8] sm:$0xff]
      %v1304 = vld [vmem:[%s5 + $0x1b0] sm:$0xff]
      %v1305 = vld [vmem:[%s5 + $0x1b8] sm:$0xff]
      %v1306 = vld [vmem:[%s5 + $0x1c0] sm:$0xff]
      %v1307 = vld [vmem:[%s5 + $0x1c8] sm:$0xff]
      %v1308 = vld [vmem:[%s5 + $0x1d0] sm:$0xff]
      %v1309 = vld [vmem:[%s5 + $0x1d8] sm:$0xff]
      %v1310 = vld [vmem:[%s5 + $0x1e0] sm:$0xff]
      %v1311 = vld [vmem:[%s5 + $0x1e8] sm:$0xff]
      %v1312 = vld [vmem:[%s5 + $0x1f0] sm:$0xff]
      %v1313 = vld [vmem:[%s5 + $0x1f8] sm:$0xff]
      %v1314 = vld [vmem:[%s5 + $0x200] sm:$0xff]
      %v1315 = vld [vmem:[%s5 + $0x208] sm:$0xff]
      %v1316 = vld [vmem:[%s5 + $0x210] sm:$0xff]
      %v1317 = vld [vmem:[%s5 + $0x218] sm:$0xff]
      %v1318 = vld [vmem:[%s5 + $0x220] sm:$0xff]
      %v1319 = vld [vmem:[%s5 + $0x228] sm:$0xff]
      %v1320 = vld [vmem:[%s5 + $0x230] sm:$0xff]
      %v1321 = vld [vmem:[%s5 + $0x238] sm:$0xff]
      %v1322 = vld [vmem:[%s5 + $0x240] sm:$0xff]
      %v1323 = vld [vmem:[%s5 + $0x248] sm:$0xff]
      %v1324 = vld [vmem:[%s5 + $0x250] sm:$0xff]
      %v1325 = vld [vmem:[%s5 + $0x258] sm:$0xff]
      %v1326 = vld [vmem:[%s5 + $0x260] sm:$0xff]
      %v1327 = vld [vmem:[%s5 + $0x268] sm:$0xff]
      %v1328 = vld [vmem:[%s5 + $0x270] sm:$0xff]
      %v1329 = vld [vmem:[%s5 + $0x278] sm:$0xff]
      %v1330 = vld [vmem:[%s5 + $0x280] sm:$0xff]
      %v1331 = vld [vmem:[%s5 + $0x288] sm:$0xff]
      %v1332 = vld [vmem:[%s5 + $0x290] sm:$0xff]
      %v1333 = vld [vmem:[%s5 + $0x298] sm:$0xff]
      %v1334 = vld [vmem:[%s5 + $0x2a0] sm:$0xff]
      %v1335 = vld [vmem:[%s5 + $0x2a8] sm:$0xff]
      %v1336 = vld [vmem:[%s5 + $0x2b0] sm:$0xff]
      %v1337 = vld [vmem:[%s5 + $0x2b8] sm:$0xff]
      %v1338 = vld [vmem:[%s5 + $0x2c0] sm:$0xff]
      %v1339 = vld [vmem:[%s5 + $0x2c8] sm:$0xff]
      %v1340 = vld [vmem:[%s5 + $0x2d0] sm:$0xff]
      %v1341 = vld [vmem:[%s5 + $0x2d8] sm:$0xff]
      %v1342 = vld [vmem:[%s5 + $0x2e0] sm:$0xff]
      %v1343 = vld [vmem:[%s5 + $0x2e8] sm:$0xff]
      %v1344 = vld [vmem:[%s5 + $0x2f0] sm:$0xff]
      %v1345 = vld [vmem:[%s5 + $0x2f8] sm:$0xff]
      %v1346 = vld [vmem:[%s5 + $0x300] sm:$0xff]
      %v1347 = vld [vmem:[%s5 + $0x308] sm:$0xff]
      %v1348 = vld [vmem:[%s5 + $0x310] sm:$0xff]
      %v1349 = vld [vmem:[%s5 + $0x318] sm:$0xff]
      %v1350 = vld [vmem:[%s5 + $0x320] sm:$0xff]
      %v1351 = vld [vmem:[%s5 + $0x328] sm:$0xff]
      %v1352 = vld [vmem:[%s5 + $0x330] sm:$0xff]
      %v1353 = vld [vmem:[%s5 + $0x338] sm:$0xff]
      %v1354 = vld [vmem:[%s5 + $0x340] sm:$0xff]
      %v1355 = vld [vmem:[%s5 + $0x348] sm:$0xff]
      %v1356 = vld [vmem:[%s5 + $0x350] sm:$0xff]
      %v1357 = vld [vmem:[%s5 + $0x358] sm:$0xff]
      %v1358 = vld [vmem:[%s5 + $0x360] sm:$0xff]
      %v1359 = vld [vmem:[%s5 + $0x368] sm:$0xff]
      %v1360 = vld [vmem:[%s5 + $0x370] sm:$0xff]
      %v1361 = vld [vmem:[%s5 + $0x378] sm:$0xff]
      %v1362 = vld [vmem:[%s5 + $0x380] sm:$0xff]
      %v1363 = vld [vmem:[%s5 + $0x388] sm:$0xff]
      %v1364 = vld [vmem:[%s5 + $0x390] sm:$0xff]
      %v1365 = vld [vmem:[%s5 + $0x398] sm:$0xff]
      %v1366 = vld [vmem:[%s5 + $0x3a0] sm:$0xff]
      %v1367 = vld [vmem:[%s5 + $0x3a8] sm:$0xff]
      %v1368 = vld [vmem:[%s5 + $0x3b0] sm:$0xff]
      %v1369 = vld [vmem:[%s5 + $0x3b8] sm:$0xff]
      %v1370 = vld [vmem:[%s5 + $0x3c0] sm:$0xff]
      %v1371 = vld [vmem:[%s5 + $0x3c8] sm:$0xff]
      %v1372 = vld [vmem:[%s5 + $0x3d0] sm:$0xff]
      %v1373 = vld [vmem:[%s5 + $0x3d8] sm:$0xff]
      %v1374 = vld [vmem:[%s5 + $0x3e0] sm:$0xff]
      %v1375 = vld [vmem:[%s5 + $0x3e8] sm:$0xff]
      %v1376 = vld [vmem:[%s5 + $0x3f0] sm:$0xff]
      %v1377 = vld [vmem:[%s5 + $0x3f8] sm:$0xff]
      %v1378 = vld [vmem:[%s5 + $0x400] sm:$0xff]
      %v1379 = vld [vmem:[%s5 + $0x408] sm:$0xff]
      %v1380 = vld [vmem:[%s5 + $0x410] sm:$0xff]
      %v1381 = vld [vmem:[%s5 + $0x418] sm:$0xff]
      %v1382 = vld [vmem:[%s5 + $0x420] sm:$0xff]
      %v1383 = vld [vmem:[%s5 + $0x428] sm:$0xff]
      %v1384 = vld [vmem:[%s5 + $0x430] sm:$0xff]
      %v1385 = vld [vmem:[%s5 + $0x438] sm:$0xff]
      %v1386 = vld [vmem:[%s5 + $0x440] sm:$0xff]
      %v1387 = vld [vmem:[%s5 + $0x448] sm:$0xff]
      %v1388 = vld [vmem:[%s5 + $0x450] sm:$0xff]
      %v1389 = vld [vmem:[%s5 + $0x458] sm:$0xff]
      %v1390 = vld [vmem:[%s5 + $0x460] sm:$0xff]
      %v1391 = vld [vmem:[%s5 + $0x468] sm:$0xff]
      %v1392 = vld [vmem:[%s5 + $0x470] sm:$0xff]
      %v1393 = vld [vmem:[%s5 + $0x478] sm:$0xff]
      %v1394 = vld [vmem:[%s5 + $0x480] sm:$0xff]
      %v1395 = vld [vmem:[%s5 + $0x488] sm:$0xff]
      %v1396 = vld [vmem:[%s5 + $0x490] sm:$0xff]
      %v1397 = vld [vmem:[%s5 + $0x498] sm:$0xff]
      %v1398 = vld [vmem:[%s5 + $0x4a0] sm:$0xff]
      %v1399 = vld [vmem:[%s5 + $0x4a8] sm:$0xff]
      %v1400 = vld [vmem:[%s5 + $0x4b0] sm:$0xff]
      %v1401 = vld [vmem:[%s5 + $0x4b8] sm:$0xff]
      %v1402 = vld [vmem:[%s5 + $0x4c0] sm:$0xff]
      %v1403 = vld [vmem:[%s5 + $0x4c8] sm:$0xff]
      %v1404 = vld [vmem:[%s5 + $0x4d0] sm:$0xff]
      %v1405 = vld [vmem:[%s5 + $0x4d8] sm:$0xff]
      %v1406 = vld [vmem:[%s5 + $0x4e0] sm:$0xff]
      %v1407 = vld [vmem:[%s5 + $0x4e8] sm:$0xff]
      %v1408 = vld [vmem:[%s5 + $0x4f0] sm:$0xff]
      %v1409 = vld [vmem:[%s5 + $0x4f8] sm:$0xff]
      %v1410 = vld [vmem:[%s5 + $0x500] sm:$0xff]
      %v1411 = vld [vmem:[%s5 + $0x508] sm:$0xff]
      %v1412 = vld [vmem:[%s5 + $0x510] sm:$0xff]
      %v1413 = vld [vmem:[%s5 + $0x518] sm:$0xff]
      %v1414 = vld [vmem:[%s5 + $0x520] sm:$0xff]
      %v1415 = vld [vmem:[%s5 + $0x528] sm:$0xff]
      %v1416 = vld [vmem:[%s5 + $0x530] sm:$0xff]
      %v1417 = vld [vmem:[%s5 + $0x538] sm:$0xff]
      %v1418 = vld [vmem:[%s5 + $0x540] sm:$0xff]
      %v1419 = vld [vmem:[%s5 + $0x548] sm:$0xff]
      %v1420 = vld [vmem:[%s5 + $0x550] sm:$0xff]
      %v1421 = vld [vmem:[%s5 + $0x558] sm:$0xff]
      %v1422 = vld [vmem:[%s5 + $0x560] sm:$0xff]
      %v1423 = vld [vmem:[%s5 + $0x568] sm:$0xff]
      %v1424 = vld [vmem:[%s5 + $0x570] sm:$0xff]
      %v1425 = vld [vmem:[%s5 + $0x578] sm:$0xff]
      %v1426 = vld [vmem:[%s5 + $0x580] sm:$0xff]
      %v1427 = vld [vmem:[%s5 + $0x588] sm:$0xff]
      %v1428 = vld [vmem:[%s5 + $0x590] sm:$0xff]
      %v1429 = vld [vmem:[%s5 + $0x598] sm:$0xff]
      %v1430 = vld [vmem:[%s5 + $0x5a0] sm:$0xff]
      %v1431 = vld [vmem:[%s5 + $0x5a8] sm:$0xff]
      %v1432 = vld [vmem:[%s5 + $0x5b0] sm:$0xff]
      %v1433 = vld [vmem:[%s5 + $0x5b8] sm:$0xff]
      %v1434 = vld [vmem:[%s5 + $0x5c0] sm:$0xff]
      %v1435 = vld [vmem:[%s5 + $0x5c8] sm:$0xff]
      %v1436 = vld [vmem:[%s5 + $0x5d0] sm:$0xff]
      %v1437 = vld [vmem:[%s5 + $0x5d8] sm:$0xff]
      %v1438 = vld [vmem:[%s5 + $0x5e0] sm:$0xff]
      %v1439 = vld [vmem:[%s5 + $0x5e8] sm:$0xff]
      %v1440 = vld [vmem:[%s5 + $0x5f0] sm:$0xff]
      %v1441 = vld [vmem:[%s5 + $0x5f8] sm:$0xff]
      %v1442 = vld [vmem:[%s5 + $0x600] sm:$0xff]
      %v1443 = vld [vmem:[%s5 + $0x608] sm:$0xff]
      %v1444 = vld [vmem:[%s5 + $0x610] sm:$0xff]
      %v1445 = vld [vmem:[%s5 + $0x618] sm:$0xff]
      %v1446 = vld [vmem:[%s5 + $0x620] sm:$0xff]
      %v1447 = vld [vmem:[%s5 + $0x628] sm:$0xff]
      %v1448 = vld [vmem:[%s5 + $0x630] sm:$0xff]
      %v1449 = vld [vmem:[%s5 + $0x638] sm:$0xff]
      %v1450 = vld [vmem:[%s5 + $0x640] sm:$0xff]
      %v1451 = vld [vmem:[%s5 + $0x648] sm:$0xff]
      %v1452 = vld [vmem:[%s5 + $0x650] sm:$0xff]
      %v1453 = vld [vmem:[%s5 + $0x658] sm:$0xff]
      %v1454 = vld [vmem:[%s5 + $0x660] sm:$0xff]
      %v1455 = vld [vmem:[%s5 + $0x668] sm:$0xff]
      %v1456 = vld [vmem:[%s5 + $0x670] sm:$0xff]
      %v1457 = vld [vmem:[%s5 + $0x678] sm:$0xff]
      %v1458 = vld [vmem:[%s5 + $0x680] sm:$0xff]
      %v1459 = vld [vmem:[%s5 + $0x688] sm:$0xff]
      %v1460 = vld [vmem:[%s5 + $0x690] sm:$0xff]
      %v1461 = vld [vmem:[%s5 + $0x698] sm:$0xff]
      %v1462 = vld [vmem:[%s5 + $0x6a0] sm:$0xff]
      %v1463 = vld [vmem:[%s5 + $0x6a8] sm:$0xff]
      %v1464 = vld [vmem:[%s5 + $0x6b0] sm:$0xff]
      %v1465 = vld [vmem:[%s5 + $0x6b8] sm:$0xff]
      %v1466 = vld [vmem:[%s5 + $0x6c0] sm:$0xff]
      %v1467 = vld [vmem:[%s5 + $0x6c8] sm:$0xff]
      %v1468 = vld [vmem:[%s5 + $0x6d0] sm:$0xff]
      %v1469 = vld [vmem:[%s5 + $0x6d8] sm:$0xff]
      %v1470 = vld [vmem:[%s5 + $0x6e0] sm:$0xff]
      %v1471 = vld [vmem:[%s5 + $0x6e8] sm:$0xff]
      %v1472 = vld [vmem:[%s5 + $0x6f0] sm:$0xff]
      %v1473 = vld [vmem:[%s5 + $0x6f8] sm:$0xff]
      %v1474 = vld [vmem:[%s5 + $0x700] sm:$0xff]
      %v1475 = vld [vmem:[%s5 + $0x708] sm:$0xff]
      %v1476 = vld [vmem:[%s5 + $0x710] sm:$0xff]
      %v1477 = vld [vmem:[%s5 + $0x718] sm:$0xff]
      %v1478 = vld [vmem:[%s5 + $0x720] sm:$0xff]
      %v1479 = vld [vmem:[%s5 + $0x728] sm:$0xff]
      %v1480 = vld [vmem:[%s5 + $0x730] sm:$0xff]
      %v1481 = vld [vmem:[%s5 + $0x738] sm:$0xff]
      %v1482 = vld [vmem:[%s5 + $0x740] sm:$0xff]
      %v1483 = vld [vmem:[%s5 + $0x748] sm:$0xff]
      %v1484 = vld [vmem:[%s5 + $0x750] sm:$0xff]
      %v1485 = vld [vmem:[%s5 + $0x758] sm:$0xff]
      %v1486 = vld [vmem:[%s5 + $0x760] sm:$0xff]
      %v1487 = vld [vmem:[%s5 + $0x768] sm:$0xff]
      %v1488 = vld [vmem:[%s5 + $0x770] sm:$0xff]
      %v1489 = vld [vmem:[%s5 + $0x778] sm:$0xff]
      %v1490 = vld [vmem:[%s5 + $0x780] sm:$0xff]
      %v1491 = vld [vmem:[%s5 + $0x788] sm:$0xff]
      %v1492 = vld [vmem:[%s5 + $0x790] sm:$0xff]
      %v1493 = vld [vmem:[%s5 + $0x798] sm:$0xff]
      %v1494 = vld [vmem:[%s5 + $0x7a0] sm:$0xff]
      %v1495 = vld [vmem:[%s5 + $0x7a8] sm:$0xff]
      %v1496 = vld [vmem:[%s5 + $0x7b0] sm:$0xff]
      %v1497 = vld [vmem:[%s5 + $0x7b8] sm:$0xff]
      %v1498 = vld [vmem:[%s5 + $0x7c0] sm:$0xff]
      %v1499 = vld [vmem:[%s5 + $0x7c8] sm:$0xff]
      %v1500 = vld [vmem:[%s5 + $0x7d0] sm:$0xff]
      %v1501 = vld [vmem:[%s5 + $0x7d8] sm:$0xff]
      %v1502 = vld [vmem:[%s5 + $0x7e0] sm:$0xff]
      %v1503 = vld [vmem:[%s5 + $0x7e8] sm:$0xff]
      %v1504 = vld [vmem:[%s5 + $0x7f0] sm:$0xff]
      %v1505 = vld [vmem:[%s5 + $0x7f8] sm:$0xff]
      %v1762 = vunpack.c.l.b16 %v1250
      %v1763 = vunpack.c.h.b16 %v1250
      %v1764 = vunpack.c.l.b16 %v1251
      %v1765 = vunpack.c.h.b16 %v1251
      %v1766 = vunpack.c.l.b16 %v1252
      %v1767 = vunpack.c.h.b16 %v1252
      %v1768 = vunpack.c.l.b16 %v1253
      %v1769 = vunpack.c.h.b16 %v1253
      %v1770 = vunpack.c.l.b16 %v1254
      %v1771 = vunpack.c.h.b16 %v1254
      %v1772 = vunpack.c.l.b16 %v1255
      %v1773 = vunpack.c.h.b16 %v1255
      %v1774 = vunpack.c.l.b16 %v1256
      %v1775 = vunpack.c.h.b16 %v1256
      %v1776 = vunpack.c.l.b16 %v1257
      %v1777 = vunpack.c.h.b16 %v1257
      %v1778 = vunpack.c.l.b16 %v1258
      %v1779 = vunpack.c.h.b16 %v1258
      %v1780 = vunpack.c.l.b16 %v1259
      %v1781 = vunpack.c.h.b16 %v1259
      %v1782 = vunpack.c.l.b16 %v1260
      %v1783 = vunpack.c.h.b16 %v1260
      %v1784 = vunpack.c.l.b16 %v1261
      %v1785 = vunpack.c.h.b16 %v1261
      %v1786 = vunpack.c.l.b16 %v1262
      %v1787 = vunpack.c.h.b16 %v1262
      %v1788 = vunpack.c.l.b16 %v1263
      %v1789 = vunpack.c.h.b16 %v1263
      %v1790 = vunpack.c.l.b16 %v1264
      %v1791 = vunpack.c.h.b16 %v1264
      %v1792 = vunpack.c.l.b16 %v1265
      %v1793 = vunpack.c.h.b16 %v1265
      %v1794 = vunpack.c.l.b16 %v1266
      %v1795 = vunpack.c.h.b16 %v1266
      %v1796 = vunpack.c.l.b16 %v1267
      %v1797 = vunpack.c.h.b16 %v1267
      %v1798 = vunpack.c.l.b16 %v1268
      %v1799 = vunpack.c.h.b16 %v1268
      %v1800 = vunpack.c.l.b16 %v1269
      %v1801 = vunpack.c.h.b16 %v1269
      %v1802 = vunpack.c.l.b16 %v1270
      %v1803 = vunpack.c.h.b16 %v1270
      %v1804 = vunpack.c.l.b16 %v1271
      %v1805 = vunpack.c.h.b16 %v1271
      %v1806 = vunpack.c.l.b16 %v1272
      %v1807 = vunpack.c.h.b16 %v1272
      %v1808 = vunpack.c.l.b16 %v1273
      %v1809 = vunpack.c.h.b16 %v1273
      %v1810 = vunpack.c.l.b16 %v1274
      %v1811 = vunpack.c.h.b16 %v1274
      %v1812 = vunpack.c.l.b16 %v1275
      %v1813 = vunpack.c.h.b16 %v1275
      %v1814 = vunpack.c.l.b16 %v1276
      %v1815 = vunpack.c.h.b16 %v1276
      %v1816 = vunpack.c.l.b16 %v1277
      %v1817 = vunpack.c.h.b16 %v1277
      %v1818 = vunpack.c.l.b16 %v1278
      %v1819 = vunpack.c.h.b16 %v1278
      %v1820 = vunpack.c.l.b16 %v1279
      %v1821 = vunpack.c.h.b16 %v1279
      %v1822 = vunpack.c.l.b16 %v1280
      %v1823 = vunpack.c.h.b16 %v1280
      %v1824 = vunpack.c.l.b16 %v1281
      %v1825 = vunpack.c.h.b16 %v1281
      %v1826 = vunpack.c.l.b16 %v1282
      %v1827 = vunpack.c.h.b16 %v1282
      %v1828 = vunpack.c.l.b16 %v1283
      %v1829 = vunpack.c.h.b16 %v1283
      %v1830 = vunpack.c.l.b16 %v1284
      %v1831 = vunpack.c.h.b16 %v1284
      %v1832 = vunpack.c.l.b16 %v1285
      %v1833 = vunpack.c.h.b16 %v1285
      %v1834 = vunpack.c.l.b16 %v1286
      %v1835 = vunpack.c.h.b16 %v1286
      %v1836 = vunpack.c.l.b16 %v1287
      %v1837 = vunpack.c.h.b16 %v1287
      %v1838 = vunpack.c.l.b16 %v1288
      %v1839 = vunpack.c.h.b16 %v1288
      %v1840 = vunpack.c.l.b16 %v1289
      %v1841 = vunpack.c.h.b16 %v1289
      %v1842 = vunpack.c.l.b16 %v1290
      %v1843 = vunpack.c.h.b16 %v1290
      %v1844 = vunpack.c.l.b16 %v1291
      %v1845 = vunpack.c.h.b16 %v1291
      %v1846 = vunpack.c.l.b16 %v1292
      %v1847 = vunpack.c.h.b16 %v1292
      %v1848 = vunpack.c.l.b16 %v1293
      %v1849 = vunpack.c.h.b16 %v1293
      %v1850 = vunpack.c.l.b16 %v1294
      %v1851 = vunpack.c.h.b16 %v1294
      %v1852 = vunpack.c.l.b16 %v1295
      %v1853 = vunpack.c.h.b16 %v1295
      %v1854 = vunpack.c.l.b16 %v1296
      %v1855 = vunpack.c.h.b16 %v1296
      %v1856 = vunpack.c.l.b16 %v1297
      %v1857 = vunpack.c.h.b16 %v1297
      %v1858 = vunpack.c.l.b16 %v1298
      %v1859 = vunpack.c.h.b16 %v1298
      %v1860 = vunpack.c.l.b16 %v1299
      %v1861 = vunpack.c.h.b16 %v1299
      %v1862 = vunpack.c.l.b16 %v1300
      %v1863 = vunpack.c.h.b16 %v1300
      %v1864 = vunpack.c.l.b16 %v1301
      %v1865 = vunpack.c.h.b16 %v1301
      %v1866 = vunpack.c.l.b16 %v1302
      %v1867 = vunpack.c.h.b16 %v1302
      %v1868 = vunpack.c.l.b16 %v1303
      %v1869 = vunpack.c.h.b16 %v1303
      %v1870 = vunpack.c.l.b16 %v1304
      %v1871 = vunpack.c.h.b16 %v1304
      %v1872 = vunpack.c.l.b16 %v1305
      %v1873 = vunpack.c.h.b16 %v1305
      %v1874 = vunpack.c.l.b16 %v1306
      %v1875 = vunpack.c.h.b16 %v1306
      %v1876 = vunpack.c.l.b16 %v1307
      %v1877 = vunpack.c.h.b16 %v1307
      %v1878 = vunpack.c.l.b16 %v1308
      %v1879 = vunpack.c.h.b16 %v1308
      %v1880 = vunpack.c.l.b16 %v1309
      %v1881 = vunpack.c.h.b16 %v1309
      %v1882 = vunpack.c.l.b16 %v1310
      %v1883 = vunpack.c.h.b16 %v1310
      %v1884 = vunpack.c.l.b16 %v1311
      %v1885 = vunpack.c.h.b16 %v1311
      %v1886 = vunpack.c.l.b16 %v1312
      %v1887 = vunpack.c.h.b16 %v1312
      %v1888 = vunpack.c.l.b16 %v1313
      %v1889 = vunpack.c.h.b16 %v1313
      %v1890 = vunpack.c.l.b16 %v1314
      %v1891 = vunpack.c.h.b16 %v1314
      %v1892 = vunpack.c.l.b16 %v1315
      %v1893 = vunpack.c.h.b16 %v1315
      %v1894 = vunpack.c.l.b16 %v1316
      %v1895 = vunpack.c.h.b16 %v1316
      %v1896 = vunpack.c.l.b16 %v1317
      %v1897 = vunpack.c.h.b16 %v1317
      %v1898 = vunpack.c.l.b16 %v1318
      %v1899 = vunpack.c.h.b16 %v1318
      %v1900 = vunpack.c.l.b16 %v1319
      %v1901 = vunpack.c.h.b16 %v1319
      %v1902 = vunpack.c.l.b16 %v1320
      %v1903 = vunpack.c.h.b16 %v1320
      %v1904 = vunpack.c.l.b16 %v1321
      %v1905 = vunpack.c.h.b16 %v1321
      %v1906 = vunpack.c.l.b16 %v1322
      %v1907 = vunpack.c.h.b16 %v1322
      %v1908 = vunpack.c.l.b16 %v1323
      %v1909 = vunpack.c.h.b16 %v1323
      %v1910 = vunpack.c.l.b16 %v1324
      %v1911 = vunpack.c.h.b16 %v1324
      %v1912 = vunpack.c.l.b16 %v1325
      %v1913 = vunpack.c.h.b16 %v1325
      %v1914 = vunpack.c.l.b16 %v1326
      %v1915 = vunpack.c.h.b16 %v1326
      %v1916 = vunpack.c.l.b16 %v1327
      %v1917 = vunpack.c.h.b16 %v1327
      %v1918 = vunpack.c.l.b16 %v1328
      %v1919 = vunpack.c.h.b16 %v1328
      %v1920 = vunpack.c.l.b16 %v1329
      %v1921 = vunpack.c.h.b16 %v1329
      %v1922 = vunpack.c.l.b16 %v1330
      %v1923 = vunpack.c.h.b16 %v1330
      %v1924 = vunpack.c.l.b16 %v1331
      %v1925 = vunpack.c.h.b16 %v1331
      %v1926 = vunpack.c.l.b16 %v1332
      %v1927 = vunpack.c.h.b16 %v1332
      %v1928 = vunpack.c.l.b16 %v1333
      %v1929 = vunpack.c.h.b16 %v1333
      %v1930 = vunpack.c.l.b16 %v1334
      %v1931 = vunpack.c.h.b16 %v1334
      %v1932 = vunpack.c.l.b16 %v1335
      %v1933 = vunpack.c.h.b16 %v1335
      %v1934 = vunpack.c.l.b16 %v1336
      %v1935 = vunpack.c.h.b16 %v1336
      %v1936 = vunpack.c.l.b16 %v1337
      %v1937 = vunpack.c.h.b16 %v1337
      %v1938 = vunpack.c.l.b16 %v1338
      %v1939 = vunpack.c.h.b16 %v1338
      %v1940 = vunpack.c.l.b16 %v1339
      %v1941 = vunpack.c.h.b16 %v1339
      %v1942 = vunpack.c.l.b16 %v1340
      %v1943 = vunpack.c.h.b16 %v1340
      %v1944 = vunpack.c.l.b16 %v1341
      %v1945 = vunpack.c.h.b16 %v1341
      %v1946 = vunpack.c.l.b16 %v1342
      %v1947 = vunpack.c.h.b16 %v1342
      %v1948 = vunpack.c.l.b16 %v1343
      %v1949 = vunpack.c.h.b16 %v1343
      %v1950 = vunpack.c.l.b16 %v1344
      %v1951 = vunpack.c.h.b16 %v1344
      %v1952 = vunpack.c.l.b16 %v1345
      %v1953 = vunpack.c.h.b16 %v1345
      %v1954 = vunpack.c.l.b16 %v1346
      %v1955 = vunpack.c.h.b16 %v1346
      %v1956 = vunpack.c.l.b16 %v1347
      %v1957 = vunpack.c.h.b16 %v1347
      %v1958 = vunpack.c.l.b16 %v1348
      %v1959 = vunpack.c.h.b16 %v1348
      %v1960 = vunpack.c.l.b16 %v1349
      %v1961 = vunpack.c.h.b16 %v1349
      %v1962 = vunpack.c.l.b16 %v1350
      %v1963 = vunpack.c.h.b16 %v1350
      %v1964 = vunpack.c.l.b16 %v1351
      %v1965 = vunpack.c.h.b16 %v1351
      %v1966 = vunpack.c.l.b16 %v1352
      %v1967 = vunpack.c.h.b16 %v1352
      %v1968 = vunpack.c.l.b16 %v1353
      %v1969 = vunpack.c.h.b16 %v1353
      %v1970 = vunpack.c.l.b16 %v1354
      %v1971 = vunpack.c.h.b16 %v1354
      %v1972 = vunpack.c.l.b16 %v1355
      %v1973 = vunpack.c.h.b16 %v1355
      %v1974 = vunpack.c.l.b16 %v1356
      %v1975 = vunpack.c.h.b16 %v1356
      %v1976 = vunpack.c.l.b16 %v1357
      %v1977 = vunpack.c.h.b16 %v1357
      %v1978 = vunpack.c.l.b16 %v1358
      %v1979 = vunpack.c.h.b16 %v1358
      %v1980 = vunpack.c.l.b16 %v1359
      %v1981 = vunpack.c.h.b16 %v1359
      %v1982 = vunpack.c.l.b16 %v1360
      %v1983 = vunpack.c.h.b16 %v1360
      %v1984 = vunpack.c.l.b16 %v1361
      %v1985 = vunpack.c.h.b16 %v1361
      %v1986 = vunpack.c.l.b16 %v1362
      %v1987 = vunpack.c.h.b16 %v1362
      %v1988 = vunpack.c.l.b16 %v1363
      %v1989 = vunpack.c.h.b16 %v1363
      %v1990 = vunpack.c.l.b16 %v1364
      %v1991 = vunpack.c.h.b16 %v1364
      %v1992 = vunpack.c.l.b16 %v1365
      %v1993 = vunpack.c.h.b16 %v1365
      %v1994 = vunpack.c.l.b16 %v1366
      %v1995 = vunpack.c.h.b16 %v1366
      %v1996 = vunpack.c.l.b16 %v1367
      %v1997 = vunpack.c.h.b16 %v1367
      %v1998 = vunpack.c.l.b16 %v1368
      %v1999 = vunpack.c.h.b16 %v1368
      %v2000 = vunpack.c.l.b16 %v1369
      %v2001 = vunpack.c.h.b16 %v1369
      %v2002 = vunpack.c.l.b16 %v1370
      %v2003 = vunpack.c.h.b16 %v1370
      %v2004 = vunpack.c.l.b16 %v1371
      %v2005 = vunpack.c.h.b16 %v1371
      %v2006 = vunpack.c.l.b16 %v1372
      %v2007 = vunpack.c.h.b16 %v1372
      %v2008 = vunpack.c.l.b16 %v1373
      %v2009 = vunpack.c.h.b16 %v1373
      %v2010 = vunpack.c.l.b16 %v1374
      %v2011 = vunpack.c.h.b16 %v1374
      %v2012 = vunpack.c.l.b16 %v1375
      %v2013 = vunpack.c.h.b16 %v1375
      %v2014 = vunpack.c.l.b16 %v1376
      %v2015 = vunpack.c.h.b16 %v1376
      %v2016 = vunpack.c.l.b16 %v1377
      %v2017 = vunpack.c.h.b16 %v1377
      %v2018 = vunpack.c.l.b16 %v1378
      %v2019 = vunpack.c.h.b16 %v1378
      %v2020 = vunpack.c.l.b16 %v1379
      %v2021 = vunpack.c.h.b16 %v1379
      %v2022 = vunpack.c.l.b16 %v1380
      %v2023 = vunpack.c.h.b16 %v1380
      %v2024 = vunpack.c.l.b16 %v1381
      %v2025 = vunpack.c.h.b16 %v1381
      %v2026 = vunpack.c.l.b16 %v1382
      %v2027 = vunpack.c.h.b16 %v1382
      %v2028 = vunpack.c.l.b16 %v1383
      %v2029 = vunpack.c.h.b16 %v1383
      %v2030 = vunpack.c.l.b16 %v1384
      %v2031 = vunpack.c.h.b16 %v1384
      %v2032 = vunpack.c.l.b16 %v1385
      %v2033 = vunpack.c.h.b16 %v1385
      %v2034 = vunpack.c.l.b16 %v1386
      %v2035 = vunpack.c.h.b16 %v1386
      %v2036 = vunpack.c.l.b16 %v1387
      %v2037 = vunpack.c.h.b16 %v1387
      %v2038 = vunpack.c.l.b16 %v1388
      %v2039 = vunpack.c.h.b16 %v1388
      %v2040 = vunpack.c.l.b16 %v1389
      %v2041 = vunpack.c.h.b16 %v1389
      %v2042 = vunpack.c.l.b16 %v1390
      %v2043 = vunpack.c.h.b16 %v1390
      %v2044 = vunpack.c.l.b16 %v1391
      %v2045 = vunpack.c.h.b16 %v1391
      %v2046 = vunpack.c.l.b16 %v1392
      %v2047 = vunpack.c.h.b16 %v1392
      %v2048 = vunpack.c.l.b16 %v1393
      %v2049 = vunpack.c.h.b16 %v1393
      %v2050 = vunpack.c.l.b16 %v1394
      %v2051 = vunpack.c.h.b16 %v1394
      %v2052 = vunpack.c.l.b16 %v1395
      %v2053 = vunpack.c.h.b16 %v1395
      %v2054 = vunpack.c.l.b16 %v1396
      %v2055 = vunpack.c.h.b16 %v1396
      %v2056 = vunpack.c.l.b16 %v1397
      %v2057 = vunpack.c.h.b16 %v1397
      %v2058 = vunpack.c.l.b16 %v1398
      %v2059 = vunpack.c.h.b16 %v1398
      %v2060 = vunpack.c.l.b16 %v1399
      %v2061 = vunpack.c.h.b16 %v1399
      %v2062 = vunpack.c.l.b16 %v1400
      %v2063 = vunpack.c.h.b16 %v1400
      %v2064 = vunpack.c.l.b16 %v1401
      %v2065 = vunpack.c.h.b16 %v1401
      %v2066 = vunpack.c.l.b16 %v1402
      %v2067 = vunpack.c.h.b16 %v1402
      %v2068 = vunpack.c.l.b16 %v1403
      %v2069 = vunpack.c.h.b16 %v1403
      %v2070 = vunpack.c.l.b16 %v1404
      %v2071 = vunpack.c.h.b16 %v1404
      %v2072 = vunpack.c.l.b16 %v1405
      %v2073 = vunpack.c.h.b16 %v1405
      %v2074 = vunpack.c.l.b16 %v1406
      %v2075 = vunpack.c.h.b16 %v1406
      %v2076 = vunpack.c.l.b16 %v1407
      %v2077 = vunpack.c.h.b16 %v1407
      %v2078 = vunpack.c.l.b16 %v1408
      %v2079 = vunpack.c.h.b16 %v1408
      %v2080 = vunpack.c.l.b16 %v1409
      %v2081 = vunpack.c.h.b16 %v1409
      %v2082 = vunpack.c.l.b16 %v1410
      %v2083 = vunpack.c.h.b16 %v1410
      %v2084 = vunpack.c.l.b16 %v1411
      %v2085 = vunpack.c.h.b16 %v1411
      %v2086 = vunpack.c.l.b16 %v1412
      %v2087 = vunpack.c.h.b16 %v1412
      %v2088 = vunpack.c.l.b16 %v1413
      %v2089 = vunpack.c.h.b16 %v1413
      %v2090 = vunpack.c.l.b16 %v1414
      %v2091 = vunpack.c.h.b16 %v1414
      %v2092 = vunpack.c.l.b16 %v1415
      %v2093 = vunpack.c.h.b16 %v1415
      %v2094 = vunpack.c.l.b16 %v1416
      %v2095 = vunpack.c.h.b16 %v1416
      %v2096 = vunpack.c.l.b16 %v1417
      %v2097 = vunpack.c.h.b16 %v1417
      %v2098 = vunpack.c.l.b16 %v1418
      %v2099 = vunpack.c.h.b16 %v1418
      %v2100 = vunpack.c.l.b16 %v1419
      %v2101 = vunpack.c.h.b16 %v1419
      %v2102 = vunpack.c.l.b16 %v1420
      %v2103 = vunpack.c.h.b16 %v1420
      %v2104 = vunpack.c.l.b16 %v1421
      %v2105 = vunpack.c.h.b16 %v1421
      %v2106 = vunpack.c.l.b16 %v1422
      %v2107 = vunpack.c.h.b16 %v1422
      %v2108 = vunpack.c.l.b16 %v1423
      %v2109 = vunpack.c.h.b16 %v1423
      %v2110 = vunpack.c.l.b16 %v1424
      %v2111 = vunpack.c.h.b16 %v1424
      %v2112 = vunpack.c.l.b16 %v1425
      %v2113 = vunpack.c.h.b16 %v1425
      %v2114 = vunpack.c.l.b16 %v1426
      %v2115 = vunpack.c.h.b16 %v1426
      %v2116 = vunpack.c.l.b16 %v1427
      %v2117 = vunpack.c.h.b16 %v1427
      %v2118 = vunpack.c.l.b16 %v1428
      %v2119 = vunpack.c.h.b16 %v1428
      %v2120 = vunpack.c.l.b16 %v1429
      %v2121 = vunpack.c.h.b16 %v1429
      %v2122 = vunpack.c.l.b16 %v1430
      %v2123 = vunpack.c.h.b16 %v1430
      %v2124 = vunpack.c.l.b16 %v1431
      %v2125 = vunpack.c.h.b16 %v1431
      %v2126 = vunpack.c.l.b16 %v1432
      %v2127 = vunpack.c.h.b16 %v1432
      %v2128 = vunpack.c.l.b16 %v1433
      %v2129 = vunpack.c.h.b16 %v1433
      %v2130 = vunpack.c.l.b16 %v1434
      %v2131 = vunpack.c.h.b16 %v1434
      %v2132 = vunpack.c.l.b16 %v1435
      %v2133 = vunpack.c.h.b16 %v1435
      %v2134 = vunpack.c.l.b16 %v1436
      %v2135 = vunpack.c.h.b16 %v1436
      %v2136 = vunpack.c.l.b16 %v1437
      %v2137 = vunpack.c.h.b16 %v1437
      %v2138 = vunpack.c.l.b16 %v1438
      %v2139 = vunpack.c.h.b16 %v1438
      %v2140 = vunpack.c.l.b16 %v1439
      %v2141 = vunpack.c.h.b16 %v1439
      %v2142 = vunpack.c.l.b16 %v1440
      %v2143 = vunpack.c.h.b16 %v1440
      %v2144 = vunpack.c.l.b16 %v1441
      %v2145 = vunpack.c.h.b16 %v1441
      %v2146 = vunpack.c.l.b16 %v1442
      %v2147 = vunpack.c.h.b16 %v1442
      %v2148 = vunpack.c.l.b16 %v1443
      %v2149 = vunpack.c.h.b16 %v1443
      %v2150 = vunpack.c.l.b16 %v1444
      %v2151 = vunpack.c.h.b16 %v1444
      %v2152 = vunpack.c.l.b16 %v1445
      %v2153 = vunpack.c.h.b16 %v1445
      %v2154 = vunpack.c.l.b16 %v1446
      %v2155 = vunpack.c.h.b16 %v1446
      %v2156 = vunpack.c.l.b16 %v1447
      %v2157 = vunpack.c.h.b16 %v1447
      %v2158 = vunpack.c.l.b16 %v1448
      %v2159 = vunpack.c.h.b16 %v1448
      %v2160 = vunpack.c.l.b16 %v1449
      %v2161 = vunpack.c.h.b16 %v1449
      %v2162 = vunpack.c.l.b16 %v1450
      %v2163 = vunpack.c.h.b16 %v1450
      %v2164 = vunpack.c.l.b16 %v1451
      %v2165 = vunpack.c.h.b16 %v1451
      %v2166 = vunpack.c.l.b16 %v1452
      %v2167 = vunpack.c.h.b16 %v1452
      %v2168 = vunpack.c.l.b16 %v1453
      %v2169 = vunpack.c.h.b16 %v1453
      %v2170 = vunpack.c.l.b16 %v1454
      %v2171 = vunpack.c.h.b16 %v1454
      %v2172 = vunpack.c.l.b16 %v1455
      %v2173 = vunpack.c.h.b16 %v1455
      %v2174 = vunpack.c.l.b16 %v1456
      %v2175 = vunpack.c.h.b16 %v1456
      %v2176 = vunpack.c.l.b16 %v1457
      %v2177 = vunpack.c.h.b16 %v1457
      %v2178 = vunpack.c.l.b16 %v1458
      %v2179 = vunpack.c.h.b16 %v1458
      %v2180 = vunpack.c.l.b16 %v1459
      %v2181 = vunpack.c.h.b16 %v1459
      %v2182 = vunpack.c.l.b16 %v1460
      %v2183 = vunpack.c.h.b16 %v1460
      %v2184 = vunpack.c.l.b16 %v1461
      %v2185 = vunpack.c.h.b16 %v1461
      %v2186 = vunpack.c.l.b16 %v1462
      %v2187 = vunpack.c.h.b16 %v1462
      %v2188 = vunpack.c.l.b16 %v1463
      %v2189 = vunpack.c.h.b16 %v1463
      %v2190 = vunpack.c.l.b16 %v1464
      %v2191 = vunpack.c.h.b16 %v1464
      %v2192 = vunpack.c.l.b16 %v1465
      %v2193 = vunpack.c.h.b16 %v1465
      %v2194 = vunpack.c.l.b16 %v1466
      %v2195 = vunpack.c.h.b16 %v1466
      %v2196 = vunpack.c.l.b16 %v1467
      %v2197 = vunpack.c.h.b16 %v1467
      %v2198 = vunpack.c.l.b16 %v1468
      %v2199 = vunpack.c.h.b16 %v1468
      %v2200 = vunpack.c.l.b16 %v1469
      %v2201 = vunpack.c.h.b16 %v1469
      %v2202 = vunpack.c.l.b16 %v1470
      %v2203 = vunpack.c.h.b16 %v1470
      %v2204 = vunpack.c.l.b16 %v1471
      %v2205 = vunpack.c.h.b16 %v1471
      %v2206 = vunpack.c.l.b16 %v1472
      %v2207 = vunpack.c.h.b16 %v1472
      %v2208 = vunpack.c.l.b16 %v1473
      %v2209 = vunpack.c.h.b16 %v1473
      %v2210 = vunpack.c.l.b16 %v1474
      %v2211 = vunpack.c.h.b16 %v1474
      %v2212 = vunpack.c.l.b16 %v1475
      %v2213 = vunpack.c.h.b16 %v1475
      %v2214 = vunpack.c.l.b16 %v1476
      %v2215 = vunpack.c.h.b16 %v1476
      %v2216 = vunpack.c.l.b16 %v1477
      %v2217 = vunpack.c.h.b16 %v1477
      %v2218 = vunpack.c.l.b16 %v1478
      %v2219 = vunpack.c.h.b16 %v1478
      %v2220 = vunpack.c.l.b16 %v1479
      %v2221 = vunpack.c.h.b16 %v1479
      %v2222 = vunpack.c.l.b16 %v1480
      %v2223 = vunpack.c.h.b16 %v1480
      %v2224 = vunpack.c.l.b16 %v1481
      %v2225 = vunpack.c.h.b16 %v1481
      %v2226 = vunpack.c.l.b16 %v1482
      %v2227 = vunpack.c.h.b16 %v1482
      %v2228 = vunpack.c.l.b16 %v1483
      %v2229 = vunpack.c.h.b16 %v1483
      %v2230 = vunpack.c.l.b16 %v1484
      %v2231 = vunpack.c.h.b16 %v1484
      %v2232 = vunpack.c.l.b16 %v1485
      %v2233 = vunpack.c.h.b16 %v1485
      %v2234 = vunpack.c.l.b16 %v1486
      %v2235 = vunpack.c.h.b16 %v1486
      %v2236 = vunpack.c.l.b16 %v1487
      %v2237 = vunpack.c.h.b16 %v1487
      %v2238 = vunpack.c.l.b16 %v1488
      %v2239 = vunpack.c.h.b16 %v1488
      %v2240 = vunpack.c.l.b16 %v1489
      %v2241 = vunpack.c.h.b16 %v1489
      %v2242 = vunpack.c.l.b16 %v1490
      %v2243 = vunpack.c.h.b16 %v1490
      %v2244 = vunpack.c.l.b16 %v1491
      %v2245 = vunpack.c.h.b16 %v1491
      %v2246 = vunpack.c.l.b16 %v1492
      %v2247 = vunpack.c.h.b16 %v1492
      %v2248 = vunpack.c.l.b16 %v1493
      %v2249 = vunpack.c.h.b16 %v1493
      %v2250 = vunpack.c.l.b16 %v1494
      %v2251 = vunpack.c.h.b16 %v1494
      %v2252 = vunpack.c.l.b16 %v1495
      %v2253 = vunpack.c.h.b16 %v1495
      %v2254 = vunpack.c.l.b16 %v1496
      %v2255 = vunpack.c.h.b16 %v1496
      %v2256 = vunpack.c.l.b16 %v1497
      %v2257 = vunpack.c.h.b16 %v1497
      %v2258 = vunpack.c.l.b16 %v1498
      %v2259 = vunpack.c.h.b16 %v1498
      %v2260 = vunpack.c.l.b16 %v1499
      %v2261 = vunpack.c.h.b16 %v1499
      %v2262 = vunpack.c.l.b16 %v1500
      %v2263 = vunpack.c.h.b16 %v1500
      %v2264 = vunpack.c.l.b16 %v1501
      %v2265 = vunpack.c.h.b16 %v1501
      %v2266 = vunpack.c.l.b16 %v1502
      %v2267 = vunpack.c.h.b16 %v1502
      %v2268 = vunpack.c.l.b16 %v1503
      %v2269 = vunpack.c.h.b16 %v1503
      %v2270 = vunpack.c.l.b16 %v1504
      %v2271 = vunpack.c.h.b16 %v1504
      %v2272 = vunpack.c.l.b16 %v1505
      %v2273 = vunpack.c.h.b16 %v1505
      %v2274 = vpack.c.b16 %v1770, %v1762
      %v2275 = vpack.c.b16 %v1771, %v1763
      %v2276 = vpack.c.b16 %v1772, %v1764
      %v2277 = vpack.c.b16 %v1773, %v1765
      %v2278 = vpack.c.b16 %v1774, %v1766
      %v2279 = vpack.c.b16 %v1775, %v1767
      %v2280 = vpack.c.b16 %v1776, %v1768
      %v2281 = vpack.c.b16 %v1777, %v1769
      %v2282 = vpack.c.b16 %v1786, %v1778
      %v2283 = vpack.c.b16 %v1787, %v1779
      %v2284 = vpack.c.b16 %v1788, %v1780
      %v2285 = vpack.c.b16 %v1789, %v1781
      %v2286 = vpack.c.b16 %v1790, %v1782
      %v2287 = vpack.c.b16 %v1791, %v1783
      %v2288 = vpack.c.b16 %v1792, %v1784
      %v2289 = vpack.c.b16 %v1793, %v1785
      %v2290 = vpack.c.b16 %v1802, %v1794
      %v2291 = vpack.c.b16 %v1803, %v1795
      %v2292 = vpack.c.b16 %v1804, %v1796
      %v2293 = vpack.c.b16 %v1805, %v1797
      %v2294 = vpack.c.b16 %v1806, %v1798
      %v2295 = vpack.c.b16 %v1807, %v1799
      %v2296 = vpack.c.b16 %v1808, %v1800
      %v2297 = vpack.c.b16 %v1809, %v1801
      %v2298 = vpack.c.b16 %v1818, %v1810
      %v2299 = vpack.c.b16 %v1819, %v1811
      %v2300 = vpack.c.b16 %v1820, %v1812
      %v2301 = vpack.c.b16 %v1821, %v1813
      %v2302 = vpack.c.b16 %v1822, %v1814
      %v2303 = vpack.c.b16 %v1823, %v1815
      %v2304 = vpack.c.b16 %v1824, %v1816
      %v2305 = vpack.c.b16 %v1825, %v1817
      %v2306 = vpack.c.b16 %v1834, %v1826
      %v2307 = vpack.c.b16 %v1835, %v1827
      %v2308 = vpack.c.b16 %v1836, %v1828
      %v2309 = vpack.c.b16 %v1837, %v1829
      %v2310 = vpack.c.b16 %v1838, %v1830
      %v2311 = vpack.c.b16 %v1839, %v1831
      %v2312 = vpack.c.b16 %v1840, %v1832
      %v2313 = vpack.c.b16 %v1841, %v1833
      %v2314 = vpack.c.b16 %v1850, %v1842
      %v2315 = vpack.c.b16 %v1851, %v1843
      %v2316 = vpack.c.b16 %v1852, %v1844
      %v2317 = vpack.c.b16 %v1853, %v1845
      %v2318 = vpack.c.b16 %v1854, %v1846
      %v2319 = vpack.c.b16 %v1855, %v1847
      %v2320 = vpack.c.b16 %v1856, %v1848
      %v2321 = vpack.c.b16 %v1857, %v1849
      %v2322 = vpack.c.b16 %v1866, %v1858
      %v2323 = vpack.c.b16 %v1867, %v1859
      %v2324 = vpack.c.b16 %v1868, %v1860
      %v2325 = vpack.c.b16 %v1869, %v1861
      %v2326 = vpack.c.b16 %v1870, %v1862
      %v2327 = vpack.c.b16 %v1871, %v1863
      %v2328 = vpack.c.b16 %v1872, %v1864
      %v2329 = vpack.c.b16 %v1873, %v1865
      %v2330 = vpack.c.b16 %v1882, %v1874
      %v2331 = vpack.c.b16 %v1883, %v1875
      %v2332 = vpack.c.b16 %v1884, %v1876
      %v2333 = vpack.c.b16 %v1885, %v1877
      %v2334 = vpack.c.b16 %v1886, %v1878
      %v2335 = vpack.c.b16 %v1887, %v1879
      %v2336 = vpack.c.b16 %v1888, %v1880
      %v2337 = vpack.c.b16 %v1889, %v1881
      %v2338 = vpack.c.b16 %v1898, %v1890
      %v2339 = vpack.c.b16 %v1899, %v1891
      %v2340 = vpack.c.b16 %v1900, %v1892
      %v2341 = vpack.c.b16 %v1901, %v1893
      %v2342 = vpack.c.b16 %v1902, %v1894
      %v2343 = vpack.c.b16 %v1903, %v1895
      %v2344 = vpack.c.b16 %v1904, %v1896
      %v2345 = vpack.c.b16 %v1905, %v1897
      %v2346 = vpack.c.b16 %v1914, %v1906
      %v2347 = vpack.c.b16 %v1915, %v1907
      %v2348 = vpack.c.b16 %v1916, %v1908
      %v2349 = vpack.c.b16 %v1917, %v1909
      %v2350 = vpack.c.b16 %v1918, %v1910
      %v2351 = vpack.c.b16 %v1919, %v1911
      %v2352 = vpack.c.b16 %v1920, %v1912
      %v2353 = vpack.c.b16 %v1921, %v1913
      %v2354 = vpack.c.b16 %v1930, %v1922
      %v2355 = vpack.c.b16 %v1931, %v1923
      %v2356 = vpack.c.b16 %v1932, %v1924
      %v2357 = vpack.c.b16 %v1933, %v1925
      %v2358 = vpack.c.b16 %v1934, %v1926
      %v2359 = vpack.c.b16 %v1935, %v1927
      %v2360 = vpack.c.b16 %v1936, %v1928
      %v2361 = vpack.c.b16 %v1937, %v1929
      %v2362 = vpack.c.b16 %v1946, %v1938
      %v2363 = vpack.c.b16 %v1947, %v1939
      %v2364 = vpack.c.b16 %v1948, %v1940
      %v2365 = vpack.c.b16 %v1949, %v1941
      %v2366 = vpack.c.b16 %v1950, %v1942
      %v2367 = vpack.c.b16 %v1951, %v1943
      %v2368 = vpack.c.b16 %v1952, %v1944
      %v2369 = vpack.c.b16 %v1953, %v1945
      %v2370 = vpack.c.b16 %v1962, %v1954
      %v2371 = vpack.c.b16 %v1963, %v1955
      %v2372 = vpack.c.b16 %v1964, %v1956
      %v2373 = vpack.c.b16 %v1965, %v1957
      %v2374 = vpack.c.b16 %v1966, %v1958
      %v2375 = vpack.c.b16 %v1967, %v1959
      %v2376 = vpack.c.b16 %v1968, %v1960
      %v2377 = vpack.c.b16 %v1969, %v1961
      %v2378 = vpack.c.b16 %v1978, %v1970
      %v2379 = vpack.c.b16 %v1979, %v1971
      %v2380 = vpack.c.b16 %v1980, %v1972
      %v2381 = vpack.c.b16 %v1981, %v1973
      %v2382 = vpack.c.b16 %v1982, %v1974
      %v2383 = vpack.c.b16 %v1983, %v1975
      %v2384 = vpack.c.b16 %v1984, %v1976
      %v2385 = vpack.c.b16 %v1985, %v1977
      %v2386 = vpack.c.b16 %v1994, %v1986
      %v2387 = vpack.c.b16 %v1995, %v1987
      %v2388 = vpack.c.b16 %v1996, %v1988
      %v2389 = vpack.c.b16 %v1997, %v1989
      %v2390 = vpack.c.b16 %v1998, %v1990
      %v2391 = vpack.c.b16 %v1999, %v1991
      %v2392 = vpack.c.b16 %v2000, %v1992
      %v2393 = vpack.c.b16 %v2001, %v1993
      %v2394 = vpack.c.b16 %v2010, %v2002
      %v2395 = vpack.c.b16 %v2011, %v2003
      %v2396 = vpack.c.b16 %v2012, %v2004
      %v2397 = vpack.c.b16 %v2013, %v2005
      %v2398 = vpack.c.b16 %v2014, %v2006
      %v2399 = vpack.c.b16 %v2015, %v2007
      %v2400 = vpack.c.b16 %v2016, %v2008
      %v2401 = vpack.c.b16 %v2017, %v2009
      %v2402 = vpack.c.b16 %v2026, %v2018
      %v2403 = vpack.c.b16 %v2027, %v2019
      %v2404 = vpack.c.b16 %v2028, %v2020
      %v2405 = vpack.c.b16 %v2029, %v2021
      %v2406 = vpack.c.b16 %v2030, %v2022
      %v2407 = vpack.c.b16 %v2031, %v2023
      %v2408 = vpack.c.b16 %v2032, %v2024
      %v2409 = vpack.c.b16 %v2033, %v2025
      %v2410 = vpack.c.b16 %v2042, %v2034
      %v2411 = vpack.c.b16 %v2043, %v2035
      %v2412 = vpack.c.b16 %v2044, %v2036
      %v2413 = vpack.c.b16 %v2045, %v2037
      %v2414 = vpack.c.b16 %v2046, %v2038
      %v2415 = vpack.c.b16 %v2047, %v2039
      %v2416 = vpack.c.b16 %v2048, %v2040
      %v2417 = vpack.c.b16 %v2049, %v2041
      %v2418 = vpack.c.b16 %v2058, %v2050
      %v2419 = vpack.c.b16 %v2059, %v2051
      %v2420 = vpack.c.b16 %v2060, %v2052
      %v2421 = vpack.c.b16 %v2061, %v2053
      %v2422 = vpack.c.b16 %v2062, %v2054
      %v2423 = vpack.c.b16 %v2063, %v2055
      %v2424 = vpack.c.b16 %v2064, %v2056
      %v2425 = vpack.c.b16 %v2065, %v2057
      %v2426 = vpack.c.b16 %v2074, %v2066
      %v2427 = vpack.c.b16 %v2075, %v2067
      %v2428 = vpack.c.b16 %v2076, %v2068
      %v2429 = vpack.c.b16 %v2077, %v2069
      %v2430 = vpack.c.b16 %v2078, %v2070
      %v2431 = vpack.c.b16 %v2079, %v2071
      %v2432 = vpack.c.b16 %v2080, %v2072
      %v2433 = vpack.c.b16 %v2081, %v2073
      %v2434 = vpack.c.b16 %v2090, %v2082
      %v2435 = vpack.c.b16 %v2091, %v2083
      %v2436 = vpack.c.b16 %v2092, %v2084
      %v2437 = vpack.c.b16 %v2093, %v2085
      %v2438 = vpack.c.b16 %v2094, %v2086
      %v2439 = vpack.c.b16 %v2095, %v2087
      %v2440 = vpack.c.b16 %v2096, %v2088
      %v2441 = vpack.c.b16 %v2097, %v2089
      %v2442 = vpack.c.b16 %v2106, %v2098
      %v2443 = vpack.c.b16 %v2107, %v2099
      %v2444 = vpack.c.b16 %v2108, %v2100
      %v2445 = vpack.c.b16 %v2109, %v2101
      %v2446 = vpack.c.b16 %v2110, %v2102
      %v2447 = vpack.c.b16 %v2111, %v2103
      %v2448 = vpack.c.b16 %v2112, %v2104
      %v2449 = vpack.c.b16 %v2113, %v2105
      %v2450 = vpack.c.b16 %v2122, %v2114
      %v2451 = vpack.c.b16 %v2123, %v2115
      %v2452 = vpack.c.b16 %v2124, %v2116
      %v2453 = vpack.c.b16 %v2125, %v2117
      %v2454 = vpack.c.b16 %v2126, %v2118
      %v2455 = vpack.c.b16 %v2127, %v2119
      %v2456 = vpack.c.b16 %v2128, %v2120
      %v2457 = vpack.c.b16 %v2129, %v2121
      %v2458 = vpack.c.b16 %v2138, %v2130
      %v2459 = vpack.c.b16 %v2139, %v2131
      %v2460 = vpack.c.b16 %v2140, %v2132
      %v2461 = vpack.c.b16 %v2141, %v2133
      %v2462 = vpack.c.b16 %v2142, %v2134
      %v2463 = vpack.c.b16 %v2143, %v2135
      %v2464 = vpack.c.b16 %v2144, %v2136
      %v2465 = vpack.c.b16 %v2145, %v2137
      %v2466 = vpack.c.b16 %v2154, %v2146
      %v2467 = vpack.c.b16 %v2155, %v2147
      %v2468 = vpack.c.b16 %v2156, %v2148
      %v2469 = vpack.c.b16 %v2157, %v2149
      %v2470 = vpack.c.b16 %v2158, %v2150
      %v2471 = vpack.c.b16 %v2159, %v2151
      %v2472 = vpack.c.b16 %v2160, %v2152
      %v2473 = vpack.c.b16 %v2161, %v2153
      %v2474 = vpack.c.b16 %v2170, %v2162
      %v2475 = vpack.c.b16 %v2171, %v2163
      %v2476 = vpack.c.b16 %v2172, %v2164
      %v2477 = vpack.c.b16 %v2173, %v2165
      %v2478 = vpack.c.b16 %v2174, %v2166
      %v2479 = vpack.c.b16 %v2175, %v2167
      %v2480 = vpack.c.b16 %v2176, %v2168
      %v2481 = vpack.c.b16 %v2177, %v2169
      %v2482 = vpack.c.b16 %v2186, %v2178
      %v2483 = vpack.c.b16 %v2187, %v2179
      %v2484 = vpack.c.b16 %v2188, %v2180
      %v2485 = vpack.c.b16 %v2189, %v2181
      %v2486 = vpack.c.b16 %v2190, %v2182
      %v2487 = vpack.c.b16 %v2191, %v2183
      %v2488 = vpack.c.b16 %v2192, %v2184
      %v2489 = vpack.c.b16 %v2193, %v2185
      %v2490 = vpack.c.b16 %v2202, %v2194
      %v2491 = vpack.c.b16 %v2203, %v2195
      %v2492 = vpack.c.b16 %v2204, %v2196
      %v2493 = vpack.c.b16 %v2205, %v2197
      %v2494 = vpack.c.b16 %v2206, %v2198
      %v2495 = vpack.c.b16 %v2207, %v2199
      %v2496 = vpack.c.b16 %v2208, %v2200
      %v2497 = vpack.c.b16 %v2209, %v2201
      %v2498 = vpack.c.b16 %v2218, %v2210
      %v2499 = vpack.c.b16 %v2219, %v2211
      %v2500 = vpack.c.b16 %v2220, %v2212
      %v2501 = vpack.c.b16 %v2221, %v2213
      %v2502 = vpack.c.b16 %v2222, %v2214
      %v2503 = vpack.c.b16 %v2223, %v2215
      %v2504 = vpack.c.b16 %v2224, %v2216
      %v2505 = vpack.c.b16 %v2225, %v2217
      %v2506 = vpack.c.b16 %v2234, %v2226
      %v2507 = vpack.c.b16 %v2235, %v2227
      %v2508 = vpack.c.b16 %v2236, %v2228
      %v2509 = vpack.c.b16 %v2237, %v2229
      %v2510 = vpack.c.b16 %v2238, %v2230
      %v2511 = vpack.c.b16 %v2239, %v2231
      %v2512 = vpack.c.b16 %v2240, %v2232
      %v2513 = vpack.c.b16 %v2241, %v2233
      %v2514 = vpack.c.b16 %v2250, %v2242
      %v2515 = vpack.c.b16 %v2251, %v2243
      %v2516 = vpack.c.b16 %v2252, %v2244
      %v2517 = vpack.c.b16 %v2253, %v2245
      %v2518 = vpack.c.b16 %v2254, %v2246
      %v2519 = vpack.c.b16 %v2255, %v2247
      %v2520 = vpack.c.b16 %v2256, %v2248
      %v2521 = vpack.c.b16 %v2257, %v2249
      %v2522 = vpack.c.b16 %v2266, %v2258
      %v2523 = vpack.c.b16 %v2267, %v2259
      %v2524 = vpack.c.b16 %v2268, %v2260
      %v2525 = vpack.c.b16 %v2269, %v2261
      %v2526 = vpack.c.b16 %v2270, %v2262
      %v2527 = vpack.c.b16 %v2271, %v2263
      %v2528 = vpack.c.b16 %v2272, %v2264
      %v2529 = vpack.c.b16 %v2273, %v2265
      %2786 = vmatpush.bf16.msra.mxu0 %v2330
      %2787 = vmatpush.bf16.msra.mxu0 %v2322
      %2788 = vmatpush.bf16.msra.mxu0 %v2314
      %2789 = vmatpush.bf16.msra.mxu0 %v2306
      %2790 = vmatpush.bf16.msra.mxu0 %v2298
      %2791 = vmatpush.bf16.msra.mxu0 %v2290
      %2792 = vmatpush.bf16.msra.mxu0 %v2282
      %2793 = vmatpush.bf16.msra.mxu0 %v2274
      %2794 = vmatmul.bf16.gmra.mxu0 %v1246
      %v2795 = vpop.f32.mrf.mxu0
      %v2796 = vadd.f32 0.0, %v2795
      %v2797 = vpop.f32.mrf.mxu0
      %2798 = vdwg.mxu0
      %2799 = vmatpush.bf16.msra.mxu0 %v2394
      %2800 = vmatpush.bf16.msra.mxu0 %v2386
      %2801 = vmatpush.bf16.msra.mxu0 %v2378
      %2802 = vmatpush.bf16.msra.mxu0 %v2370
      %2803 = vmatpush.bf16.msra.mxu0 %v2362
      %2804 = vmatpush.bf16.msra.mxu0 %v2354
      %2805 = vmatpush.bf16.msra.mxu0 %v2346
      %2806 = vmatpush.bf16.msra.mxu0 %v2338
      %2807 = vmatmul.bf16.gmra.mxu0 %v1247
      %v2808 = vpop.f32.mrf.mxu0
      %v2809 = vadd.f32 %v2796, %v2808
      %v2810 = vpop.f32.mrf.mxu0
      %2811 = vdwg.mxu0
      %2812 = vmatpush.bf16.msra.mxu0 %v2458
      %2813 = vmatpush.bf16.msra.mxu0 %v2450
      %2814 = vmatpush.bf16.msra.mxu0 %v2442
      %2815 = vmatpush.bf16.msra.mxu0 %v2434
      %2816 = vmatpush.bf16.msra.mxu0 %v2426
      %2817 = vmatpush.bf16.msra.mxu0 %v2418
      %2818 = vmatpush.bf16.msra.mxu0 %v2410
      %2819 = vmatpush.bf16.msra.mxu0 %v2402
      %2820 = vmatmul.bf16.gmra.mxu0 %v1248
      %v2821 = vpop.f32.mrf.mxu0
      %v2822 = vadd.f32 %v2809, %v2821
      %v2823 = vpop.f32.mrf.mxu0
      %2824 = vdwg.mxu0
      %2825 = vmatpush.bf16.msra.mxu0 %v2522
      %2826 = vmatpush.bf16.msra.mxu0 %v2514
      %2827 = vmatpush.bf16.msra.mxu0 %v2506
      %2828 = vmatpush.bf16.msra.mxu0 %v2498
      %2829 = vmatpush.bf16.msra.mxu0 %v2490
      %2830 = vmatpush.bf16.msra.mxu0 %v2482
      %2831 = vmatpush.bf16.msra.mxu0 %v2474
      %2832 = vmatpush.bf16.msra.mxu0 %v2466
      %2833 = vmatmul.bf16.gmra.mxu0 %v1249
      %v2834 = vpop.f32.mrf.mxu0
      %v2835 = vadd.f32 %v2822, %v2834
      %v2836 = vpop.f32.mrf.mxu0
      %2837 = vdwg.mxu0
      %2838 = vmatpush.bf16.msra.mxu0 %v2331
      %2839 = vmatpush.bf16.msra.mxu0 %v2323
      %2840 = vmatpush.bf16.msra.mxu0 %v2315
      %2841 = vmatpush.bf16.msra.mxu0 %v2307
      %2842 = vmatpush.bf16.msra.mxu0 %v2299
      %2843 = vmatpush.bf16.msra.mxu0 %v2291
      %2844 = vmatpush.bf16.msra.mxu0 %v2283
      %2845 = vmatpush.bf16.msra.mxu0 %v2275
      %2846 = vmatmul.bf16.gmra.mxu0 %v1246
      %v2847 = vpop.f32.mrf.mxu0
      %v2848 = vadd.f32 0.0, %v2847
      %v2849 = vpop.f32.mrf.mxu0
      %2850 = vdwg.mxu0
      %2851 = vmatpush.bf16.msra.mxu0 %v2395
      %2852 = vmatpush.bf16.msra.mxu0 %v2387
      %2853 = vmatpush.bf16.msra.mxu0 %v2379
      %2854 = vmatpush.bf16.msra.mxu0 %v2371
      %2855 = vmatpush.bf16.msra.mxu0 %v2363
      %2856 = vmatpush.bf16.msra.mxu0 %v2355
      %2857 = vmatpush.bf16.msra.mxu0 %v2347
      %2858 = vmatpush.bf16.msra.mxu0 %v2339
      %2859 = vmatmul.bf16.gmra.mxu0 %v1247
      %v2860 = vpop.f32.mrf.mxu0
      %v2861 = vadd.f32 %v2848, %v2860
      %v2862 = vpop.f32.mrf.mxu0
      %2863 = vdwg.mxu0
      %2864 = vmatpush.bf16.msra.mxu0 %v2459
      %2865 = vmatpush.bf16.msra.mxu0 %v2451
      %2866 = vmatpush.bf16.msra.mxu0 %v2443
      %2867 = vmatpush.bf16.msra.mxu0 %v2435
      %2868 = vmatpush.bf16.msra.mxu0 %v2427
      %2869 = vmatpush.bf16.msra.mxu0 %v2419
      %2870 = vmatpush.bf16.msra.mxu0 %v2411
      %2871 = vmatpush.bf16.msra.mxu0 %v2403
      %2872 = vmatmul.bf16.gmra.mxu0 %v1248
      %v2873 = vpop.f32.mrf.mxu0
      %v2874 = vadd.f32 %v2861, %v2873
      %v2875 = vpop.f32.mrf.mxu0
      %2876 = vdwg.mxu0
      %2877 = vmatpush.bf16.msra.mxu0 %v2523
      %2878 = vmatpush.bf16.msra.mxu0 %v2515
      %2879 = vmatpush.bf16.msra.mxu0 %v2507
      %2880 = vmatpush.bf16.msra.mxu0 %v2499
      %2881 = vmatpush.bf16.msra.mxu0 %v2491
      %2882 = vmatpush.bf16.msra.mxu0 %v2483
      %2883 = vmatpush.bf16.msra.mxu0 %v2475
      %2884 = vmatpush.bf16.msra.mxu0 %v2467
      %2885 = vmatmul.bf16.gmra.mxu0 %v1249
      %v2886 = vpop.f32.mrf.mxu0
      %v2887 = vadd.f32 %v2874, %v2886
      %v2888 = vpop.f32.mrf.mxu0
      %2889 = vdwg.mxu0
      %2890 = vmatpush.bf16.msra.mxu0 %v2332
      %2891 = vmatpush.bf16.msra.mxu0 %v2324
      %2892 = vmatpush.bf16.msra.mxu0 %v2316
      %2893 = vmatpush.bf16.msra.mxu0 %v2308
      %2894 = vmatpush.bf16.msra.mxu0 %v2300
      %2895 = vmatpush.bf16.msra.mxu0 %v2292
      %2896 = vmatpush.bf16.msra.mxu0 %v2284
      %2897 = vmatpush.bf16.msra.mxu0 %v2276
      %2898 = vmatmul.bf16.gmra.mxu0 %v1246
      %v2899 = vpop.f32.mrf.mxu0
      %v2900 = vadd.f32 0.0, %v2899
      %v2901 = vpop.f32.mrf.mxu0
      %2902 = vdwg.mxu0
      %2903 = vmatpush.bf16.msra.mxu0 %v2396
      %2904 = vmatpush.bf16.msra.mxu0 %v2388
      %2905 = vmatpush.bf16.msra.mxu0 %v2380
      %2906 = vmatpush.bf16.msra.mxu0 %v2372
      %2907 = vmatpush.bf16.msra.mxu0 %v2364
      %2908 = vmatpush.bf16.msra.mxu0 %v2356
      %2909 = vmatpush.bf16.msra.mxu0 %v2348
      %2910 = vmatpush.bf16.msra.mxu0 %v2340
      %2911 = vmatmul.bf16.gmra.mxu0 %v1247
      %v2912 = vpop.f32.mrf.mxu0
      %v2913 = vadd.f32 %v2900, %v2912
      %v2914 = vpop.f32.mrf.mxu0
      %2915 = vdwg.mxu0
      %2916 = vmatpush.bf16.msra.mxu0 %v2460
      %2917 = vmatpush.bf16.msra.mxu0 %v2452
      %2918 = vmatpush.bf16.msra.mxu0 %v2444
      %2919 = vmatpush.bf16.msra.mxu0 %v2436
      %2920 = vmatpush.bf16.msra.mxu0 %v2428
      %2921 = vmatpush.bf16.msra.mxu0 %v2420
      %2922 = vmatpush.bf16.msra.mxu0 %v2412
      %2923 = vmatpush.bf16.msra.mxu0 %v2404
      %2924 = vmatmul.bf16.gmra.mxu0 %v1248
      %v2925 = vpop.f32.mrf.mxu0
      %v2926 = vadd.f32 %v2913, %v2925
      %v2927 = vpop.f32.mrf.mxu0
      %2928 = vdwg.mxu0
      %2929 = vmatpush.bf16.msra.mxu0 %v2524
      %2930 = vmatpush.bf16.msra.mxu0 %v2516
      %2931 = vmatpush.bf16.msra.mxu0 %v2508
      %2932 = vmatpush.bf16.msra.mxu0 %v2500
      %2933 = vmatpush.bf16.msra.mxu0 %v2492
      %2934 = vmatpush.bf16.msra.mxu0 %v2484
      %2935 = vmatpush.bf16.msra.mxu0 %v2476
      %2936 = vmatpush.bf16.msra.mxu0 %v2468
      %2937 = vmatmul.bf16.gmra.mxu0 %v1249
      %v2938 = vpop.f32.mrf.mxu0
      %v2939 = vadd.f32 %v2926, %v2938
      %v2940 = vpop.f32.mrf.mxu0
      %2941 = vdwg.mxu0
      %2942 = vmatpush.bf16.msra.mxu0 %v2333
      %2943 = vmatpush.bf16.msra.mxu0 %v2325
      %2944 = vmatpush.bf16.msra.mxu0 %v2317
      %2945 = vmatpush.bf16.msra.mxu0 %v2309
      %2946 = vmatpush.bf16.msra.mxu0 %v2301
      %2947 = vmatpush.bf16.msra.mxu0 %v2293
      %2948 = vmatpush.bf16.msra.mxu0 %v2285
      %2949 = vmatpush.bf16.msra.mxu0 %v2277
      %2950 = vmatmul.bf16.gmra.mxu0 %v1246
      %v2951 = vpop.f32.mrf.mxu0
      %v2952 = vadd.f32 0.0, %v2951
      %v2953 = vpop.f32.mrf.mxu0
      %2954 = vdwg.mxu0
      %2955 = vmatpush.bf16.msra.mxu0 %v2397
      %2956 = vmatpush.bf16.msra.mxu0 %v2389
      %2957 = vmatpush.bf16.msra.mxu0 %v2381
      %2958 = vmatpush.bf16.msra.mxu0 %v2373
      %2959 = vmatpush.bf16.msra.mxu0 %v2365
      %2960 = vmatpush.bf16.msra.mxu0 %v2357
      %2961 = vmatpush.bf16.msra.mxu0 %v2349
      %2962 = vmatpush.bf16.msra.mxu0 %v2341
      %2963 = vmatmul.bf16.gmra.mxu0 %v1247
      %v2964 = vpop.f32.mrf.mxu0
      %v2965 = vadd.f32 %v2952, %v2964
      %v2966 = vpop.f32.mrf.mxu0
      %2967 = vdwg.mxu0
      %2968 = vmatpush.bf16.msra.mxu0 %v2461
      %2969 = vmatpush.bf16.msra.mxu0 %v2453
      %2970 = vmatpush.bf16.msra.mxu0 %v2445
      %2971 = vmatpush.bf16.msra.mxu0 %v2437
      %2972 = vmatpush.bf16.msra.mxu0 %v2429
      %2973 = vmatpush.bf16.msra.mxu0 %v2421
      %2974 = vmatpush.bf16.msra.mxu0 %v2413
      %2975 = vmatpush.bf16.msra.mxu0 %v2405
      %2976 = vmatmul.bf16.gmra.mxu0 %v1248
      %v2977 = vpop.f32.mrf.mxu0
      %v2978 = vadd.f32 %v2965, %v2977
      %v2979 = vpop.f32.mrf.mxu0
      %2980 = vdwg.mxu0
      %2981 = vmatpush.bf16.msra.mxu0 %v2525
      %2982 = vmatpush.bf16.msra.mxu0 %v2517
      %2983 = vmatpush.bf16.msra.mxu0 %v2509
      %2984 = vmatpush.bf16.msra.mxu0 %v2501
      %2985 = vmatpush.bf16.msra.mxu0 %v2493
      %2986 = vmatpush.bf16.msra.mxu0 %v2485
      %2987 = vmatpush.bf16.msra.mxu0 %v2477
      %2988 = vmatpush.bf16.msra.mxu0 %v2469
      %2989 = vmatmul.bf16.gmra.mxu0 %v1249
      %v2990 = vpop.f32.mrf.mxu0
      %v2991 = vadd.f32 %v2978, %v2990
      %v2992 = vpop.f32.mrf.mxu0
      %2993 = vdwg.mxu0
      %2994 = vmatpush.bf16.msra.mxu0 %v2334
      %2995 = vmatpush.bf16.msra.mxu0 %v2326
      %2996 = vmatpush.bf16.msra.mxu0 %v2318
      %2997 = vmatpush.bf16.msra.mxu0 %v2310
      %2998 = vmatpush.bf16.msra.mxu0 %v2302
      %2999 = vmatpush.bf16.msra.mxu0 %v2294
      %3000 = vmatpush.bf16.msra.mxu0 %v2286
      %3001 = vmatpush.bf16.msra.mxu0 %v2278
      %3002 = vmatmul.bf16.gmra.mxu0 %v1246
      %v3003 = vpop.f32.mrf.mxu0
      %v3004 = vadd.f32 0.0, %v3003
      %v3005 = vpop.f32.mrf.mxu0
      %3006 = vdwg.mxu0
      %3007 = vmatpush.bf16.msra.mxu0 %v2398
      %3008 = vmatpush.bf16.msra.mxu0 %v2390
      %3009 = vmatpush.bf16.msra.mxu0 %v2382
      %3010 = vmatpush.bf16.msra.mxu0 %v2374
      %3011 = vmatpush.bf16.msra.mxu0 %v2366
      %3012 = vmatpush.bf16.msra.mxu0 %v2358
      %3013 = vmatpush.bf16.msra.mxu0 %v2350
      %3014 = vmatpush.bf16.msra.mxu0 %v2342
      %3015 = vmatmul.bf16.gmra.mxu0 %v1247
      %v3016 = vpop.f32.mrf.mxu0
      %v3017 = vadd.f32 %v3004, %v3016
      %v3018 = vpop.f32.mrf.mxu0
      %3019 = vdwg.mxu0
      %3020 = vmatpush.bf16.msra.mxu0 %v2462
      %3021 = vmatpush.bf16.msra.mxu0 %v2454
      %3022 = vmatpush.bf16.msra.mxu0 %v2446
      %3023 = vmatpush.bf16.msra.mxu0 %v2438
      %3024 = vmatpush.bf16.msra.mxu0 %v2430
      %3025 = vmatpush.bf16.msra.mxu0 %v2422
      %3026 = vmatpush.bf16.msra.mxu0 %v2414
      %3027 = vmatpush.bf16.msra.mxu0 %v2406
      %3028 = vmatmul.bf16.gmra.mxu0 %v1248
      %v3029 = vpop.f32.mrf.mxu0
      %v3030 = vadd.f32 %v3017, %v3029
      %v3031 = vpop.f32.mrf.mxu0
      %3032 = vdwg.mxu0
      %3033 = vmatpush.bf16.msra.mxu0 %v2526
      %3034 = vmatpush.bf16.msra.mxu0 %v2518
      %3035 = vmatpush.bf16.msra.mxu0 %v2510
      %3036 = vmatpush.bf16.msra.mxu0 %v2502
      %3037 = vmatpush.bf16.msra.mxu0 %v2494
      %3038 = vmatpush.bf16.msra.mxu0 %v2486
      %3039 = vmatpush.bf16.msra.mxu0 %v2478
      %3040 = vmatpush.bf16.msra.mxu0 %v2470
      %3041 = vmatmul.bf16.gmra.mxu0 %v1249
      %v3042 = vpop.f32.mrf.mxu0
      %v3043 = vadd.f32 %v3030, %v3042
      %v3044 = vpop.f32.mrf.mxu0
      %3045 = vdwg.mxu0
      %3046 = vmatpush.bf16.msra.mxu0 %v2335
      %3047 = vmatpush.bf16.msra.mxu0 %v2327
      %3048 = vmatpush.bf16.msra.mxu0 %v2319
      %3049 = vmatpush.bf16.msra.mxu0 %v2311
      %3050 = vmatpush.bf16.msra.mxu0 %v2303
      %3051 = vmatpush.bf16.msra.mxu0 %v2295
      %3052 = vmatpush.bf16.msra.mxu0 %v2287
      %3053 = vmatpush.bf16.msra.mxu0 %v2279
      %3054 = vmatmul.bf16.gmra.mxu0 %v1246
      %v3055 = vpop.f32.mrf.mxu0
      %v3056 = vadd.f32 0.0, %v3055
      %v3057 = vpop.f32.mrf.mxu0
      %3058 = vdwg.mxu0
      %3059 = vmatpush.bf16.msra.mxu0 %v2399
      %3060 = vmatpush.bf16.msra.mxu0 %v2391
      %3061 = vmatpush.bf16.msra.mxu0 %v2383
      %3062 = vmatpush.bf16.msra.mxu0 %v2375
      %3063 = vmatpush.bf16.msra.mxu0 %v2367
      %3064 = vmatpush.bf16.msra.mxu0 %v2359
      %3065 = vmatpush.bf16.msra.mxu0 %v2351
      %3066 = vmatpush.bf16.msra.mxu0 %v2343
      %3067 = vmatmul.bf16.gmra.mxu0 %v1247
      %v3068 = vpop.f32.mrf.mxu0
      %v3069 = vadd.f32 %v3056, %v3068
      %v3070 = vpop.f32.mrf.mxu0
      %3071 = vdwg.mxu0
      %3072 = vmatpush.bf16.msra.mxu0 %v2463
      %3073 = vmatpush.bf16.msra.mxu0 %v2455
      %3074 = vmatpush.bf16.msra.mxu0 %v2447
      %3075 = vmatpush.bf16.msra.mxu0 %v2439
      %3076 = vmatpush.bf16.msra.mxu0 %v2431
      %3077 = vmatpush.bf16.msra.mxu0 %v2423
      %3078 = vmatpush.bf16.msra.mxu0 %v2415
      %3079 = vmatpush.bf16.msra.mxu0 %v2407
      %3080 = vmatmul.bf16.gmra.mxu0 %v1248
      %v3081 = vpop.f32.mrf.mxu0
      %v3082 = vadd.f32 %v3069, %v3081
      %v3083 = vpop.f32.mrf.mxu0
      %3084 = vdwg.mxu0
      %3085 = vmatpush.bf16.msra.mxu0 %v2527
      %3086 = vmatpush.bf16.msra.mxu0 %v2519
      %3087 = vmatpush.bf16.msra.mxu0 %v2511
      %3088 = vmatpush.bf16.msra.mxu0 %v2503
      %3089 = vmatpush.bf16.msra.mxu0 %v2495
      %3090 = vmatpush.bf16.msra.mxu0 %v2487
      %3091 = vmatpush.bf16.msra.mxu0 %v2479
      %3092 = vmatpush.bf16.msra.mxu0 %v2471
      %3093 = vmatmul.bf16.gmra.mxu0 %v1249
      %v3094 = vpop.f32.mrf.mxu0
      %v3095 = vadd.f32 %v3082, %v3094
      %v3096 = vpop.f32.mrf.mxu0
      %3097 = vdwg.mxu0
      %3098 = vmatpush.bf16.msra.mxu0 %v2336
      %3099 = vmatpush.bf16.msra.mxu0 %v2328
      %3100 = vmatpush.bf16.msra.mxu0 %v2320
      %3101 = vmatpush.bf16.msra.mxu0 %v2312
      %3102 = vmatpush.bf16.msra.mxu0 %v2304
      %3103 = vmatpush.bf16.msra.mxu0 %v2296
      %3104 = vmatpush.bf16.msra.mxu0 %v2288
      %3105 = vmatpush.bf16.msra.mxu0 %v2280
      %3106 = vmatmul.bf16.gmra.mxu0 %v1246
      %v3107 = vpop.f32.mrf.mxu0
      %v3108 = vadd.f32 0.0, %v3107
      %v3109 = vpop.f32.mrf.mxu0
      %3110 = vdwg.mxu0
      %3111 = vmatpush.bf16.msra.mxu0 %v2400
      %3112 = vmatpush.bf16.msra.mxu0 %v2392
      %3113 = vmatpush.bf16.msra.mxu0 %v2384
      %3114 = vmatpush.bf16.msra.mxu0 %v2376
      %3115 = vmatpush.bf16.msra.mxu0 %v2368
      %3116 = vmatpush.bf16.msra.mxu0 %v2360
      %3117 = vmatpush.bf16.msra.mxu0 %v2352
      %3118 = vmatpush.bf16.msra.mxu0 %v2344
      %3119 = vmatmul.bf16.gmra.mxu0 %v1247
      %v3120 = vpop.f32.mrf.mxu0
      %v3121 = vadd.f32 %v3108, %v3120
      %v3122 = vpop.f32.mrf.mxu0
      %3123 = vdwg.mxu0
      %3124 = vmatpush.bf16.msra.mxu0 %v2464
      %3125 = vmatpush.bf16.msra.mxu0 %v2456
      %3126 = vmatpush.bf16.msra.mxu0 %v2448
      %3127 = vmatpush.bf16.msra.mxu0 %v2440
      %3128 = vmatpush.bf16.msra.mxu0 %v2432
      %3129 = vmatpush.bf16.msra.mxu0 %v2424
      %3130 = vmatpush.bf16.msra.mxu0 %v2416
      %3131 = vmatpush.bf16.msra.mxu0 %v2408
      %3132 = vmatmul.bf16.gmra.mxu0 %v1248
      %v3133 = vpop.f32.mrf.mxu0
      %v3134 = vadd.f32 %v3121, %v3133
      %v3135 = vpop.f32.mrf.mxu0
      %3136 = vdwg.mxu0
      %3137 = vmatpush.bf16.msra.mxu0 %v2528
      %3138 = vmatpush.bf16.msra.mxu0 %v2520
      %3139 = vmatpush.bf16.msra.mxu0 %v2512
      %3140 = vmatpush.bf16.msra.mxu0 %v2504
      %3141 = vmatpush.bf16.msra.mxu0 %v2496
      %3142 = vmatpush.bf16.msra.mxu0 %v2488
      %3143 = vmatpush.bf16.msra.mxu0 %v2480
      %3144 = vmatpush.bf16.msra.mxu0 %v2472
      %3145 = vmatmul.bf16.gmra.mxu0 %v1249
      %v3146 = vpop.f32.mrf.mxu0
      %v3147 = vadd.f32 %v3134, %v3146
      %v3148 = vpop.f32.mrf.mxu0
      %3149 = vdwg.mxu0
      %3150 = vmatpush.bf16.msra.mxu0 %v2337
      %3151 = vmatpush.bf16.msra.mxu0 %v2329
      %3152 = vmatpush.bf16.msra.mxu0 %v2321
      %3153 = vmatpush.bf16.msra.mxu0 %v2313
      %3154 = vmatpush.bf16.msra.mxu0 %v2305
      %3155 = vmatpush.bf16.msra.mxu0 %v2297
      %3156 = vmatpush.bf16.msra.mxu0 %v2289
      %3157 = vmatpush.bf16.msra.mxu0 %v2281
      %3158 = vmatmul.bf16.gmra.mxu0 %v1246
      %v3159 = vpop.f32.mrf.mxu0
      %v3160 = vadd.f32 0.0, %v3159
      %v3161 = vpop.f32.mrf.mxu0
      %3162 = vdwg.mxu0
      %3163 = vmatpush.bf16.msra.mxu0 %v2401
      %3164 = vmatpush.bf16.msra.mxu0 %v2393
      %3165 = vmatpush.bf16.msra.mxu0 %v2385
      %3166 = vmatpush.bf16.msra.mxu0 %v2377
      %3167 = vmatpush.bf16.msra.mxu0 %v2369
      %3168 = vmatpush.bf16.msra.mxu0 %v2361
      %3169 = vmatpush.bf16.msra.mxu0 %v2353
      %3170 = vmatpush.bf16.msra.mxu0 %v2345
      %3171 = vmatmul.bf16.gmra.mxu0 %v1247
      %v3172 = vpop.f32.mrf.mxu0
      %v3173 = vadd.f32 %v3160, %v3172
      %v3174 = vpop.f32.mrf.mxu0
      %3175 = vdwg.mxu0
      %3176 = vmatpush.bf16.msra.mxu0 %v2465
      %3177 = vmatpush.bf16.msra.mxu0 %v2457
      %3178 = vmatpush.bf16.msra.mxu0 %v2449
      %3179 = vmatpush.bf16.msra.mxu0 %v2441
      %3180 = vmatpush.bf16.msra.mxu0 %v2433
      %3181 = vmatpush.bf16.msra.mxu0 %v2425
      %3182 = vmatpush.bf16.msra.mxu0 %v2417
      %3183 = vmatpush.bf16.msra.mxu0 %v2409
      %3184 = vmatmul.bf16.gmra.mxu0 %v1248
      %v3185 = vpop.f32.mrf.mxu0
      %v3186 = vadd.f32 %v3173, %v3185
      %v3187 = vpop.f32.mrf.mxu0
      %3188 = vdwg.mxu0
      %3189 = vmatpush.bf16.msra.mxu0 %v2529
      %3190 = vmatpush.bf16.msra.mxu0 %v2521
      %3191 = vmatpush.bf16.msra.mxu0 %v2513
      %3192 = vmatpush.bf16.msra.mxu0 %v2505
      %3193 = vmatpush.bf16.msra.mxu0 %v2497
      %3194 = vmatpush.bf16.msra.mxu0 %v2489
      %3195 = vmatpush.bf16.msra.mxu0 %v2481
      %3196 = vmatpush.bf16.msra.mxu0 %v2473
      %3197 = vmatmul.bf16.gmra.mxu0 %v1249
      %v3198 = vpop.f32.mrf.mxu0
      %v3199 = vadd.f32 %v3186, %v3198
      %v3200 = vpop.f32.mrf.mxu0
      %3201 = vdwg.mxu0
      %v3202 = vld [vmem:[%s1 + $0xd] sm:$0xff]
      %v3203 = vld [vmem:[%s1 + $0x15] sm:$0xff]
      %v3204 = vrot.slane %v2835, 4
      %v3205 = vadd.f32 %v2835, %v3204
      %v3206 = vrot.slane %v3205, 2
      %v3207 = vadd.f32 %v3205, %v3206
      %v3208 = vrot.slane %v3207, 1
      %v3209 = vadd.f32 %v3207, %v3208
      %v3210 = vrot.slane %v2887, 4
      %v3211 = vadd.f32 %v2887, %v3210
      %v3212 = vrot.slane %v3211, 2
      %v3213 = vadd.f32 %v3211, %v3212
      %v3214 = vrot.slane %v3213, 1
      %v3215 = vadd.f32 %v3213, %v3214
      %v3216 = vrot.slane %v2939, 4
      %v3217 = vadd.f32 %v2939, %v3216
      %v3218 = vrot.slane %v3217, 2
      %v3219 = vadd.f32 %v3217, %v3218
      %v3220 = vrot.slane %v3219, 1
      %v3221 = vadd.f32 %v3219, %v3220
      %v3222 = vrot.slane %v2991, 4
      %v3223 = vadd.f32 %v2991, %v3222
      %v3224 = vrot.slane %v3223, 2
      %v3225 = vadd.f32 %v3223, %v3224
      %v3226 = vrot.slane %v3225, 1
      %v3227 = vadd.f32 %v3225, %v3226
      %v3228 = vrot.slane %v3043, 4
      %v3229 = vadd.f32 %v3043, %v3228
      %v3230 = vrot.slane %v3229, 2
      %v3231 = vadd.f32 %v3229, %v3230
      %v3232 = vrot.slane %v3231, 1
      %v3233 = vadd.f32 %v3231, %v3232
      %v3234 = vrot.slane %v3095, 4
      %v3235 = vadd.f32 %v3095, %v3234
      %v3236 = vrot.slane %v3235, 2
      %v3237 = vadd.f32 %v3235, %v3236
      %v3238 = vrot.slane %v3237, 1
      %v3239 = vadd.f32 %v3237, %v3238
      %v3240 = vrot.slane %v3147, 4
      %v3241 = vadd.f32 %v3147, %v3240
      %v3242 = vrot.slane %v3241, 2
      %v3243 = vadd.f32 %v3241, %v3242
      %v3244 = vrot.slane %v3243, 1
      %v3245 = vadd.f32 %v3243, %v3244
      %v3246 = vrot.slane %v3199, 4
      %v3247 = vadd.f32 %v3199, %v3246
      %v3248 = vrot.slane %v3247, 2
      %v3249 = vadd.f32 %v3247, %v3248
      %v3250 = vrot.slane %v3249, 1
      %v3251 = vadd.f32 %v3249, %v3250
      %v3252 = vmul.f32 %v3209, 0.125
      %v3253 = vmul.f32 %v3215, 0.125
      %v3254 = vmul.f32 %v3221, 0.125
      %v3255 = vmul.f32 %v3227, 0.125
      %v3256 = vmul.f32 %v3233, 0.125
      %v3257 = vmul.f32 %v3239, 0.125
      %v3258 = vmul.f32 %v3245, 0.125
      %v3259 = vmul.f32 %v3251, 0.125
      %v3260 = vmul.f32 %v2835, %v2835
      %v3261 = vmul.f32 %v2887, %v2887
      %v3262 = vmul.f32 %v2939, %v2939
      %v3263 = vmul.f32 %v2991, %v2991
      %v3264 = vmul.f32 %v3043, %v3043
      %v3265 = vmul.f32 %v3095, %v3095
      %v3266 = vmul.f32 %v3147, %v3147
      %v3267 = vmul.f32 %v3199, %v3199
      %v3268 = vrot.slane %v3260, 4
      %v3269 = vadd.f32 %v3260, %v3268
      %v3270 = vrot.slane %v3269, 2
      %v3271 = vadd.f32 %v3269, %v3270
      %v3272 = vrot.slane %v3271, 1
      %v3273 = vadd.f32 %v3271, %v3272
      %v3274 = vrot.slane %v3261, 4
      %v3275 = vadd.f32 %v3261, %v3274
      %v3276 = vrot.slane %v3275, 2
      %v3277 = vadd.f32 %v3275, %v3276
      %v3278 = vrot.slane %v3277, 1
      %v3279 = vadd.f32 %v3277, %v3278
      %v3280 = vrot.slane %v3262, 4
      %v3281 = vadd.f32 %v3262, %v3280
      %v3282 = vrot.slane %v3281, 2
      %v3283 = vadd.f32 %v3281, %v3282
      %v3284 = vrot.slane %v3283, 1
      %v3285 = vadd.f32 %v3283, %v3284
      %v3286 = vrot.slane %v3263, 4
      %v3287 = vadd.f32 %v3263, %v3286
      %v3288 = vrot.slane %v3287, 2
      %v3289 = vadd.f32 %v3287, %v3288
      %v3290 = vrot.slane %v3289, 1
      %v3291 = vadd.f32 %v3289, %v3290
      %v3292 = vrot.slane %v3264, 4
      %v3293 = vadd.f32 %v3264, %v3292
      %v3294 = vrot.slane %v3293, 2
      %v3295 = vadd.f32 %v3293, %v3294
      %v3296 = vrot.slane %v3295, 1
      %v3297 = vadd.f32 %v3295, %v3296
      %v3298 = vrot.slane %v3265, 4
      %v3299 = vadd.f32 %v3265, %v3298
      %v3300 = vrot.slane %v3299, 2
      %v3301 = vadd.f32 %v3299, %v3300
      %v3302 = vrot.slane %v3301, 1
      %v3303 = vadd.f32 %v3301, %v3302
      %v3304 = vrot.slane %v3266, 4
      %v3305 = vadd.f32 %v3266, %v3304
      %v3306 = vrot.slane %v3305, 2
      %v3307 = vadd.f32 %v3305, %v3306
      %v3308 = vrot.slane %v3307, 1
      %v3309 = vadd.f32 %v3307, %v3308
      %v3310 = vrot.slane %v3267, 4
      %v3311 = vadd.f32 %v3267, %v3310
      %v3312 = vrot.slane %v3311, 2
      %v3313 = vadd.f32 %v3311, %v3312
      %v3314 = vrot.slane %v3313, 1
      %v3315 = vadd.f32 %v3313, %v3314
      %v3316 = vmul.f32 %v3273, 0.125
      %v3317 = vmul.f32 %v3279, 0.125
      %v3318 = vmul.f32 %v3285, 0.125
      %v3319 = vmul.f32 %v3291, 0.125
      %v3320 = vmul.f32 %v3297, 0.125
      %v3321 = vmul.f32 %v3303, 0.125
      %v3322 = vmul.f32 %v3309, 0.125
      %v3323 = vmul.f32 %v3315, 0.125
      %v3324 = vmul.f32 %v3252, %v3252
      %v3325 = vmul.f32 %v3253, %v3253
      %v3326 = vmul.f32 %v3254, %v3254
      %v3327 = vmul.f32 %v3255, %v3255
      %v3328 = vmul.f32 %v3256, %v3256
      %v3329 = vmul.f32 %v3257, %v3257
      %v3330 = vmul.f32 %v3258, %v3258
      %v3331 = vmul.f32 %v3259, %v3259
      %v3332 = vsub.f32 %v3316, %v3324
      %v3333 = vsub.f32 %v3317, %v3325
      %v3334 = vsub.f32 %v3318, %v3326
      %v3335 = vsub.f32 %v3319, %v3327
      %v3336 = vsub.f32 %v3320, %v3328
      %v3337 = vsub.f32 %v3321, %v3329
      %v3338 = vsub.f32 %v3322, %v3330
      %v3339 = vsub.f32 %v3323, %v3331
      %v3340 = vadd.f32 %v3332, 0.8
      %v3341 = vadd.f32 %v3333, 0.8
      %v3342 = vadd.f32 %v3334, 0.8
      %v3343 = vadd.f32 %v3335, 0.8
      %v3344 = vadd.f32 %v3336, 0.8
      %v3345 = vadd.f32 %v3337, 0.8
      %v3346 = vadd.f32 %v3338, 0.8
      %v3347 = vadd.f32 %v3339, 0.8
      %v3348 = vrsqrt.pop %v3340
      %v3349 = vmul.f32 %v3348, %v3340
      %v3350 = vmul.f32 %v3349, %v3348
      %v3351 = vmul.f32 0.5, %v3350
      %v3352 = vsub.f32 1.5, %v3351
      %v3353 = vmul.f32 %v3348, %v3352
      %vm3354 = vweird.f32 %v3340
      %vm3355 = vweird.f32 %v3348
      %vm3356 = vmor %vm3354, %vm3355
      %v3357 = vsel %vm3356, %v3348, %v3353
      %v3358 = vrsqrt.pop %v3341
      %v3359 = vmul.f32 %v3358, %v3341
      %v3360 = vmul.f32 %v3359, %v3358
      %v3361 = vmul.f32 0.5, %v3360
      %v3362 = vsub.f32 1.5, %v3361
      %v3363 = vmul.f32 %v3358, %v3362
      %vm3364 = vweird.f32 %v3341
      %vm3365 = vweird.f32 %v3358
      %vm3366 = vmor %vm3364, %vm3365
      %v3367 = vsel %vm3366, %v3358, %v3363
      %v3368 = vrsqrt.pop %v3342
      %v3369 = vmul.f32 %v3368, %v3342
      %v3370 = vmul.f32 %v3369, %v3368
      %v3371 = vmul.f32 0.5, %v3370
      %v3372 = vsub.f32 1.5, %v3371
      %v3373 = vmul.f32 %v3368, %v3372
      %vm3374 = vweird.f32 %v3342
      %vm3375 = vweird.f32 %v3368
      %vm3376 = vmor %vm3374, %vm3375
      %v3377 = vsel %vm3376, %v3368, %v3373
      %v3378 = vrsqrt.pop %v3343
      %v3379 = vmul.f32 %v3378, %v3343
      %v3380 = vmul.f32 %v3379, %v3378
      %v3381 = vmul.f32 0.5, %v3380
      %v3382 = vsub.f32 1.5, %v3381
      %v3383 = vmul.f32 %v3378, %v3382
      %vm3384 = vweird.f32 %v3343
      %vm3385 = vweird.f32 %v3378
      %vm3386 = vmor %vm3384, %vm3385
      %v3387 = vsel %vm3386, %v3378, %v3383
      %v3388 = vrsqrt.pop %v3344
      %v3389 = vmul.f32 %v3388, %v3344
      %v3390 = vmul.f32 %v3389, %v3388
      %v3391 = vmul.f32 0.5, %v3390
      %v3392 = vsub.f32 1.5, %v3391
      %v3393 = vmul.f32 %v3388, %v3392
      %vm3394 = vweird.f32 %v3344
      %vm3395 = vweird.f32 %v3388
      %vm3396 = vmor %vm3394, %vm3395
      %v3397 = vsel %vm3396, %v3388, %v3393
      %v3398 = vrsqrt.pop %v3345
      %v3399 = vmul.f32 %v3398, %v3345
      %v3400 = vmul.f32 %v3399, %v3398
      %v3401 = vmul.f32 0.5, %v3400
      %v3402 = vsub.f32 1.5, %v3401
      %v3403 = vmul.f32 %v3398, %v3402
      %vm3404 = vweird.f32 %v3345
      %vm3405 = vweird.f32 %v3398
      %vm3406 = vmor %vm3404, %vm3405
      %v3407 = vsel %vm3406, %v3398, %v3403
      %v3408 = vrsqrt.pop %v3346
      %v3409 = vmul.f32 %v3408, %v3346
      %v3410 = vmul.f32 %v3409, %v3408
      %v3411 = vmul.f32 0.5, %v3410
      %v3412 = vsub.f32 1.5, %v3411
      %v3413 = vmul.f32 %v3408, %v3412
      %vm3414 = vweird.f32 %v3346
      %vm3415 = vweird.f32 %v3408
      %vm3416 = vmor %vm3414, %vm3415
      %v3417 = vsel %vm3416, %v3408, %v3413
      %v3418 = vrsqrt.pop %v3347
      %v3419 = vmul.f32 %v3418, %v3347
      %v3420 = vmul.f32 %v3419, %v3418
      %v3421 = vmul.f32 0.5, %v3420
      %v3422 = vsub.f32 1.5, %v3421
      %v3423 = vmul.f32 %v3418, %v3422
      %vm3424 = vweird.f32 %v3347
      %vm3425 = vweird.f32 %v3418
      %vm3426 = vmor %vm3424, %vm3425
      %v3427 = vsel %vm3426, %v3418, %v3423
      %v3436 = vrot.slane %v3367, 7
      %v3437 = vrot.slane %v3377, 6
      %v3438 = vrot.slane %v3387, 5
      %v3439 = vrot.slane %v3397, 4
      %v3440 = vrot.slane %v3407, 3
      %v3441 = vrot.slane %v3417, 2
      %v3442 = vrot.slane %v3427, 1
      %v3443 = vsel %vm543, %v3357, %v3436
      %v3444 = vsel %vm1187, %v3437, %v3438
      %v3445 = vsel %vm339, %v3443, %v3444
      %vm3446 = vcmask 1044484
      %v3447 = vsel %vm3446, %v3439, %v3440
      %vm3448 = vcmask 1046534
      %v3449 = vsel %vm3448, %v3441, %v3442
      %vm3450 = vcmask 1045508
      %v3451 = vsel %vm3450, %v3447, %v3449
      %vm3452 = vcmask 1043456
      %v3453 = vsel %vm3452, %v3445, %v3451
      %v3455 = vmul.f32 %v3202, %v3453
      %v3457 = vperm.slane %v3455, 0
      %v3458 = vperm.slane %v3455, 1
      %v3459 = vperm.slane %v3455, 2
      %v3460 = vperm.slane %v3455, 3
      %v3461 = vperm.slane %v3455, 4
      %v3462 = vperm.slane %v3455, 5
      %v3463 = vperm.slane %v3455, 6
      %v3464 = vperm.slane %v3455, 7
      %v3473 = vmul.f32 %v3252, %v3457
      %v3474 = vmul.f32 %v3253, %v3458
      %v3475 = vmul.f32 %v3254, %v3459
      %v3476 = vmul.f32 %v3255, %v3460
      %v3477 = vmul.f32 %v3256, %v3461
      %v3478 = vmul.f32 %v3257, %v3462
      %v3479 = vmul.f32 %v3258, %v3463
      %v3480 = vmul.f32 %v3259, %v3464
      %v3489 = vrot.slane %v3474, 7
      %v3490 = vrot.slane %v3475, 6
      %v3491 = vrot.slane %v3476, 5
      %v3492 = vrot.slane %v3477, 4
      %v3493 = vrot.slane %v3478, 3
      %v3494 = vrot.slane %v3479, 2
      %v3495 = vrot.slane %v3480, 1
      %v3496 = vsel %vm543, %v3473, %v3489
      %v3497 = vsel %vm1187, %v3490, %v3491
      %v3498 = vsel %vm339, %v3496, %v3497
      %v3499 = vsel %vm3446, %v3492, %v3493
      %v3500 = vsel %vm3448, %v3494, %v3495
      %v3501 = vsel %vm3450, %v3499, %v3500
      %v3502 = vsel %vm3452, %v3498, %v3501
      %v3504 = vsub.f32 %v3203, %v3502
      %v3505 = vmul.f32 %v2835, %v3457
      %v3506 = vmul.f32 %v2887, %v3458
      %v3507 = vmul.f32 %v2939, %v3459
      %v3508 = vmul.f32 %v2991, %v3460
      %v3509 = vmul.f32 %v3043, %v3461
      %v3510 = vmul.f32 %v3095, %v3462
      %v3511 = vmul.f32 %v3147, %v3463
      %v3512 = vmul.f32 %v3199, %v3464
      %v3514 = vperm.slane %v3504, 0
      %v3515 = vperm.slane %v3504, 1
      %v3516 = vperm.slane %v3504, 2
      %v3517 = vperm.slane %v3504, 3
      %v3518 = vperm.slane %v3504, 4
      %v3519 = vperm.slane %v3504, 5
      %v3520 = vperm.slane %v3504, 6
      %v3521 = vperm.slane %v3504, 7
      %v3530 = vadd.f32 %v3505, %v3514
      %v3531 = vadd.f32 %v3506, %v3515
      %v3532 = vadd.f32 %v3507, %v3516
      %v3533 = vadd.f32 %v3508, %v3517
      %v3534 = vadd.f32 %v3509, %v3518
      %v3535 = vadd.f32 %v3510, %v3519
      %v3536 = vadd.f32 %v3511, %v3520
      %v3537 = vadd.f32 %v3512, %v3521
      %vm3538 = vcmp.gt.f32.partialorder %v3530, 0.0
      %vm3539 = vcmp.gt.f32.partialorder %v3531, 0.0
      %vm3540 = vcmp.gt.f32.partialorder %v3532, 0.0
      %vm3541 = vcmp.gt.f32.partialorder %v3533, 0.0
      %vm3542 = vcmp.gt.f32.partialorder %v3534, 0.0
      %vm3543 = vcmp.gt.f32.partialorder %v3535, 0.0
      %vm3544 = vcmp.gt.f32.partialorder %v3536, 0.0
      %vm3545 = vcmp.gt.f32.partialorder %v3537, 0.0
      %v3546 = vmul.f32 %v3530, 0.2
      %v3547 = vmul.f32 %v3531, 0.2
      %v3548 = vmul.f32 %v3532, 0.2
      %v3549 = vmul.f32 %v3533, 0.2
      %v3550 = vmul.f32 %v3534, 0.2
      %v3551 = vmul.f32 %v3535, 0.2
      %v3552 = vmul.f32 %v3536, 0.2
      %v3553 = vmul.f32 %v3537, 0.2
      %v3554 = vsel %vm3538, %v3530, %v3546
      %v3555 = vsel %vm3539, %v3531, %v3547
      %v3556 = vsel %vm3540, %v3532, %v3548
      %v3557 = vsel %vm3541, %v3533, %v3549
      %v3558 = vsel %vm3542, %v3534, %v3550
      %v3559 = vsel %vm3543, %v3535, %v3551
      %v3560 = vsel %vm3544, %v3536, %v3552
      %v3561 = vsel %vm3545, %v3537, %v3553
      %v3562 = vpack.c.bf16 %v3554, %v3554
      %v3563 = vpack.c.bf16 %v3555, %v3555
      %v3564 = vpack.c.bf16 %v3556, %v3556
      %v3565 = vpack.c.bf16 %v3557, %v3557
      %v3566 = vpack.c.bf16 %v3558, %v3558
      %v3567 = vpack.c.bf16 %v3559, %v3559
      %v3568 = vpack.c.bf16 %v3560, %v3560
      %v3569 = vpack.c.bf16 %v3561, %v3561
      %v3570 = vld [vmem:[%s6] sm:$0xff]
      %v3571 = vld [vmem:[%s6 + $0x8] sm:$0xff]
      %v3572 = vld [vmem:[%s6 + $0x10] sm:$0xff]
      %v3573 = vld [vmem:[%s6 + $0x18] sm:$0xf]
      %v3574 = vld [vmem:[%s6 + $0x1c] sm:$0xff]
      %v3575 = vld [vmem:[%s6 + $0x24] sm:$0xff]
      %v3576 = vld [vmem:[%s6 + $0x2c] sm:$0xff]
      %v3577 = vld [vmem:[%s6 + $0x34] sm:$0xf]
      %v3578 = vld [vmem:[%s6 + $0x38] sm:$0xff]
      %v3579 = vld [vmem:[%s6 + $0x40] sm:$0xff]
      %v3580 = vld [vmem:[%s6 + $0x48] sm:$0xff]
      %v3581 = vld [vmem:[%s6 + $0x50] sm:$0xf]
      %v3582 = vld [vmem:[%s6 + $0x54] sm:$0xff]
      %v3583 = vld [vmem:[%s6 + $0x5c] sm:$0xff]
      %v3584 = vld [vmem:[%s6 + $0x64] sm:$0xff]
      %v3585 = vld [vmem:[%s6 + $0x6c] sm:$0xf]
      %v3586 = vld [vmem:[%s6 + $0x70] sm:$0xff]
      %v3587 = vld [vmem:[%s6 + $0x78] sm:$0xff]
      %v3588 = vld [vmem:[%s6 + $0x80] sm:$0xff]
      %v3589 = vld [vmem:[%s6 + $0x88] sm:$0xf]
      %v3590 = vld [vmem:[%s6 + $0x8c] sm:$0xff]
      %v3591 = vld [vmem:[%s6 + $0x94] sm:$0xff]
      %v3592 = vld [vmem:[%s6 + $0x9c] sm:$0xff]
      %v3593 = vld [vmem:[%s6 + $0xa4] sm:$0xf]
      %v3594 = vld [vmem:[%s6 + $0xa8] sm:$0xff]
      %v3595 = vld [vmem:[%s6 + $0xb0] sm:$0xff]
      %v3596 = vld [vmem:[%s6 + $0xb8] sm:$0xff]
      %v3597 = vld [vmem:[%s6 + $0xc0] sm:$0xf]
      %v3598 = vld [vmem:[%s6 + $0xc4] sm:$0xff]
      %v3599 = vld [vmem:[%s6 + $0xcc] sm:$0xff]
      %v3600 = vld [vmem:[%s6 + $0xd4] sm:$0xff]
      %v3601 = vld [vmem:[%s6 + $0xdc] sm:$0xf]
      %v3602 = vld [vmem:[%s6 + $0xe0] sm:$0xff]
      %v3603 = vld [vmem:[%s6 + $0xe8] sm:$0xff]
      %v3604 = vld [vmem:[%s6 + $0xf0] sm:$0xff]
      %v3605 = vld [vmem:[%s6 + $0xf8] sm:$0xf]
      %v3606 = vld [vmem:[%s6 + $0xfc] sm:$0xff]
      %v3607 = vld [vmem:[%s6 + $0x104] sm:$0xff]
      %v3608 = vld [vmem:[%s6 + $0x10c] sm:$0xff]
      %v3609 = vld [vmem:[%s6 + $0x114] sm:$0xf]
      %v3610 = vld [vmem:[%s6 + $0x118] sm:$0xff]
      %v3611 = vld [vmem:[%s6 + $0x120] sm:$0xff]
      %v3612 = vld [vmem:[%s6 + $0x128] sm:$0xff]
      %v3613 = vld [vmem:[%s6 + $0x130] sm:$0xf]
      %v3614 = vld [vmem:[%s6 + $0x134] sm:$0xff]
      %v3615 = vld [vmem:[%s6 + $0x13c] sm:$0xff]
      %v3616 = vld [vmem:[%s6 + $0x144] sm:$0xff]
      %v3617 = vld [vmem:[%s6 + $0x14c] sm:$0xf]
      %v3618 = vld [vmem:[%s6 + $0x150] sm:$0xff]
      %v3619 = vld [vmem:[%s6 + $0x158] sm:$0xff]
      %v3620 = vld [vmem:[%s6 + $0x160] sm:$0xff]
      %v3621 = vld [vmem:[%s6 + $0x168] sm:$0xf]
      %v3622 = vld [vmem:[%s6 + $0x16c] sm:$0xff]
      %v3623 = vld [vmem:[%s6 + $0x174] sm:$0xff]
      %v3624 = vld [vmem:[%s6 + $0x17c] sm:$0xff]
      %v3625 = vld [vmem:[%s6 + $0x184] sm:$0xf]
      %v3626 = vld [vmem:[%s6 + $0x188] sm:$0xff]
      %v3627 = vld [vmem:[%s6 + $0x190] sm:$0xff]
      %v3628 = vld [vmem:[%s6 + $0x198] sm:$0xff]
      %v3629 = vld [vmem:[%s6 + $0x1a0] sm:$0xf]
      %v3630 = vld [vmem:[%s6 + $0x1a4] sm:$0xff]
      %v3631 = vld [vmem:[%s6 + $0x1ac] sm:$0xff]
      %v3632 = vld [vmem:[%s6 + $0x1b4] sm:$0xff]
      %v3633 = vld [vmem:[%s6 + $0x1bc] sm:$0xf]
      %v3634 = vld [vmem:[%s6 + $0x1c0] sm:$0xff]
      %v3635 = vld [vmem:[%s6 + $0x1c8] sm:$0xff]
      %v3636 = vld [vmem:[%s6 + $0x1d0] sm:$0xff]
      %v3637 = vld [vmem:[%s6 + $0x1d8] sm:$0xf]
      %v3638 = vld [vmem:[%s6 + $0x1dc] sm:$0xff]
      %v3639 = vld [vmem:[%s6 + $0x1e4] sm:$0xff]
      %v3640 = vld [vmem:[%s6 + $0x1ec] sm:$0xff]
      %v3641 = vld [vmem:[%s6 + $0x1f4] sm:$0xf]
      %v3642 = vld [vmem:[%s6 + $0x1f8] sm:$0xff]
      %v3643 = vld [vmem:[%s6 + $0x200] sm:$0xff]
      %v3644 = vld [vmem:[%s6 + $0x208] sm:$0xff]
      %v3645 = vld [vmem:[%s6 + $0x210] sm:$0xf]
      %v3646 = vld [vmem:[%s6 + $0x214] sm:$0xff]
      %v3647 = vld [vmem:[%s6 + $0x21c] sm:$0xff]
      %v3648 = vld [vmem:[%s6 + $0x224] sm:$0xff]
      %v3649 = vld [vmem:[%s6 + $0x22c] sm:$0xf]
      %v3650 = vld [vmem:[%s6 + $0x230] sm:$0xff]
      %v3651 = vld [vmem:[%s6 + $0x238] sm:$0xff]
      %v3652 = vld [vmem:[%s6 + $0x240] sm:$0xff]
      %v3653 = vld [vmem:[%s6 + $0x248] sm:$0xf]
      %v3654 = vld [vmem:[%s6 + $0x24c] sm:$0xff]
      %v3655 = vld [vmem:[%s6 + $0x254] sm:$0xff]
      %v3656 = vld [vmem:[%s6 + $0x25c] sm:$0xff]
      %v3657 = vld [vmem:[%s6 + $0x264] sm:$0xf]
      %v3658 = vld [vmem:[%s6 + $0x268] sm:$0xff]
      %v3659 = vld [vmem:[%s6 + $0x270] sm:$0xff]
      %v3660 = vld [vmem:[%s6 + $0x278] sm:$0xff]
      %v3661 = vld [vmem:[%s6 + $0x280] sm:$0xf]
      %v3662 = vld [vmem:[%s6 + $0x284] sm:$0xff]
      %v3663 = vld [vmem:[%s6 + $0x28c] sm:$0xff]
      %v3664 = vld [vmem:[%s6 + $0x294] sm:$0xff]
      %v3665 = vld [vmem:[%s6 + $0x29c] sm:$0xf]
      %v3666 = vld [vmem:[%s6 + $0x2a0] sm:$0xff]
      %v3667 = vld [vmem:[%s6 + $0x2a8] sm:$0xff]
      %v3668 = vld [vmem:[%s6 + $0x2b0] sm:$0xff]
      %v3669 = vld [vmem:[%s6 + $0x2b8] sm:$0xf]
      %v3670 = vld [vmem:[%s6 + $0x2bc] sm:$0xff]
      %v3671 = vld [vmem:[%s6 + $0x2c4] sm:$0xff]
      %v3672 = vld [vmem:[%s6 + $0x2cc] sm:$0xff]
      %v3673 = vld [vmem:[%s6 + $0x2d4] sm:$0xf]
      %v3674 = vld [vmem:[%s6 + $0x2d8] sm:$0xff]
      %v3675 = vld [vmem:[%s6 + $0x2e0] sm:$0xff]
      %v3676 = vld [vmem:[%s6 + $0x2e8] sm:$0xff]
      %v3677 = vld [vmem:[%s6 + $0x2f0] sm:$0xf]
      %v3678 = vld [vmem:[%s6 + $0x2f4] sm:$0xff]
      %v3679 = vld [vmem:[%s6 + $0x2fc] sm:$0xff]
      %v3680 = vld [vmem:[%s6 + $0x304] sm:$0xff]
      %v3681 = vld [vmem:[%s6 + $0x30c] sm:$0xf]
      %v3682 = vld [vmem:[%s6 + $0x310] sm:$0xff]
      %v3683 = vld [vmem:[%s6 + $0x318] sm:$0xff]
      %v3684 = vld [vmem:[%s6 + $0x320] sm:$0xff]
      %v3685 = vld [vmem:[%s6 + $0x328] sm:$0xf]
      %v3686 = vld [vmem:[%s6 + $0x32c] sm:$0xff]
      %v3687 = vld [vmem:[%s6 + $0x334] sm:$0xff]
      %v3688 = vld [vmem:[%s6 + $0x33c] sm:$0xff]
      %v3689 = vld [vmem:[%s6 + $0x344] sm:$0xf]
      %v3690 = vld [vmem:[%s6 + $0x348] sm:$0xff]
      %v3691 = vld [vmem:[%s6 + $0x350] sm:$0xff]
      %v3692 = vld [vmem:[%s6 + $0x358] sm:$0xff]
      %v3693 = vld [vmem:[%s6 + $0x360] sm:$0xf]
      %v3694 = vld [vmem:[%s6 + $0x364] sm:$0xff]
      %v3695 = vld [vmem:[%s6 + $0x36c] sm:$0xff]
      %v3696 = vld [vmem:[%s6 + $0x374] sm:$0xff]
      %v3697 = vld [vmem:[%s6 + $0x37c] sm:$0xf]
      %v3698 = vld [vmem:[%s6 + $0x380] sm:$0xff]
      %v3699 = vld [vmem:[%s6 + $0x388] sm:$0xff]
      %v3700 = vld [vmem:[%s6 + $0x390] sm:$0xff]
      %v3701 = vld [vmem:[%s6 + $0x398] sm:$0xf]
      %v3702 = vld [vmem:[%s6 + $0x39c] sm:$0xff]
      %v3703 = vld [vmem:[%s6 + $0x3a4] sm:$0xff]
      %v3704 = vld [vmem:[%s6 + $0x3ac] sm:$0xff]
      %v3705 = vld [vmem:[%s6 + $0x3b4] sm:$0xf]
      %v3706 = vld [vmem:[%s6 + $0x3b8] sm:$0xff]
      %v3707 = vld [vmem:[%s6 + $0x3c0] sm:$0xff]
      %v3708 = vld [vmem:[%s6 + $0x3c8] sm:$0xff]
      %v3709 = vld [vmem:[%s6 + $0x3d0] sm:$0xf]
      %v3710 = vld [vmem:[%s6 + $0x3d4] sm:$0xff]
      %v3711 = vld [vmem:[%s6 + $0x3dc] sm:$0xff]
      %v3712 = vld [vmem:[%s6 + $0x3e4] sm:$0xff]
      %v3713 = vld [vmem:[%s6 + $0x3ec] sm:$0xf]
      %v3714 = vld [vmem:[%s6 + $0x3f0] sm:$0xff]
      %v3715 = vld [vmem:[%s6 + $0x3f8] sm:$0xff]
      %v3716 = vld [vmem:[%s6 + $0x400] sm:$0xff]
      %v3717 = vld [vmem:[%s6 + $0x408] sm:$0xf]
      %v3718 = vld [vmem:[%s6 + $0x40c] sm:$0xff]
      %v3719 = vld [vmem:[%s6 + $0x414] sm:$0xff]
      %v3720 = vld [vmem:[%s6 + $0x41c] sm:$0xff]
      %v3721 = vld [vmem:[%s6 + $0x424] sm:$0xf]
      %v3722 = vld [vmem:[%s6 + $0x428] sm:$0xff]
      %v3723 = vld [vmem:[%s6 + $0x430] sm:$0xff]
      %v3724 = vld [vmem:[%s6 + $0x438] sm:$0xff]
      %v3725 = vld [vmem:[%s6 + $0x440] sm:$0xf]
      %v3726 = vld [vmem:[%s6 + $0x444] sm:$0xff]
      %v3727 = vld [vmem:[%s6 + $0x44c] sm:$0xff]
      %v3728 = vld [vmem:[%s6 + $0x454] sm:$0xff]
      %v3729 = vld [vmem:[%s6 + $0x45c] sm:$0xf]
      %v3730 = vld [vmem:[%s6 + $0x460] sm:$0xff]
      %v3731 = vld [vmem:[%s6 + $0x468] sm:$0xff]
      %v3732 = vld [vmem:[%s6 + $0x470] sm:$0xff]
      %v3733 = vld [vmem:[%s6 + $0x478] sm:$0xf]
      %v3734 = vld [vmem:[%s6 + $0x47c] sm:$0xff]
      %v3735 = vld [vmem:[%s6 + $0x484] sm:$0xff]
      %v3736 = vld [vmem:[%s6 + $0x48c] sm:$0xff]
      %v3737 = vld [vmem:[%s6 + $0x494] sm:$0xf]
      %v3738 = vld [vmem:[%s6 + $0x498] sm:$0xff]
      %v3739 = vld [vmem:[%s6 + $0x4a0] sm:$0xff]
      %v3740 = vld [vmem:[%s6 + $0x4a8] sm:$0xff]
      %v3741 = vld [vmem:[%s6 + $0x4b0] sm:$0xf]
      %v3742 = vld [vmem:[%s6 + $0x4b4] sm:$0xff]
      %v3743 = vld [vmem:[%s6 + $0x4bc] sm:$0xff]
      %v3744 = vld [vmem:[%s6 + $0x4c4] sm:$0xff]
      %v3745 = vld [vmem:[%s6 + $0x4cc] sm:$0xf]
      %v3746 = vld [vmem:[%s6 + $0x4d0] sm:$0xff]
      %v3747 = vld [vmem:[%s6 + $0x4d8] sm:$0xff]
      %v3748 = vld [vmem:[%s6 + $0x4e0] sm:$0xff]
      %v3749 = vld [vmem:[%s6 + $0x4e8] sm:$0xf]
      %v3750 = vld [vmem:[%s6 + $0x4ec] sm:$0xff]
      %v3751 = vld [vmem:[%s6 + $0x4f4] sm:$0xff]
      %v3752 = vld [vmem:[%s6 + $0x4fc] sm:$0xff]
      %v3753 = vld [vmem:[%s6 + $0x504] sm:$0xf]
      %v3754 = vld [vmem:[%s6 + $0x508] sm:$0xff]
      %v3755 = vld [vmem:[%s6 + $0x510] sm:$0xff]
      %v3756 = vld [vmem:[%s6 + $0x518] sm:$0xff]
      %v3757 = vld [vmem:[%s6 + $0x520] sm:$0xf]
      %v3758 = vld [vmem:[%s6 + $0x524] sm:$0xff]
      %v3759 = vld [vmem:[%s6 + $0x52c] sm:$0xff]
      %v3760 = vld [vmem:[%s6 + $0x534] sm:$0xff]
      %v3761 = vld [vmem:[%s6 + $0x53c] sm:$0xf]
      %v3762 = vld [vmem:[%s6 + $0x540] sm:$0xff]
      %v3763 = vld [vmem:[%s6 + $0x548] sm:$0xff]
      %v3764 = vld [vmem:[%s6 + $0x550] sm:$0xff]
      %v3765 = vld [vmem:[%s6 + $0x558] sm:$0xf]
      %v3766 = vld [vmem:[%s6 + $0x55c] sm:$0xff]
      %v3767 = vld [vmem:[%s6 + $0x564] sm:$0xff]
      %v3768 = vld [vmem:[%s6 + $0x56c] sm:$0xff]
      %v3769 = vld [vmem:[%s6 + $0x574] sm:$0xf]
      %v3770 = vld [vmem:[%s6 + $0x578] sm:$0xff]
      %v3771 = vld [vmem:[%s6 + $0x580] sm:$0xff]
      %v3772 = vld [vmem:[%s6 + $0x588] sm:$0xff]
      %v3773 = vld [vmem:[%s6 + $0x590] sm:$0xf]
      %v3774 = vld [vmem:[%s6 + $0x594] sm:$0xff]
      %v3775 = vld [vmem:[%s6 + $0x59c] sm:$0xff]
      %v3776 = vld [vmem:[%s6 + $0x5a4] sm:$0xff]
      %v3777 = vld [vmem:[%s6 + $0x5ac] sm:$0xf]
      %v3778 = vld [vmem:[%s6 + $0x5b0] sm:$0xff]
      %v3779 = vld [vmem:[%s6 + $0x5b8] sm:$0xff]
      %v3780 = vld [vmem:[%s6 + $0x5c0] sm:$0xff]
      %v3781 = vld [vmem:[%s6 + $0x5c8] sm:$0xf]
      %v3782 = vld [vmem:[%s6 + $0x5cc] sm:$0xff]
      %v3783 = vld [vmem:[%s6 + $0x5d4] sm:$0xff]
      %v3784 = vld [vmem:[%s6 + $0x5dc] sm:$0xff]
      %v3785 = vld [vmem:[%s6 + $0x5e4] sm:$0xf]
      %v3786 = vld [vmem:[%s6 + $0x5e8] sm:$0xff]
      %v3787 = vld [vmem:[%s6 + $0x5f0] sm:$0xff]
      %v3788 = vld [vmem:[%s6 + $0x5f8] sm:$0xff]
      %v3789 = vld [vmem:[%s6 + $0x600] sm:$0xf]
      %v3790 = vld [vmem:[%s6 + $0x604] sm:$0xff]
      %v3791 = vld [vmem:[%s6 + $0x60c] sm:$0xff]
      %v3792 = vld [vmem:[%s6 + $0x614] sm:$0xff]
      %v3793 = vld [vmem:[%s6 + $0x61c] sm:$0xf]
      %v3794 = vld [vmem:[%s6 + $0x620] sm:$0xff]
      %v3795 = vld [vmem:[%s6 + $0x628] sm:$0xff]
      %v3796 = vld [vmem:[%s6 + $0x630] sm:$0xff]
      %v3797 = vld [vmem:[%s6 + $0x638] sm:$0xf]
      %v3798 = vld [vmem:[%s6 + $0x63c] sm:$0xff]
      %v3799 = vld [vmem:[%s6 + $0x644] sm:$0xff]
      %v3800 = vld [vmem:[%s6 + $0x64c] sm:$0xff]
      %v3801 = vld [vmem:[%s6 + $0x654] sm:$0xf]
      %v3802 = vld [vmem:[%s6 + $0x658] sm:$0xff]
      %v3803 = vld [vmem:[%s6 + $0x660] sm:$0xff]
      %v3804 = vld [vmem:[%s6 + $0x668] sm:$0xff]
      %v3805 = vld [vmem:[%s6 + $0x670] sm:$0xf]
      %v3806 = vld [vmem:[%s6 + $0x674] sm:$0xff]
      %v3807 = vld [vmem:[%s6 + $0x67c] sm:$0xff]
      %v3808 = vld [vmem:[%s6 + $0x684] sm:$0xff]
      %v3809 = vld [vmem:[%s6 + $0x68c] sm:$0xf]
      %v3810 = vld [vmem:[%s6 + $0x690] sm:$0xff]
      %v3811 = vld [vmem:[%s6 + $0x698] sm:$0xff]
      %v3812 = vld [vmem:[%s6 + $0x6a0] sm:$0xff]
      %v3813 = vld [vmem:[%s6 + $0x6a8] sm:$0xf]
      %v3814 = vld [vmem:[%s6 + $0x6ac] sm:$0xff]
      %v3815 = vld [vmem:[%s6 + $0x6b4] sm:$0xff]
      %v3816 = vld [vmem:[%s6 + $0x6bc] sm:$0xff]
      %v3817 = vld [vmem:[%s6 + $0x6c4] sm:$0xf]
      %v3818 = vld [vmem:[%s6 + $0x6c8] sm:$0xff]
      %v3819 = vld [vmem:[%s6 + $0x6d0] sm:$0xff]
      %v3820 = vld [vmem:[%s6 + $0x6d8] sm:$0xff]
      %v3821 = vld [vmem:[%s6 + $0x6e0] sm:$0xf]
      %v3822 = vld [vmem:[%s6 + $0x6e4] sm:$0xff]
      %v3823 = vld [vmem:[%s6 + $0x6ec] sm:$0xff]
      %v3824 = vld [vmem:[%s6 + $0x6f4] sm:$0xff]
      %v3825 = vld [vmem:[%s6 + $0x6fc] sm:$0xf]
      %v3826 = vld [vmem:[%s6 + $0x700] sm:$0xff]
      %v3827 = vld [vmem:[%s6 + $0x708] sm:$0xff]
      %v3828 = vld [vmem:[%s6 + $0x710] sm:$0xff]
      %v3829 = vld [vmem:[%s6 + $0x718] sm:$0xf]
      %v3830 = vld [vmem:[%s6 + $0x71c] sm:$0xff]
      %v3831 = vld [vmem:[%s6 + $0x724] sm:$0xff]
      %v3832 = vld [vmem:[%s6 + $0x72c] sm:$0xff]
      %v3833 = vld [vmem:[%s6 + $0x734] sm:$0xf]
      %v3834 = vld [vmem:[%s6 + $0x738] sm:$0xff]
      %v3835 = vld [vmem:[%s6 + $0x740] sm:$0xff]
      %v3836 = vld [vmem:[%s6 + $0x748] sm:$0xff]
      %v3837 = vld [vmem:[%s6 + $0x750] sm:$0xf]
      %v3838 = vld [vmem:[%s6 + $0x754] sm:$0xff]
      %v3839 = vld [vmem:[%s6 + $0x75c] sm:$0xff]
      %v3840 = vld [vmem:[%s6 + $0x764] sm:$0xff]
      %v3841 = vld [vmem:[%s6 + $0x76c] sm:$0xf]
      %v3842 = vld [vmem:[%s6 + $0x770] sm:$0xff]
      %v3843 = vld [vmem:[%s6 + $0x778] sm:$0xff]
      %v3844 = vld [vmem:[%s6 + $0x780] sm:$0xff]
      %v3845 = vld [vmem:[%s6 + $0x788] sm:$0xf]
      %v3846 = vld [vmem:[%s6 + $0x78c] sm:$0xff]
      %v3847 = vld [vmem:[%s6 + $0x794] sm:$0xff]
      %v3848 = vld [vmem:[%s6 + $0x79c] sm:$0xff]
      %v3849 = vld [vmem:[%s6 + $0x7a4] sm:$0xf]
      %v3850 = vld [vmem:[%s6 + $0x7a8] sm:$0xff]
      %v3851 = vld [vmem:[%s6 + $0x7b0] sm:$0xff]
      %v3852 = vld [vmem:[%s6 + $0x7b8] sm:$0xff]
      %v3853 = vld [vmem:[%s6 + $0x7c0] sm:$0xf]
      %v3854 = vld [vmem:[%s6 + $0x7c4] sm:$0xff]
      %v3855 = vld [vmem:[%s6 + $0x7cc] sm:$0xff]
      %v3856 = vld [vmem:[%s6 + $0x7d4] sm:$0xff]
      %v3857 = vld [vmem:[%s6 + $0x7dc] sm:$0xf]
      %v3858 = vld [vmem:[%s6 + $0x7e0] sm:$0xff]
      %v3859 = vld [vmem:[%s6 + $0x7e8] sm:$0xff]
      %v3860 = vld [vmem:[%s6 + $0x7f0] sm:$0xff]
      %v3861 = vld [vmem:[%s6 + $0x7f8] sm:$0xf]
      %v3862 = vld [vmem:[%s6 + $0x7fc] sm:$0xff]
      %v3863 = vld [vmem:[%s6 + $0x804] sm:$0xff]
      %v3864 = vld [vmem:[%s6 + $0x80c] sm:$0xff]
      %v3865 = vld [vmem:[%s6 + $0x814] sm:$0xf]
      %v3866 = vld [vmem:[%s6 + $0x818] sm:$0xff]
      %v3867 = vld [vmem:[%s6 + $0x820] sm:$0xff]
      %v3868 = vld [vmem:[%s6 + $0x828] sm:$0xff]
      %v3869 = vld [vmem:[%s6 + $0x830] sm:$0xf]
      %v3870 = vld [vmem:[%s6 + $0x834] sm:$0xff]
      %v3871 = vld [vmem:[%s6 + $0x83c] sm:$0xff]
      %v3872 = vld [vmem:[%s6 + $0x844] sm:$0xff]
      %v3873 = vld [vmem:[%s6 + $0x84c] sm:$0xf]
      %v3874 = vld [vmem:[%s6 + $0x850] sm:$0xff]
      %v3875 = vld [vmem:[%s6 + $0x858] sm:$0xff]
      %v3876 = vld [vmem:[%s6 + $0x860] sm:$0xff]
      %v3877 = vld [vmem:[%s6 + $0x868] sm:$0xf]
      %v3878 = vld [vmem:[%s6 + $0x86c] sm:$0xff]
      %v3879 = vld [vmem:[%s6 + $0x874] sm:$0xff]
      %v3880 = vld [vmem:[%s6 + $0x87c] sm:$0xff]
      %v3881 = vld [vmem:[%s6 + $0x884] sm:$0xf]
      %v3882 = vld [vmem:[%s6 + $0x888] sm:$0xff]
      %v3883 = vld [vmem:[%s6 + $0x890] sm:$0xff]
      %v3884 = vld [vmem:[%s6 + $0x898] sm:$0xff]
      %v3885 = vld [vmem:[%s6 + $0x8a0] sm:$0xf]
      %v3886 = vld [vmem:[%s6 + $0x8a4] sm:$0xff]
      %v3887 = vld [vmem:[%s6 + $0x8ac] sm:$0xff]
      %v3888 = vld [vmem:[%s6 + $0x8b4] sm:$0xff]
      %v3889 = vld [vmem:[%s6 + $0x8bc] sm:$0xf]
      %v3890 = vld [vmem:[%s6 + $0x8c0] sm:$0xff]
      %v3891 = vld [vmem:[%s6 + $0x8c8] sm:$0xff]
      %v3892 = vld [vmem:[%s6 + $0x8d0] sm:$0xff]
      %v3893 = vld [vmem:[%s6 + $0x8d8] sm:$0xf]
      %v3894 = vld [vmem:[%s6 + $0x8dc] sm:$0xff]
      %v3895 = vld [vmem:[%s6 + $0x8e4] sm:$0xff]
      %v3896 = vld [vmem:[%s6 + $0x8ec] sm:$0xff]
      %v3897 = vld [vmem:[%s6 + $0x8f4] sm:$0xf]
      %v3898 = vld [vmem:[%s6 + $0x8f8] sm:$0xff]
      %v3899 = vld [vmem:[%s6 + $0x900] sm:$0xff]
      %v3900 = vld [vmem:[%s6 + $0x908] sm:$0xff]
      %v3901 = vld [vmem:[%s6 + $0x910] sm:$0xf]
      %v3902 = vld [vmem:[%s6 + $0x914] sm:$0xff]
      %v3903 = vld [vmem:[%s6 + $0x91c] sm:$0xff]
      %v3904 = vld [vmem:[%s6 + $0x924] sm:$0xff]
      %v3905 = vld [vmem:[%s6 + $0x92c] sm:$0xf]
      %v3906 = vld [vmem:[%s6 + $0x930] sm:$0xff]
      %v3907 = vld [vmem:[%s6 + $0x938] sm:$0xff]
      %v3908 = vld [vmem:[%s6 + $0x940] sm:$0xff]
      %v3909 = vld [vmem:[%s6 + $0x948] sm:$0xf]
      %v3910 = vld [vmem:[%s6 + $0x94c] sm:$0xff]
      %v3911 = vld [vmem:[%s6 + $0x954] sm:$0xff]
      %v3912 = vld [vmem:[%s6 + $0x95c] sm:$0xff]
      %v3913 = vld [vmem:[%s6 + $0x964] sm:$0xf]
      %v3914 = vld [vmem:[%s6 + $0x968] sm:$0xff]
      %v3915 = vld [vmem:[%s6 + $0x970] sm:$0xff]
      %v3916 = vld [vmem:[%s6 + $0x978] sm:$0xff]
      %v3917 = vld [vmem:[%s6 + $0x980] sm:$0xf]
      %v3918 = vld [vmem:[%s6 + $0x984] sm:$0xff]
      %v3919 = vld [vmem:[%s6 + $0x98c] sm:$0xff]
      %v3920 = vld [vmem:[%s6 + $0x994] sm:$0xff]
      %v3921 = vld [vmem:[%s6 + $0x99c] sm:$0xf]
      %v3922 = vld [vmem:[%s6 + $0x9a0] sm:$0xff]
      %v3923 = vld [vmem:[%s6 + $0x9a8] sm:$0xff]
      %v3924 = vld [vmem:[%s6 + $0x9b0] sm:$0xff]
      %v3925 = vld [vmem:[%s6 + $0x9b8] sm:$0xf]
      %v3926 = vld [vmem:[%s6 + $0x9bc] sm:$0xff]
      %v3927 = vld [vmem:[%s6 + $0x9c4] sm:$0xff]
      %v3928 = vld [vmem:[%s6 + $0x9cc] sm:$0xff]
      %v3929 = vld [vmem:[%s6 + $0x9d4] sm:$0xf]
      %v3930 = vld [vmem:[%s6 + $0x9d8] sm:$0xff]
      %v3931 = vld [vmem:[%s6 + $0x9e0] sm:$0xff]
      %v3932 = vld [vmem:[%s6 + $0x9e8] sm:$0xff]
      %v3933 = vld [vmem:[%s6 + $0x9f0] sm:$0xf]
      %v3934 = vld [vmem:[%s6 + $0x9f4] sm:$0xff]
      %v3935 = vld [vmem:[%s6 + $0x9fc] sm:$0xff]
      %v3936 = vld [vmem:[%s6 + $0xa04] sm:$0xff]
      %v3937 = vld [vmem:[%s6 + $0xa0c] sm:$0xf]
      %v3938 = vld [vmem:[%s6 + $0xa10] sm:$0xff]
      %v3939 = vld [vmem:[%s6 + $0xa18] sm:$0xff]
      %v3940 = vld [vmem:[%s6 + $0xa20] sm:$0xff]
      %v3941 = vld [vmem:[%s6 + $0xa28] sm:$0xf]
      %v3942 = vld [vmem:[%s6 + $0xa2c] sm:$0xff]
      %v3943 = vld [vmem:[%s6 + $0xa34] sm:$0xff]
      %v3944 = vld [vmem:[%s6 + $0xa3c] sm:$0xff]
      %v3945 = vld [vmem:[%s6 + $0xa44] sm:$0xf]
      %v3946 = vld [vmem:[%s6 + $0xa48] sm:$0xff]
      %v3947 = vld [vmem:[%s6 + $0xa50] sm:$0xff]
      %v3948 = vld [vmem:[%s6 + $0xa58] sm:$0xff]
      %v3949 = vld [vmem:[%s6 + $0xa60] sm:$0xf]
      %v3950 = vld [vmem:[%s6 + $0xa64] sm:$0xff]
      %v3951 = vld [vmem:[%s6 + $0xa6c] sm:$0xff]
      %v3952 = vld [vmem:[%s6 + $0xa74] sm:$0xff]
      %v3953 = vld [vmem:[%s6 + $0xa7c] sm:$0xf]
      %v3954 = vld [vmem:[%s6 + $0xa80] sm:$0xff]
      %v3955 = vld [vmem:[%s6 + $0xa88] sm:$0xff]
      %v3956 = vld [vmem:[%s6 + $0xa90] sm:$0xff]
      %v3957 = vld [vmem:[%s6 + $0xa98] sm:$0xf]
      %v3958 = vld [vmem:[%s6 + $0xa9c] sm:$0xff]
      %v3959 = vld [vmem:[%s6 + $0xaa4] sm:$0xff]
      %v3960 = vld [vmem:[%s6 + $0xaac] sm:$0xff]
      %v3961 = vld [vmem:[%s6 + $0xab4] sm:$0xf]
      %v3962 = vld [vmem:[%s6 + $0xab8] sm:$0xff]
      %v3963 = vld [vmem:[%s6 + $0xac0] sm:$0xff]
      %v3964 = vld [vmem:[%s6 + $0xac8] sm:$0xff]
      %v3965 = vld [vmem:[%s6 + $0xad0] sm:$0xf]
      %v3966 = vld [vmem:[%s6 + $0xad4] sm:$0xff]
      %v3967 = vld [vmem:[%s6 + $0xadc] sm:$0xff]
      %v3968 = vld [vmem:[%s6 + $0xae4] sm:$0xff]
      %v3969 = vld [vmem:[%s6 + $0xaec] sm:$0xf]
      %v3970 = vld [vmem:[%s6 + $0xaf0] sm:$0xff]
      %v3971 = vld [vmem:[%s6 + $0xaf8] sm:$0xff]
      %v3972 = vld [vmem:[%s6 + $0xb00] sm:$0xff]
      %v3973 = vld [vmem:[%s6 + $0xb08] sm:$0xf]
      %v3974 = vld [vmem:[%s6 + $0xb0c] sm:$0xff]
      %v3975 = vld [vmem:[%s6 + $0xb14] sm:$0xff]
      %v3976 = vld [vmem:[%s6 + $0xb1c] sm:$0xff]
      %v3977 = vld [vmem:[%s6 + $0xb24] sm:$0xf]
      %v3978 = vld [vmem:[%s6 + $0xb28] sm:$0xff]
      %v3979 = vld [vmem:[%s6 + $0xb30] sm:$0xff]
      %v3980 = vld [vmem:[%s6 + $0xb38] sm:$0xff]
      %v3981 = vld [vmem:[%s6 + $0xb40] sm:$0xf]
      %v3982 = vld [vmem:[%s6 + $0xb44] sm:$0xff]
      %v3983 = vld [vmem:[%s6 + $0xb4c] sm:$0xff]
      %v3984 = vld [vmem:[%s6 + $0xb54] sm:$0xff]
      %v3985 = vld [vmem:[%s6 + $0xb5c] sm:$0xf]
      %v3986 = vld [vmem:[%s6 + $0xb60] sm:$0xff]
      %v3987 = vld [vmem:[%s6 + $0xb68] sm:$0xff]
      %v3988 = vld [vmem:[%s6 + $0xb70] sm:$0xff]
      %v3989 = vld [vmem:[%s6 + $0xb78] sm:$0xf]
      %v3990 = vld [vmem:[%s6 + $0xb7c] sm:$0xff]
      %v3991 = vld [vmem:[%s6 + $0xb84] sm:$0xff]
      %v3992 = vld [vmem:[%s6 + $0xb8c] sm:$0xff]
      %v3993 = vld [vmem:[%s6 + $0xb94] sm:$0xf]
      %v3994 = vld [vmem:[%s6 + $0xb98] sm:$0xff]
      %v3995 = vld [vmem:[%s6 + $0xba0] sm:$0xff]
      %v3996 = vld [vmem:[%s6 + $0xba8] sm:$0xff]
      %v3997 = vld [vmem:[%s6 + $0xbb0] sm:$0xf]
      %v3998 = vld [vmem:[%s6 + $0xbb4] sm:$0xff]
      %v3999 = vld [vmem:[%s6 + $0xbbc] sm:$0xff]
      %v4000 = vld [vmem:[%s6 + $0xbc4] sm:$0xff]
      %v4001 = vld [vmem:[%s6 + $0xbcc] sm:$0xf]
      %v4002 = vld [vmem:[%s6 + $0xbd0] sm:$0xff]
      %v4003 = vld [vmem:[%s6 + $0xbd8] sm:$0xff]
      %v4004 = vld [vmem:[%s6 + $0xbe0] sm:$0xff]
      %v4005 = vld [vmem:[%s6 + $0xbe8] sm:$0xf]
      %v4006 = vld [vmem:[%s6 + $0xbec] sm:$0xff]
      %v4007 = vld [vmem:[%s6 + $0xbf4] sm:$0xff]
      %v4008 = vld [vmem:[%s6 + $0xbfc] sm:$0xff]
      %v4009 = vld [vmem:[%s6 + $0xc04] sm:$0xf]
      %v4010 = vld [vmem:[%s6 + $0xc08] sm:$0xff]
      %v4011 = vld [vmem:[%s6 + $0xc10] sm:$0xff]
      %v4012 = vld [vmem:[%s6 + $0xc18] sm:$0xff]
      %v4013 = vld [vmem:[%s6 + $0xc20] sm:$0xf]
      %v4014 = vld [vmem:[%s6 + $0xc24] sm:$0xff]
      %v4015 = vld [vmem:[%s6 + $0xc2c] sm:$0xff]
      %v4016 = vld [vmem:[%s6 + $0xc34] sm:$0xff]
      %v4017 = vld [vmem:[%s6 + $0xc3c] sm:$0xf]
      %v4018 = vld [vmem:[%s6 + $0xc40] sm:$0xff]
      %v4019 = vld [vmem:[%s6 + $0xc48] sm:$0xff]
      %v4020 = vld [vmem:[%s6 + $0xc50] sm:$0xff]
      %v4021 = vld [vmem:[%s6 + $0xc58] sm:$0xf]
      %v4022 = vld [vmem:[%s6 + $0xc5c] sm:$0xff]
      %v4023 = vld [vmem:[%s6 + $0xc64] sm:$0xff]
      %v4024 = vld [vmem:[%s6 + $0xc6c] sm:$0xff]
      %v4025 = vld [vmem:[%s6 + $0xc74] sm:$0xf]
      %v4026 = vld [vmem:[%s6 + $0xc78] sm:$0xff]
      %v4027 = vld [vmem:[%s6 + $0xc80] sm:$0xff]
      %v4028 = vld [vmem:[%s6 + $0xc88] sm:$0xff]
      %v4029 = vld [vmem:[%s6 + $0xc90] sm:$0xf]
      %v4030 = vld [vmem:[%s6 + $0xc94] sm:$0xff]
      %v4031 = vld [vmem:[%s6 + $0xc9c] sm:$0xff]
      %v4032 = vld [vmem:[%s6 + $0xca4] sm:$0xff]
      %v4033 = vld [vmem:[%s6 + $0xcac] sm:$0xf]
      %v4034 = vld [vmem:[%s6 + $0xcb0] sm:$0xff]
      %v4035 = vld [vmem:[%s6 + $0xcb8] sm:$0xff]
      %v4036 = vld [vmem:[%s6 + $0xcc0] sm:$0xff]
      %v4037 = vld [vmem:[%s6 + $0xcc8] sm:$0xf]
      %v4038 = vld [vmem:[%s6 + $0xccc] sm:$0xff]
      %v4039 = vld [vmem:[%s6 + $0xcd4] sm:$0xff]
      %v4040 = vld [vmem:[%s6 + $0xcdc] sm:$0xff]
      %v4041 = vld [vmem:[%s6 + $0xce4] sm:$0xf]
      %v4042 = vld [vmem:[%s6 + $0xce8] sm:$0xff]
      %v4043 = vld [vmem:[%s6 + $0xcf0] sm:$0xff]
      %v4044 = vld [vmem:[%s6 + $0xcf8] sm:$0xff]
      %v4045 = vld [vmem:[%s6 + $0xd00] sm:$0xf]
      %v4046 = vld [vmem:[%s6 + $0xd04] sm:$0xff]
      %v4047 = vld [vmem:[%s6 + $0xd0c] sm:$0xff]
      %v4048 = vld [vmem:[%s6 + $0xd14] sm:$0xff]
      %v4049 = vld [vmem:[%s6 + $0xd1c] sm:$0xf]
      %v4050 = vld [vmem:[%s6 + $0xd20] sm:$0xff]
      %v4051 = vld [vmem:[%s6 + $0xd28] sm:$0xff]
      %v4052 = vld [vmem:[%s6 + $0xd30] sm:$0xff]
      %v4053 = vld [vmem:[%s6 + $0xd38] sm:$0xf]
      %v4054 = vld [vmem:[%s6 + $0xd3c] sm:$0xff]
      %v4055 = vld [vmem:[%s6 + $0xd44] sm:$0xff]
      %v4056 = vld [vmem:[%s6 + $0xd4c] sm:$0xff]
      %v4057 = vld [vmem:[%s6 + $0xd54] sm:$0xf]
      %v4058 = vld [vmem:[%s6 + $0xd58] sm:$0xff]
      %v4059 = vld [vmem:[%s6 + $0xd60] sm:$0xff]
      %v4060 = vld [vmem:[%s6 + $0xd68] sm:$0xff]
      %v4061 = vld [vmem:[%s6 + $0xd70] sm:$0xf]
      %v4062 = vld [vmem:[%s6 + $0xd74] sm:$0xff]
      %v4063 = vld [vmem:[%s6 + $0xd7c] sm:$0xff]
      %v4064 = vld [vmem:[%s6 + $0xd84] sm:$0xff]
      %v4065 = vld [vmem:[%s6 + $0xd8c] sm:$0xf]
      %v4066 = vld [vmem:[%s6 + $0xd90] sm:$0xff]
      %v4067 = vld [vmem:[%s6 + $0xd98] sm:$0xff]
      %v4068 = vld [vmem:[%s6 + $0xda0] sm:$0xff]
      %v4069 = vld [vmem:[%s6 + $0xda8] sm:$0xf]
      %v4070 = vld [vmem:[%s6 + $0xdac] sm:$0xff]
      %v4071 = vld [vmem:[%s6 + $0xdb4] sm:$0xff]
      %v4072 = vld [vmem:[%s6 + $0xdbc] sm:$0xff]
      %v4073 = vld [vmem:[%s6 + $0xdc4] sm:$0xf]
      %v4074 = vld [vmem:[%s6 + $0xdc8] sm:$0xff]
      %v4075 = vld [vmem:[%s6 + $0xdd0] sm:$0xff]
      %v4076 = vld [vmem:[%s6 + $0xdd8] sm:$0xff]
      %v4077 = vld [vmem:[%s6 + $0xde0] sm:$0xf]
      %v4078 = vld [vmem:[%s6 + $0xde4] sm:$0xff]
      %v4079 = vld [vmem:[%s6 + $0xdec] sm:$0xff]
      %v4080 = vld [vmem:[%s6 + $0xdf4] sm:$0xff]
      %v4081 = vld [vmem:[%s6 + $0xdfc] sm:$0xf]
      %v4082 = vld [vmem:[%s1 + $0x1d] sm:$0x7f]
      %v4084 = vperm.slane %v4082, 0
      %v4085 = vperm.slane %v4082, 1
      %v4086 = vperm.slane %v4082, 2
      %v4087 = vperm.slane %v4082, 3
      %v4088 = vperm.slane %v4082, 4
      %v4089 = vperm.slane %v4082, 5
      %v4090 = vperm.slane %v4082, 6
      %v4610 = vunpack.c.l.b16 %v3570
      %v4611 = vunpack.c.h.b16 %v3570
      %v4612 = vunpack.c.l.b16 %v3571
      %v4613 = vunpack.c.h.b16 %v3571
      %v4614 = vunpack.c.l.b16 %v3572
      %v4615 = vunpack.c.h.b16 %v3572
      %v4616 = vunpack.c.l.b16 %v3573
      %v4617 = vunpack.c.l.b16 %v3574
      %v4618 = vunpack.c.h.b16 %v3574
      %v4619 = vunpack.c.l.b16 %v3575
      %v4620 = vunpack.c.h.b16 %v3575
      %v4621 = vunpack.c.l.b16 %v3576
      %v4622 = vunpack.c.h.b16 %v3576
      %v4623 = vunpack.c.l.b16 %v3577
      %v4624 = vunpack.c.l.b16 %v3578
      %v4625 = vunpack.c.h.b16 %v3578
      %v4626 = vunpack.c.l.b16 %v3579
      %v4627 = vunpack.c.h.b16 %v3579
      %v4628 = vunpack.c.l.b16 %v3580
      %v4629 = vunpack.c.h.b16 %v3580
      %v4630 = vunpack.c.l.b16 %v3581
      %v4631 = vunpack.c.l.b16 %v3582
      %v4632 = vunpack.c.h.b16 %v3582
      %v4633 = vunpack.c.l.b16 %v3583
      %v4634 = vunpack.c.h.b16 %v3583
      %v4635 = vunpack.c.l.b16 %v3584
      %v4636 = vunpack.c.h.b16 %v3584
      %v4637 = vunpack.c.l.b16 %v3585
      %v4638 = vunpack.c.l.b16 %v3586
      %v4639 = vunpack.c.h.b16 %v3586
      %v4640 = vunpack.c.l.b16 %v3587
      %v4641 = vunpack.c.h.b16 %v3587
      %v4642 = vunpack.c.l.b16 %v3588
      %v4643 = vunpack.c.h.b16 %v3588
      %v4644 = vunpack.c.l.b16 %v3589
      %v4645 = vunpack.c.l.b16 %v3590
      %v4646 = vunpack.c.h.b16 %v3590
      %v4647 = vunpack.c.l.b16 %v3591
      %v4648 = vunpack.c.h.b16 %v3591
      %v4649 = vunpack.c.l.b16 %v3592
      %v4650 = vunpack.c.h.b16 %v3592
      %v4651 = vunpack.c.l.b16 %v3593
      %v4652 = vunpack.c.l.b16 %v3594
      %v4653 = vunpack.c.h.b16 %v3594
      %v4654 = vunpack.c.l.b16 %v3595
      %v4655 = vunpack.c.h.b16 %v3595
      %v4656 = vunpack.c.l.b16 %v3596
      %v4657 = vunpack.c.h.b16 %v3596
      %v4658 = vunpack.c.l.b16 %v3597
      %v4659 = vunpack.c.l.b16 %v3598
      %v4660 = vunpack.c.h.b16 %v3598
      %v4661 = vunpack.c.l.b16 %v3599
      %v4662 = vunpack.c.h.b16 %v3599
      %v4663 = vunpack.c.l.b16 %v3600
      %v4664 = vunpack.c.h.b16 %v3600
      %v4665 = vunpack.c.l.b16 %v3601
      %v4666 = vunpack.c.l.b16 %v3602
      %v4667 = vunpack.c.h.b16 %v3602
      %v4668 = vunpack.c.l.b16 %v3603
      %v4669 = vunpack.c.h.b16 %v3603
      %v4670 = vunpack.c.l.b16 %v3604
      %v4671 = vunpack.c.h.b16 %v3604
      %v4672 = vunpack.c.l.b16 %v3605
      %v4673 = vunpack.c.l.b16 %v3606
      %v4674 = vunpack.c.h.b16 %v3606
      %v4675 = vunpack.c.l.b16 %v3607
      %v4676 = vunpack.c.h.b16 %v3607
      %v4677 = vunpack.c.l.b16 %v3608
      %v4678 = vunpack.c.h.b16 %v3608
      %v4679 = vunpack.c.l.b16 %v3609
      %v4680 = vunpack.c.l.b16 %v3610
      %v4681 = vunpack.c.h.b16 %v3610
      %v4682 = vunpack.c.l.b16 %v3611
      %v4683 = vunpack.c.h.b16 %v3611
      %v4684 = vunpack.c.l.b16 %v3612
      %v4685 = vunpack.c.h.b16 %v3612
      %v4686 = vunpack.c.l.b16 %v3613
      %v4687 = vunpack.c.l.b16 %v3614
      %v4688 = vunpack.c.h.b16 %v3614
      %v4689 = vunpack.c.l.b16 %v3615
      %v4690 = vunpack.c.h.b16 %v3615
      %v4691 = vunpack.c.l.b16 %v3616
      %v4692 = vunpack.c.h.b16 %v3616
      %v4693 = vunpack.c.l.b16 %v3617
      %v4694 = vunpack.c.l.b16 %v3618
      %v4695 = vunpack.c.h.b16 %v3618
      %v4696 = vunpack.c.l.b16 %v3619
      %v4697 = vunpack.c.h.b16 %v3619
      %v4698 = vunpack.c.l.b16 %v3620
      %v4699 = vunpack.c.h.b16 %v3620
      %v4700 = vunpack.c.l.b16 %v3621
      %v4701 = vunpack.c.l.b16 %v3622
      %v4702 = vunpack.c.h.b16 %v3622
      %v4703 = vunpack.c.l.b16 %v3623
      %v4704 = vunpack.c.h.b16 %v3623
      %v4705 = vunpack.c.l.b16 %v3624
      %v4706 = vunpack.c.h.b16 %v3624
      %v4707 = vunpack.c.l.b16 %v3625
      %v4708 = vunpack.c.l.b16 %v3626
      %v4709 = vunpack.c.h.b16 %v3626
      %v4710 = vunpack.c.l.b16 %v3627
      %v4711 = vunpack.c.h.b16 %v3627
      %v4712 = vunpack.c.l.b16 %v3628
      %v4713 = vunpack.c.h.b16 %v3628
      %v4714 = vunpack.c.l.b16 %v3629
      %v4715 = vunpack.c.l.b16 %v3630
      %v4716 = vunpack.c.h.b16 %v3630
      %v4717 = vunpack.c.l.b16 %v3631
      %v4718 = vunpack.c.h.b16 %v3631
      %v4719 = vunpack.c.l.b16 %v3632
      %v4720 = vunpack.c.h.b16 %v3632
      %v4721 = vunpack.c.l.b16 %v3633
      %v4722 = vunpack.c.l.b16 %v3634
      %v4723 = vunpack.c.h.b16 %v3634
      %v4724 = vunpack.c.l.b16 %v3635
      %v4725 = vunpack.c.h.b16 %v3635
      %v4726 = vunpack.c.l.b16 %v3636
      %v4727 = vunpack.c.h.b16 %v3636
      %v4728 = vunpack.c.l.b16 %v3637
      %v4729 = vunpack.c.l.b16 %v3638
      %v4730 = vunpack.c.h.b16 %v3638
      %v4731 = vunpack.c.l.b16 %v3639
      %v4732 = vunpack.c.h.b16 %v3639
      %v4733 = vunpack.c.l.b16 %v3640
      %v4734 = vunpack.c.h.b16 %v3640
      %v4735 = vunpack.c.l.b16 %v3641
      %v4736 = vunpack.c.l.b16 %v3642
      %v4737 = vunpack.c.h.b16 %v3642
      %v4738 = vunpack.c.l.b16 %v3643
      %v4739 = vunpack.c.h.b16 %v3643
      %v4740 = vunpack.c.l.b16 %v3644
      %v4741 = vunpack.c.h.b16 %v3644
      %v4742 = vunpack.c.l.b16 %v3645
      %v4743 = vunpack.c.l.b16 %v3646
      %v4744 = vunpack.c.h.b16 %v3646
      %v4745 = vunpack.c.l.b16 %v3647
      %v4746 = vunpack.c.h.b16 %v3647
      %v4747 = vunpack.c.l.b16 %v3648
      %v4748 = vunpack.c.h.b16 %v3648
      %v4749 = vunpack.c.l.b16 %v3649
      %v4750 = vunpack.c.l.b16 %v3650
      %v4751 = vunpack.c.h.b16 %v3650
      %v4752 = vunpack.c.l.b16 %v3651
      %v4753 = vunpack.c.h.b16 %v3651
      %v4754 = vunpack.c.l.b16 %v3652
      %v4755 = vunpack.c.h.b16 %v3652
      %v4756 = vunpack.c.l.b16 %v3653
      %v4757 = vunpack.c.l.b16 %v3654
      %v4758 = vunpack.c.h.b16 %v3654
      %v4759 = vunpack.c.l.b16 %v3655
      %v4760 = vunpack.c.h.b16 %v3655
      %v4761 = vunpack.c.l.b16 %v3656
      %v4762 = vunpack.c.h.b16 %v3656
      %v4763 = vunpack.c.l.b16 %v3657
      %v4764 = vunpack.c.l.b16 %v3658
      %v4765 = vunpack.c.h.b16 %v3658
      %v4766 = vunpack.c.l.b16 %v3659
      %v4767 = vunpack.c.h.b16 %v3659
      %v4768 = vunpack.c.l.b16 %v3660
      %v4769 = vunpack.c.h.b16 %v3660
      %v4770 = vunpack.c.l.b16 %v3661
      %v4771 = vunpack.c.l.b16 %v3662
      %v4772 = vunpack.c.h.b16 %v3662
      %v4773 = vunpack.c.l.b16 %v3663
      %v4774 = vunpack.c.h.b16 %v3663
      %v4775 = vunpack.c.l.b16 %v3664
      %v4776 = vunpack.c.h.b16 %v3664
      %v4777 = vunpack.c.l.b16 %v3665
      %v4778 = vunpack.c.l.b16 %v3666
      %v4779 = vunpack.c.h.b16 %v3666
      %v4780 = vunpack.c.l.b16 %v3667
      %v4781 = vunpack.c.h.b16 %v3667
      %v4782 = vunpack.c.l.b16 %v3668
      %v4783 = vunpack.c.h.b16 %v3668
      %v4784 = vunpack.c.l.b16 %v3669
      %v4785 = vunpack.c.l.b16 %v3670
      %v4786 = vunpack.c.h.b16 %v3670
      %v4787 = vunpack.c.l.b16 %v3671
      %v4788 = vunpack.c.h.b16 %v3671
      %v4789 = vunpack.c.l.b16 %v3672
      %v4790 = vunpack.c.h.b16 %v3672
      %v4791 = vunpack.c.l.b16 %v3673
      %v4792 = vunpack.c.l.b16 %v3674
      %v4793 = vunpack.c.h.b16 %v3674
      %v4794 = vunpack.c.l.b16 %v3675
      %v4795 = vunpack.c.h.b16 %v3675
      %v4796 = vunpack.c.l.b16 %v3676
      %v4797 = vunpack.c.h.b16 %v3676
      %v4798 = vunpack.c.l.b16 %v3677
      %v4799 = vunpack.c.l.b16 %v3678
      %v4800 = vunpack.c.h.b16 %v3678
      %v4801 = vunpack.c.l.b16 %v3679
      %v4802 = vunpack.c.h.b16 %v3679
      %v4803 = vunpack.c.l.b16 %v3680
      %v4804 = vunpack.c.h.b16 %v3680
      %v4805 = vunpack.c.l.b16 %v3681
      %v4806 = vunpack.c.l.b16 %v3682
      %v4807 = vunpack.c.h.b16 %v3682
      %v4808 = vunpack.c.l.b16 %v3683
      %v4809 = vunpack.c.h.b16 %v3683
      %v4810 = vunpack.c.l.b16 %v3684
      %v4811 = vunpack.c.h.b16 %v3684
      %v4812 = vunpack.c.l.b16 %v3685
      %v4813 = vunpack.c.l.b16 %v3686
      %v4814 = vunpack.c.h.b16 %v3686
      %v4815 = vunpack.c.l.b16 %v3687
      %v4816 = vunpack.c.h.b16 %v3687
      %v4817 = vunpack.c.l.b16 %v3688
      %v4818 = vunpack.c.h.b16 %v3688
      %v4819 = vunpack.c.l.b16 %v3689
      %v4820 = vunpack.c.l.b16 %v3690
      %v4821 = vunpack.c.h.b16 %v3690
      %v4822 = vunpack.c.l.b16 %v3691
      %v4823 = vunpack.c.h.b16 %v3691
      %v4824 = vunpack.c.l.b16 %v3692
      %v4825 = vunpack.c.h.b16 %v3692
      %v4826 = vunpack.c.l.b16 %v3693
      %v4827 = vunpack.c.l.b16 %v3694
      %v4828 = vunpack.c.h.b16 %v3694
      %v4829 = vunpack.c.l.b16 %v3695
      %v4830 = vunpack.c.h.b16 %v3695
      %v4831 = vunpack.c.l.b16 %v3696
      %v4832 = vunpack.c.h.b16 %v3696
      %v4833 = vunpack.c.l.b16 %v3697
      %v4834 = vunpack.c.l.b16 %v3698
      %v4835 = vunpack.c.h.b16 %v3698
      %v4836 = vunpack.c.l.b16 %v3699
      %v4837 = vunpack.c.h.b16 %v3699
      %v4838 = vunpack.c.l.b16 %v3700
      %v4839 = vunpack.c.h.b16 %v3700
      %v4840 = vunpack.c.l.b16 %v3701
      %v4841 = vunpack.c.l.b16 %v3702
      %v4842 = vunpack.c.h.b16 %v3702
      %v4843 = vunpack.c.l.b16 %v3703
      %v4844 = vunpack.c.h.b16 %v3703
      %v4845 = vunpack.c.l.b16 %v3704
      %v4846 = vunpack.c.h.b16 %v3704
      %v4847 = vunpack.c.l.b16 %v3705
      %v4848 = vunpack.c.l.b16 %v3706
      %v4849 = vunpack.c.h.b16 %v3706
      %v4850 = vunpack.c.l.b16 %v3707
      %v4851 = vunpack.c.h.b16 %v3707
      %v4852 = vunpack.c.l.b16 %v3708
      %v4853 = vunpack.c.h.b16 %v3708
      %v4854 = vunpack.c.l.b16 %v3709
      %v4855 = vunpack.c.l.b16 %v3710
      %v4856 = vunpack.c.h.b16 %v3710
      %v4857 = vunpack.c.l.b16 %v3711
      %v4858 = vunpack.c.h.b16 %v3711
      %v4859 = vunpack.c.l.b16 %v3712
      %v4860 = vunpack.c.h.b16 %v3712
      %v4861 = vunpack.c.l.b16 %v3713
      %v4862 = vunpack.c.l.b16 %v3714
      %v4863 = vunpack.c.h.b16 %v3714
      %v4864 = vunpack.c.l.b16 %v3715
      %v4865 = vunpack.c.h.b16 %v3715
      %v4866 = vunpack.c.l.b16 %v3716
      %v4867 = vunpack.c.h.b16 %v3716
      %v4868 = vunpack.c.l.b16 %v3717
      %v4869 = vunpack.c.l.b16 %v3718
      %v4870 = vunpack.c.h.b16 %v3718
      %v4871 = vunpack.c.l.b16 %v3719
      %v4872 = vunpack.c.h.b16 %v3719
      %v4873 = vunpack.c.l.b16 %v3720
      %v4874 = vunpack.c.h.b16 %v3720
      %v4875 = vunpack.c.l.b16 %v3721
      %v4876 = vunpack.c.l.b16 %v3722
      %v4877 = vunpack.c.h.b16 %v3722
      %v4878 = vunpack.c.l.b16 %v3723
      %v4879 = vunpack.c.h.b16 %v3723
      %v4880 = vunpack.c.l.b16 %v3724
      %v4881 = vunpack.c.h.b16 %v3724
      %v4882 = vunpack.c.l.b16 %v3725
      %v4883 = vunpack.c.l.b16 %v3726
      %v4884 = vunpack.c.h.b16 %v3726
      %v4885 = vunpack.c.l.b16 %v3727
      %v4886 = vunpack.c.h.b16 %v3727
      %v4887 = vunpack.c.l.b16 %v3728
      %v4888 = vunpack.c.h.b16 %v3728
      %v4889 = vunpack.c.l.b16 %v3729
      %v4890 = vunpack.c.l.b16 %v3730
      %v4891 = vunpack.c.h.b16 %v3730
      %v4892 = vunpack.c.l.b16 %v3731
      %v4893 = vunpack.c.h.b16 %v3731
      %v4894 = vunpack.c.l.b16 %v3732
      %v4895 = vunpack.c.h.b16 %v3732
      %v4896 = vunpack.c.l.b16 %v3733
      %v4897 = vunpack.c.l.b16 %v3734
      %v4898 = vunpack.c.h.b16 %v3734
      %v4899 = vunpack.c.l.b16 %v3735
      %v4900 = vunpack.c.h.b16 %v3735
      %v4901 = vunpack.c.l.b16 %v3736
      %v4902 = vunpack.c.h.b16 %v3736
      %v4903 = vunpack.c.l.b16 %v3737
      %v4904 = vunpack.c.l.b16 %v3738
      %v4905 = vunpack.c.h.b16 %v3738
      %v4906 = vunpack.c.l.b16 %v3739
      %v4907 = vunpack.c.h.b16 %v3739
      %v4908 = vunpack.c.l.b16 %v3740
      %v4909 = vunpack.c.h.b16 %v3740
      %v4910 = vunpack.c.l.b16 %v3741
      %v4911 = vunpack.c.l.b16 %v3742
      %v4912 = vunpack.c.h.b16 %v3742
      %v4913 = vunpack.c.l.b16 %v3743
      %v4914 = vunpack.c.h.b16 %v3743
      %v4915 = vunpack.c.l.b16 %v3744
      %v4916 = vunpack.c.h.b16 %v3744
      %v4917 = vunpack.c.l.b16 %v3745
      %v4918 = vunpack.c.l.b16 %v3746
      %v4919 = vunpack.c.h.b16 %v3746
      %v4920 = vunpack.c.l.b16 %v3747
      %v4921 = vunpack.c.h.b16 %v3747
      %v4922 = vunpack.c.l.b16 %v3748
      %v4923 = vunpack.c.h.b16 %v3748
      %v4924 = vunpack.c.l.b16 %v3749
      %v4925 = vunpack.c.l.b16 %v3750
      %v4926 = vunpack.c.h.b16 %v3750
      %v4927 = vunpack.c.l.b16 %v3751
      %v4928 = vunpack.c.h.b16 %v3751
      %v4929 = vunpack.c.l.b16 %v3752
      %v4930 = vunpack.c.h.b16 %v3752
      %v4931 = vunpack.c.l.b16 %v3753
      %v4932 = vunpack.c.l.b16 %v3754
      %v4933 = vunpack.c.h.b16 %v3754
      %v4934 = vunpack.c.l.b16 %v3755
      %v4935 = vunpack.c.h.b16 %v3755
      %v4936 = vunpack.c.l.b16 %v3756
      %v4937 = vunpack.c.h.b16 %v3756
      %v4938 = vunpack.c.l.b16 %v3757
      %v4939 = vunpack.c.l.b16 %v3758
      %v4940 = vunpack.c.h.b16 %v3758
      %v4941 = vunpack.c.l.b16 %v3759
      %v4942 = vunpack.c.h.b16 %v3759
      %v4943 = vunpack.c.l.b16 %v3760
      %v4944 = vunpack.c.h.b16 %v3760
      %v4945 = vunpack.c.l.b16 %v3761
      %v4946 = vunpack.c.l.b16 %v3762
      %v4947 = vunpack.c.h.b16 %v3762
      %v4948 = vunpack.c.l.b16 %v3763
      %v4949 = vunpack.c.h.b16 %v3763
      %v4950 = vunpack.c.l.b16 %v3764
      %v4951 = vunpack.c.h.b16 %v3764
      %v4952 = vunpack.c.l.b16 %v3765
      %v4953 = vunpack.c.l.b16 %v3766
      %v4954 = vunpack.c.h.b16 %v3766
      %v4955 = vunpack.c.l.b16 %v3767
      %v4956 = vunpack.c.h.b16 %v3767
      %v4957 = vunpack.c.l.b16 %v3768
      %v4958 = vunpack.c.h.b16 %v3768
      %v4959 = vunpack.c.l.b16 %v3769
      %v4960 = vunpack.c.l.b16 %v3770
      %v4961 = vunpack.c.h.b16 %v3770
      %v4962 = vunpack.c.l.b16 %v3771
      %v4963 = vunpack.c.h.b16 %v3771
      %v4964 = vunpack.c.l.b16 %v3772
      %v4965 = vunpack.c.h.b16 %v3772
      %v4966 = vunpack.c.l.b16 %v3773
      %v4967 = vunpack.c.l.b16 %v3774
      %v4968 = vunpack.c.h.b16 %v3774
      %v4969 = vunpack.c.l.b16 %v3775
      %v4970 = vunpack.c.h.b16 %v3775
      %v4971 = vunpack.c.l.b16 %v3776
      %v4972 = vunpack.c.h.b16 %v3776
      %v4973 = vunpack.c.l.b16 %v3777
      %v4974 = vunpack.c.l.b16 %v3778
      %v4975 = vunpack.c.h.b16 %v3778
      %v4976 = vunpack.c.l.b16 %v3779
      %v4977 = vunpack.c.h.b16 %v3779
      %v4978 = vunpack.c.l.b16 %v3780
      %v4979 = vunpack.c.h.b16 %v3780
      %v4980 = vunpack.c.l.b16 %v3781
      %v4981 = vunpack.c.l.b16 %v3782
      %v4982 = vunpack.c.h.b16 %v3782
      %v4983 = vunpack.c.l.b16 %v3783
      %v4984 = vunpack.c.h.b16 %v3783
      %v4985 = vunpack.c.l.b16 %v3784
      %v4986 = vunpack.c.h.b16 %v3784
      %v4987 = vunpack.c.l.b16 %v3785
      %v4988 = vunpack.c.l.b16 %v3786
      %v4989 = vunpack.c.h.b16 %v3786
      %v4990 = vunpack.c.l.b16 %v3787
      %v4991 = vunpack.c.h.b16 %v3787
      %v4992 = vunpack.c.l.b16 %v3788
      %v4993 = vunpack.c.h.b16 %v3788
      %v4994 = vunpack.c.l.b16 %v3789
      %v4995 = vunpack.c.l.b16 %v3790
      %v4996 = vunpack.c.h.b16 %v3790
      %v4997 = vunpack.c.l.b16 %v3791
      %v4998 = vunpack.c.h.b16 %v3791
      %v4999 = vunpack.c.l.b16 %v3792
      %v5000 = vunpack.c.h.b16 %v3792
      %v5001 = vunpack.c.l.b16 %v3793
      %v5002 = vunpack.c.l.b16 %v3794
      %v5003 = vunpack.c.h.b16 %v3794
      %v5004 = vunpack.c.l.b16 %v3795
      %v5005 = vunpack.c.h.b16 %v3795
      %v5006 = vunpack.c.l.b16 %v3796
      %v5007 = vunpack.c.h.b16 %v3796
      %v5008 = vunpack.c.l.b16 %v3797
      %v5009 = vunpack.c.l.b16 %v3798
      %v5010 = vunpack.c.h.b16 %v3798
      %v5011 = vunpack.c.l.b16 %v3799
      %v5012 = vunpack.c.h.b16 %v3799
      %v5013 = vunpack.c.l.b16 %v3800
      %v5014 = vunpack.c.h.b16 %v3800
      %v5015 = vunpack.c.l.b16 %v3801
      %v5016 = vunpack.c.l.b16 %v3802
      %v5017 = vunpack.c.h.b16 %v3802
      %v5018 = vunpack.c.l.b16 %v3803
      %v5019 = vunpack.c.h.b16 %v3803
      %v5020 = vunpack.c.l.b16 %v3804
      %v5021 = vunpack.c.h.b16 %v3804
      %v5022 = vunpack.c.l.b16 %v3805
      %v5023 = vunpack.c.l.b16 %v3806
      %v5024 = vunpack.c.h.b16 %v3806
      %v5025 = vunpack.c.l.b16 %v3807
      %v5026 = vunpack.c.h.b16 %v3807
      %v5027 = vunpack.c.l.b16 %v3808
      %v5028 = vunpack.c.h.b16 %v3808
      %v5029 = vunpack.c.l.b16 %v3809
      %v5030 = vunpack.c.l.b16 %v3810
      %v5031 = vunpack.c.h.b16 %v3810
      %v5032 = vunpack.c.l.b16 %v3811
      %v5033 = vunpack.c.h.b16 %v3811
      %v5034 = vunpack.c.l.b16 %v3812
      %v5035 = vunpack.c.h.b16 %v3812
      %v5036 = vunpack.c.l.b16 %v3813
      %v5037 = vunpack.c.l.b16 %v3814
      %v5038 = vunpack.c.h.b16 %v3814
      %v5039 = vunpack.c.l.b16 %v3815
      %v5040 = vunpack.c.h.b16 %v3815
      %v5041 = vunpack.c.l.b16 %v3816
      %v5042 = vunpack.c.h.b16 %v3816
      %v5043 = vunpack.c.l.b16 %v3817
      %v5044 = vunpack.c.l.b16 %v3818
      %v5045 = vunpack.c.h.b16 %v3818
      %v5046 = vunpack.c.l.b16 %v3819
      %v5047 = vunpack.c.h.b16 %v3819
      %v5048 = vunpack.c.l.b16 %v3820
      %v5049 = vunpack.c.h.b16 %v3820
      %v5050 = vunpack.c.l.b16 %v3821
      %v5051 = vunpack.c.l.b16 %v3822
      %v5052 = vunpack.c.h.b16 %v3822
      %v5053 = vunpack.c.l.b16 %v3823
      %v5054 = vunpack.c.h.b16 %v3823
      %v5055 = vunpack.c.l.b16 %v3824
      %v5056 = vunpack.c.h.b16 %v3824
      %v5057 = vunpack.c.l.b16 %v3825
      %v5058 = vunpack.c.l.b16 %v3826
      %v5059 = vunpack.c.h.b16 %v3826
      %v5060 = vunpack.c.l.b16 %v3827
      %v5061 = vunpack.c.h.b16 %v3827
      %v5062 = vunpack.c.l.b16 %v3828
      %v5063 = vunpack.c.h.b16 %v3828
      %v5064 = vunpack.c.l.b16 %v3829
      %v5065 = vunpack.c.l.b16 %v3830
      %v5066 = vunpack.c.h.b16 %v3830
      %v5067 = vunpack.c.l.b16 %v3831
      %v5068 = vunpack.c.h.b16 %v3831
      %v5069 = vunpack.c.l.b16 %v3832
      %v5070 = vunpack.c.h.b16 %v3832
      %v5071 = vunpack.c.l.b16 %v3833
      %v5072 = vunpack.c.l.b16 %v3834
      %v5073 = vunpack.c.h.b16 %v3834
      %v5074 = vunpack.c.l.b16 %v3835
      %v5075 = vunpack.c.h.b16 %v3835
      %v5076 = vunpack.c.l.b16 %v3836
      %v5077 = vunpack.c.h.b16 %v3836
      %v5078 = vunpack.c.l.b16 %v3837
      %v5079 = vunpack.c.l.b16 %v3838
      %v5080 = vunpack.c.h.b16 %v3838
      %v5081 = vunpack.c.l.b16 %v3839
      %v5082 = vunpack.c.h.b16 %v3839
      %v5083 = vunpack.c.l.b16 %v3840
      %v5084 = vunpack.c.h.b16 %v3840
      %v5085 = vunpack.c.l.b16 %v3841
      %v5086 = vunpack.c.l.b16 %v3842
      %v5087 = vunpack.c.h.b16 %v3842
      %v5088 = vunpack.c.l.b16 %v3843
      %v5089 = vunpack.c.h.b16 %v3843
      %v5090 = vunpack.c.l.b16 %v3844
      %v5091 = vunpack.c.h.b16 %v3844
      %v5092 = vunpack.c.l.b16 %v3845
      %v5093 = vunpack.c.l.b16 %v3846
      %v5094 = vunpack.c.h.b16 %v3846
      %v5095 = vunpack.c.l.b16 %v3847
      %v5096 = vunpack.c.h.b16 %v3847
      %v5097 = vunpack.c.l.b16 %v3848
      %v5098 = vunpack.c.h.b16 %v3848
      %v5099 = vunpack.c.l.b16 %v3849
      %v5100 = vunpack.c.l.b16 %v3850
      %v5101 = vunpack.c.h.b16 %v3850
      %v5102 = vunpack.c.l.b16 %v3851
      %v5103 = vunpack.c.h.b16 %v3851
      %v5104 = vunpack.c.l.b16 %v3852
      %v5105 = vunpack.c.h.b16 %v3852
      %v5106 = vunpack.c.l.b16 %v3853
      %v5107 = vunpack.c.l.b16 %v3854
      %v5108 = vunpack.c.h.b16 %v3854
      %v5109 = vunpack.c.l.b16 %v3855
      %v5110 = vunpack.c.h.b16 %v3855
      %v5111 = vunpack.c.l.b16 %v3856
      %v5112 = vunpack.c.h.b16 %v3856
      %v5113 = vunpack.c.l.b16 %v3857
      %v5114 = vunpack.c.l.b16 %v3858
      %v5115 = vunpack.c.h.b16 %v3858
      %v5116 = vunpack.c.l.b16 %v3859
      %v5117 = vunpack.c.h.b16 %v3859
      %v5118 = vunpack.c.l.b16 %v3860
      %v5119 = vunpack.c.h.b16 %v3860
      %v5120 = vunpack.c.l.b16 %v3861
      %v5121 = vunpack.c.l.b16 %v3862
      %v5122 = vunpack.c.h.b16 %v3862
      %v5123 = vunpack.c.l.b16 %v3863
      %v5124 = vunpack.c.h.b16 %v3863
      %v5125 = vunpack.c.l.b16 %v3864
      %v5126 = vunpack.c.h.b16 %v3864
      %v5127 = vunpack.c.l.b16 %v3865
      %v5128 = vunpack.c.l.b16 %v3866
      %v5129 = vunpack.c.h.b16 %v3866
      %v5130 = vunpack.c.l.b16 %v3867
      %v5131 = vunpack.c.h.b16 %v3867
      %v5132 = vunpack.c.l.b16 %v3868
      %v5133 = vunpack.c.h.b16 %v3868
      %v5134 = vunpack.c.l.b16 %v3869
      %v5135 = vunpack.c.l.b16 %v3870
      %v5136 = vunpack.c.h.b16 %v3870
      %v5137 = vunpack.c.l.b16 %v3871
      %v5138 = vunpack.c.h.b16 %v3871
      %v5139 = vunpack.c.l.b16 %v3872
      %v5140 = vunpack.c.h.b16 %v3872
      %v5141 = vunpack.c.l.b16 %v3873
      %v5142 = vunpack.c.l.b16 %v3874
      %v5143 = vunpack.c.h.b16 %v3874
      %v5144 = vunpack.c.l.b16 %v3875
      %v5145 = vunpack.c.h.b16 %v3875
      %v5146 = vunpack.c.l.b16 %v3876
      %v5147 = vunpack.c.h.b16 %v3876
      %v5148 = vunpack.c.l.b16 %v3877
      %v5149 = vunpack.c.l.b16 %v3878
      %v5150 = vunpack.c.h.b16 %v3878
      %v5151 = vunpack.c.l.b16 %v3879
      %v5152 = vunpack.c.h.b16 %v3879
      %v5153 = vunpack.c.l.b16 %v3880
      %v5154 = vunpack.c.h.b16 %v3880
      %v5155 = vunpack.c.l.b16 %v3881
      %v5156 = vunpack.c.l.b16 %v3882
      %v5157 = vunpack.c.h.b16 %v3882
      %v5158 = vunpack.c.l.b16 %v3883
      %v5159 = vunpack.c.h.b16 %v3883
      %v5160 = vunpack.c.l.b16 %v3884
      %v5161 = vunpack.c.h.b16 %v3884
      %v5162 = vunpack.c.l.b16 %v3885
      %v5163 = vunpack.c.l.b16 %v3886
      %v5164 = vunpack.c.h.b16 %v3886
      %v5165 = vunpack.c.l.b16 %v3887
      %v5166 = vunpack.c.h.b16 %v3887
      %v5167 = vunpack.c.l.b16 %v3888
      %v5168 = vunpack.c.h.b16 %v3888
      %v5169 = vunpack.c.l.b16 %v3889
      %v5170 = vunpack.c.l.b16 %v3890
      %v5171 = vunpack.c.h.b16 %v3890
      %v5172 = vunpack.c.l.b16 %v3891
      %v5173 = vunpack.c.h.b16 %v3891
      %v5174 = vunpack.c.l.b16 %v3892
      %v5175 = vunpack.c.h.b16 %v3892
      %v5176 = vunpack.c.l.b16 %v3893
      %v5177 = vunpack.c.l.b16 %v3894
      %v5178 = vunpack.c.h.b16 %v3894
      %v5179 = vunpack.c.l.b16 %v3895
      %v5180 = vunpack.c.h.b16 %v3895
      %v5181 = vunpack.c.l.b16 %v3896
      %v5182 = vunpack.c.h.b16 %v3896
      %v5183 = vunpack.c.l.b16 %v3897
      %v5184 = vunpack.c.l.b16 %v3898
      %v5185 = vunpack.c.h.b16 %v3898
      %v5186 = vunpack.c.l.b16 %v3899
      %v5187 = vunpack.c.h.b16 %v3899
      %v5188 = vunpack.c.l.b16 %v3900
      %v5189 = vunpack.c.h.b16 %v3900
      %v5190 = vunpack.c.l.b16 %v3901
      %v5191 = vunpack.c.l.b16 %v3902
      %v5192 = vunpack.c.h.b16 %v3902
      %v5193 = vunpack.c.l.b16 %v3903
      %v5194 = vunpack.c.h.b16 %v3903
      %v5195 = vunpack.c.l.b16 %v3904
      %v5196 = vunpack.c.h.b16 %v3904
      %v5197 = vunpack.c.l.b16 %v3905
      %v5198 = vunpack.c.l.b16 %v3906
      %v5199 = vunpack.c.h.b16 %v3906
      %v5200 = vunpack.c.l.b16 %v3907
      %v5201 = vunpack.c.h.b16 %v3907
      %v5202 = vunpack.c.l.b16 %v3908
      %v5203 = vunpack.c.h.b16 %v3908
      %v5204 = vunpack.c.l.b16 %v3909
      %v5205 = vunpack.c.l.b16 %v3910
      %v5206 = vunpack.c.h.b16 %v3910
      %v5207 = vunpack.c.l.b16 %v3911
      %v5208 = vunpack.c.h.b16 %v3911
      %v5209 = vunpack.c.l.b16 %v3912
      %v5210 = vunpack.c.h.b16 %v3912
      %v5211 = vunpack.c.l.b16 %v3913
      %v5212 = vunpack.c.l.b16 %v3914
      %v5213 = vunpack.c.h.b16 %v3914
      %v5214 = vunpack.c.l.b16 %v3915
      %v5215 = vunpack.c.h.b16 %v3915
      %v5216 = vunpack.c.l.b16 %v3916
      %v5217 = vunpack.c.h.b16 %v3916
      %v5218 = vunpack.c.l.b16 %v3917
      %v5219 = vunpack.c.l.b16 %v3918
      %v5220 = vunpack.c.h.b16 %v3918
      %v5221 = vunpack.c.l.b16 %v3919
      %v5222 = vunpack.c.h.b16 %v3919
      %v5223 = vunpack.c.l.b16 %v3920
      %v5224 = vunpack.c.h.b16 %v3920
      %v5225 = vunpack.c.l.b16 %v3921
      %v5226 = vunpack.c.l.b16 %v3922
      %v5227 = vunpack.c.h.b16 %v3922
      %v5228 = vunpack.c.l.b16 %v3923
      %v5229 = vunpack.c.h.b16 %v3923
      %v5230 = vunpack.c.l.b16 %v3924
      %v5231 = vunpack.c.h.b16 %v3924
      %v5232 = vunpack.c.l.b16 %v3925
      %v5233 = vunpack.c.l.b16 %v3926
      %v5234 = vunpack.c.h.b16 %v3926
      %v5235 = vunpack.c.l.b16 %v3927
      %v5236 = vunpack.c.h.b16 %v3927
      %v5237 = vunpack.c.l.b16 %v3928
      %v5238 = vunpack.c.h.b16 %v3928
      %v5239 = vunpack.c.l.b16 %v3929
      %v5240 = vunpack.c.l.b16 %v3930
      %v5241 = vunpack.c.h.b16 %v3930
      %v5242 = vunpack.c.l.b16 %v3931
      %v5243 = vunpack.c.h.b16 %v3931
      %v5244 = vunpack.c.l.b16 %v3932
      %v5245 = vunpack.c.h.b16 %v3932
      %v5246 = vunpack.c.l.b16 %v3933
      %v5247 = vunpack.c.l.b16 %v3934
      %v5248 = vunpack.c.h.b16 %v3934
      %v5249 = vunpack.c.l.b16 %v3935
      %v5250 = vunpack.c.h.b16 %v3935
      %v5251 = vunpack.c.l.b16 %v3936
      %v5252 = vunpack.c.h.b16 %v3936
      %v5253 = vunpack.c.l.b16 %v3937
      %v5254 = vunpack.c.l.b16 %v3938
      %v5255 = vunpack.c.h.b16 %v3938
      %v5256 = vunpack.c.l.b16 %v3939
      %v5257 = vunpack.c.h.b16 %v3939
      %v5258 = vunpack.c.l.b16 %v3940
      %v5259 = vunpack.c.h.b16 %v3940
      %v5260 = vunpack.c.l.b16 %v3941
      %v5261 = vunpack.c.l.b16 %v3942
      %v5262 = vunpack.c.h.b16 %v3942
      %v5263 = vunpack.c.l.b16 %v3943
      %v5264 = vunpack.c.h.b16 %v3943
      %v5265 = vunpack.c.l.b16 %v3944
      %v5266 = vunpack.c.h.b16 %v3944
      %v5267 = vunpack.c.l.b16 %v3945
      %v5268 = vunpack.c.l.b16 %v3946
      %v5269 = vunpack.c.h.b16 %v3946
      %v5270 = vunpack.c.l.b16 %v3947
      %v5271 = vunpack.c.h.b16 %v3947
      %v5272 = vunpack.c.l.b16 %v3948
      %v5273 = vunpack.c.h.b16 %v3948
      %v5274 = vunpack.c.l.b16 %v3949
      %v5275 = vunpack.c.l.b16 %v3950
      %v5276 = vunpack.c.h.b16 %v3950
      %v5277 = vunpack.c.l.b16 %v3951
      %v5278 = vunpack.c.h.b16 %v3951
      %v5279 = vunpack.c.l.b16 %v3952
      %v5280 = vunpack.c.h.b16 %v3952
      %v5281 = vunpack.c.l.b16 %v3953
      %v5282 = vunpack.c.l.b16 %v3954
      %v5283 = vunpack.c.h.b16 %v3954
      %v5284 = vunpack.c.l.b16 %v3955
      %v5285 = vunpack.c.h.b16 %v3955
      %v5286 = vunpack.c.l.b16 %v3956
      %v5287 = vunpack.c.h.b16 %v3956
      %v5288 = vunpack.c.l.b16 %v3957
      %v5289 = vunpack.c.l.b16 %v3958
      %v5290 = vunpack.c.h.b16 %v3958
      %v5291 = vunpack.c.l.b16 %v3959
      %v5292 = vunpack.c.h.b16 %v3959
      %v5293 = vunpack.c.l.b16 %v3960
      %v5294 = vunpack.c.h.b16 %v3960
      %v5295 = vunpack.c.l.b16 %v3961
      %v5296 = vunpack.c.l.b16 %v3962
      %v5297 = vunpack.c.h.b16 %v3962
      %v5298 = vunpack.c.l.b16 %v3963
      %v5299 = vunpack.c.h.b16 %v3963
      %v5300 = vunpack.c.l.b16 %v3964
      %v5301 = vunpack.c.h.b16 %v3964
      %v5302 = vunpack.c.l.b16 %v3965
      %v5303 = vunpack.c.l.b16 %v3966
      %v5304 = vunpack.c.h.b16 %v3966
      %v5305 = vunpack.c.l.b16 %v3967
      %v5306 = vunpack.c.h.b16 %v3967
      %v5307 = vunpack.c.l.b16 %v3968
      %v5308 = vunpack.c.h.b16 %v3968
      %v5309 = vunpack.c.l.b16 %v3969
      %v5310 = vunpack.c.l.b16 %v3970
      %v5311 = vunpack.c.h.b16 %v3970
      %v5312 = vunpack.c.l.b16 %v3971
      %v5313 = vunpack.c.h.b16 %v3971
      %v5314 = vunpack.c.l.b16 %v3972
      %v5315 = vunpack.c.h.b16 %v3972
      %v5316 = vunpack.c.l.b16 %v3973
      %v5317 = vunpack.c.l.b16 %v3974
      %v5318 = vunpack.c.h.b16 %v3974
      %v5319 = vunpack.c.l.b16 %v3975
      %v5320 = vunpack.c.h.b16 %v3975
      %v5321 = vunpack.c.l.b16 %v3976
      %v5322 = vunpack.c.h.b16 %v3976
      %v5323 = vunpack.c.l.b16 %v3977
      %v5324 = vunpack.c.l.b16 %v3978
      %v5325 = vunpack.c.h.b16 %v3978
      %v5326 = vunpack.c.l.b16 %v3979
      %v5327 = vunpack.c.h.b16 %v3979
      %v5328 = vunpack.c.l.b16 %v3980
      %v5329 = vunpack.c.h.b16 %v3980
      %v5330 = vunpack.c.l.b16 %v3981
      %v5331 = vunpack.c.l.b16 %v3982
      %v5332 = vunpack.c.h.b16 %v3982
      %v5333 = vunpack.c.l.b16 %v3983
      %v5334 = vunpack.c.h.b16 %v3983
      %v5335 = vunpack.c.l.b16 %v3984
      %v5336 = vunpack.c.h.b16 %v3984
      %v5337 = vunpack.c.l.b16 %v3985
      %v5338 = vunpack.c.l.b16 %v3986
      %v5339 = vunpack.c.h.b16 %v3986
      %v5340 = vunpack.c.l.b16 %v3987
      %v5341 = vunpack.c.h.b16 %v3987
      %v5342 = vunpack.c.l.b16 %v3988
      %v5343 = vunpack.c.h.b16 %v3988
      %v5344 = vunpack.c.l.b16 %v3989
      %v5345 = vunpack.c.l.b16 %v3990
      %v5346 = vunpack.c.h.b16 %v3990
      %v5347 = vunpack.c.l.b16 %v3991
      %v5348 = vunpack.c.h.b16 %v3991
      %v5349 = vunpack.c.l.b16 %v3992
      %v5350 = vunpack.c.h.b16 %v3992
      %v5351 = vunpack.c.l.b16 %v3993
      %v5352 = vunpack.c.l.b16 %v3994
      %v5353 = vunpack.c.h.b16 %v3994
      %v5354 = vunpack.c.l.b16 %v3995
      %v5355 = vunpack.c.h.b16 %v3995
      %v5356 = vunpack.c.l.b16 %v3996
      %v5357 = vunpack.c.h.b16 %v3996
      %v5358 = vunpack.c.l.b16 %v3997
      %v5359 = vunpack.c.l.b16 %v3998
      %v5360 = vunpack.c.h.b16 %v3998
      %v5361 = vunpack.c.l.b16 %v3999
      %v5362 = vunpack.c.h.b16 %v3999
      %v5363 = vunpack.c.l.b16 %v4000
      %v5364 = vunpack.c.h.b16 %v4000
      %v5365 = vunpack.c.l.b16 %v4001
      %v5366 = vunpack.c.l.b16 %v4002
      %v5367 = vunpack.c.h.b16 %v4002
      %v5368 = vunpack.c.l.b16 %v4003
      %v5369 = vunpack.c.h.b16 %v4003
      %v5370 = vunpack.c.l.b16 %v4004
      %v5371 = vunpack.c.h.b16 %v4004
      %v5372 = vunpack.c.l.b16 %v4005
      %v5373 = vunpack.c.l.b16 %v4006
      %v5374 = vunpack.c.h.b16 %v4006
      %v5375 = vunpack.c.l.b16 %v4007
      %v5376 = vunpack.c.h.b16 %v4007
      %v5377 = vunpack.c.l.b16 %v4008
      %v5378 = vunpack.c.h.b16 %v4008
      %v5379 = vunpack.c.l.b16 %v4009
      %v5380 = vunpack.c.l.b16 %v4010
      %v5381 = vunpack.c.h.b16 %v4010
      %v5382 = vunpack.c.l.b16 %v4011
      %v5383 = vunpack.c.h.b16 %v4011
      %v5384 = vunpack.c.l.b16 %v4012
      %v5385 = vunpack.c.h.b16 %v4012
      %v5386 = vunpack.c.l.b16 %v4013
      %v5387 = vunpack.c.l.b16 %v4014
      %v5388 = vunpack.c.h.b16 %v4014
      %v5389 = vunpack.c.l.b16 %v4015
      %v5390 = vunpack.c.h.b16 %v4015
      %v5391 = vunpack.c.l.b16 %v4016
      %v5392 = vunpack.c.h.b16 %v4016
      %v5393 = vunpack.c.l.b16 %v4017
      %v5394 = vunpack.c.l.b16 %v4018
      %v5395 = vunpack.c.h.b16 %v4018
      %v5396 = vunpack.c.l.b16 %v4019
      %v5397 = vunpack.c.h.b16 %v4019
      %v5398 = vunpack.c.l.b16 %v4020
      %v5399 = vunpack.c.h.b16 %v4020
      %v5400 = vunpack.c.l.b16 %v4021
      %v5401 = vunpack.c.l.b16 %v4022
      %v5402 = vunpack.c.h.b16 %v4022
      %v5403 = vunpack.c.l.b16 %v4023
      %v5404 = vunpack.c.h.b16 %v4023
      %v5405 = vunpack.c.l.b16 %v4024
      %v5406 = vunpack.c.h.b16 %v4024
      %v5407 = vunpack.c.l.b16 %v4025
      %v5408 = vunpack.c.l.b16 %v4026
      %v5409 = vunpack.c.h.b16 %v4026
      %v5410 = vunpack.c.l.b16 %v4027
      %v5411 = vunpack.c.h.b16 %v4027
      %v5412 = vunpack.c.l.b16 %v4028
      %v5413 = vunpack.c.h.b16 %v4028
      %v5414 = vunpack.c.l.b16 %v4029
      %v5415 = vunpack.c.l.b16 %v4030
      %v5416 = vunpack.c.h.b16 %v4030
      %v5417 = vunpack.c.l.b16 %v4031
      %v5418 = vunpack.c.h.b16 %v4031
      %v5419 = vunpack.c.l.b16 %v4032
      %v5420 = vunpack.c.h.b16 %v4032
      %v5421 = vunpack.c.l.b16 %v4033
      %v5422 = vunpack.c.l.b16 %v4034
      %v5423 = vunpack.c.h.b16 %v4034
      %v5424 = vunpack.c.l.b16 %v4035
      %v5425 = vunpack.c.h.b16 %v4035
      %v5426 = vunpack.c.l.b16 %v4036
      %v5427 = vunpack.c.h.b16 %v4036
      %v5428 = vunpack.c.l.b16 %v4037
      %v5429 = vunpack.c.l.b16 %v4038
      %v5430 = vunpack.c.h.b16 %v4038
      %v5431 = vunpack.c.l.b16 %v4039
      %v5432 = vunpack.c.h.b16 %v4039
      %v5433 = vunpack.c.l.b16 %v4040
      %v5434 = vunpack.c.h.b16 %v4040
      %v5435 = vunpack.c.l.b16 %v4041
      %v5436 = vunpack.c.l.b16 %v4042
      %v5437 = vunpack.c.h.b16 %v4042
      %v5438 = vunpack.c.l.b16 %v4043
      %v5439 = vunpack.c.h.b16 %v4043
      %v5440 = vunpack.c.l.b16 %v4044
      %v5441 = vunpack.c.h.b16 %v4044
      %v5442 = vunpack.c.l.b16 %v4045
      %v5443 = vunpack.c.l.b16 %v4046
      %v5444 = vunpack.c.h.b16 %v4046
      %v5445 = vunpack.c.l.b16 %v4047
      %v5446 = vunpack.c.h.b16 %v4047
      %v5447 = vunpack.c.l.b16 %v4048
      %v5448 = vunpack.c.h.b16 %v4048
      %v5449 = vunpack.c.l.b16 %v4049
      %v5450 = vunpack.c.l.b16 %v4050
      %v5451 = vunpack.c.h.b16 %v4050
      %v5452 = vunpack.c.l.b16 %v4051
      %v5453 = vunpack.c.h.b16 %v4051
      %v5454 = vunpack.c.l.b16 %v4052
      %v5455 = vunpack.c.h.b16 %v4052
      %v5456 = vunpack.c.l.b16 %v4053
      %v5457 = vunpack.c.l.b16 %v4054
      %v5458 = vunpack.c.h.b16 %v4054
      %v5459 = vunpack.c.l.b16 %v4055
      %v5460 = vunpack.c.h.b16 %v4055
      %v5461 = vunpack.c.l.b16 %v4056
      %v5462 = vunpack.c.h.b16 %v4056
      %v5463 = vunpack.c.l.b16 %v4057
      %v5464 = vunpack.c.l.b16 %v4058
      %v5465 = vunpack.c.h.b16 %v4058
      %v5466 = vunpack.c.l.b16 %v4059
      %v5467 = vunpack.c.h.b16 %v4059
      %v5468 = vunpack.c.l.b16 %v4060
      %v5469 = vunpack.c.h.b16 %v4060
      %v5470 = vunpack.c.l.b16 %v4061
      %v5471 = vunpack.c.l.b16 %v4062
      %v5472 = vunpack.c.h.b16 %v4062
      %v5473 = vunpack.c.l.b16 %v4063
      %v5474 = vunpack.c.h.b16 %v4063
      %v5475 = vunpack.c.l.b16 %v4064
      %v5476 = vunpack.c.h.b16 %v4064
      %v5477 = vunpack.c.l.b16 %v4065
      %v5478 = vunpack.c.l.b16 %v4066
      %v5479 = vunpack.c.h.b16 %v4066
      %v5480 = vunpack.c.l.b16 %v4067
      %v5481 = vunpack.c.h.b16 %v4067
      %v5482 = vunpack.c.l.b16 %v4068
      %v5483 = vunpack.c.h.b16 %v4068
      %v5484 = vunpack.c.l.b16 %v4069
      %v5485 = vunpack.c.l.b16 %v4070
      %v5486 = vunpack.c.h.b16 %v4070
      %v5487 = vunpack.c.l.b16 %v4071
      %v5488 = vunpack.c.h.b16 %v4071
      %v5489 = vunpack.c.l.b16 %v4072
      %v5490 = vunpack.c.h.b16 %v4072
      %v5491 = vunpack.c.l.b16 %v4073
      %v5492 = vunpack.c.l.b16 %v4074
      %v5493 = vunpack.c.h.b16 %v4074
      %v5494 = vunpack.c.l.b16 %v4075
      %v5495 = vunpack.c.h.b16 %v4075
      %v5496 = vunpack.c.l.b16 %v4076
      %v5497 = vunpack.c.h.b16 %v4076
      %v5498 = vunpack.c.l.b16 %v4077
      %v5499 = vunpack.c.l.b16 %v4078
      %v5500 = vunpack.c.h.b16 %v4078
      %v5501 = vunpack.c.l.b16 %v4079
      %v5502 = vunpack.c.h.b16 %v4079
      %v5503 = vunpack.c.l.b16 %v4080
      %v5504 = vunpack.c.h.b16 %v4080
      %v5505 = vunpack.c.l.b16 %v4081
      %v5506 = vpack.c.b16 %v4617, %v4610
      %v5507 = vpack.c.b16 %v4618, %v4611
      %v5508 = vpack.c.b16 %v4619, %v4612
      %v5509 = vpack.c.b16 %v4620, %v4613
      %v5510 = vpack.c.b16 %v4621, %v4614
      %v5511 = vpack.c.b16 %v4622, %v4615
      %v5512 = vpack.c.b16 %v4623, %v4616
      %v5513 = vpack.c.b16 %v4631, %v4624
      %v5514 = vpack.c.b16 %v4632, %v4625
      %v5515 = vpack.c.b16 %v4633, %v4626
      %v5516 = vpack.c.b16 %v4634, %v4627
      %v5517 = vpack.c.b16 %v4635, %v4628
      %v5518 = vpack.c.b16 %v4636, %v4629
      %v5519 = vpack.c.b16 %v4637, %v4630
      %v5520 = vpack.c.b16 %v4645, %v4638
      %v5521 = vpack.c.b16 %v4646, %v4639
      %v5522 = vpack.c.b16 %v4647, %v4640
      %v5523 = vpack.c.b16 %v4648, %v4641
      %v5524 = vpack.c.b16 %v4649, %v4642
      %v5525 = vpack.c.b16 %v4650, %v4643
      %v5526 = vpack.c.b16 %v4651, %v4644
      %v5527 = vpack.c.b16 %v4659, %v4652
      %v5528 = vpack.c.b16 %v4660, %v4653
      %v5529 = vpack.c.b16 %v4661, %v4654
      %v5530 = vpack.c.b16 %v4662, %v4655
      %v5531 = vpack.c.b16 %v4663, %v4656
      %v5532 = vpack.c.b16 %v4664, %v4657
      %v5533 = vpack.c.b16 %v4665, %v4658
      %v5534 = vpack.c.b16 %v4673, %v4666
      %v5535 = vpack.c.b16 %v4674, %v4667
      %v5536 = vpack.c.b16 %v4675, %v4668
      %v5537 = vpack.c.b16 %v4676, %v4669
      %v5538 = vpack.c.b16 %v4677, %v4670
      %v5539 = vpack.c.b16 %v4678, %v4671
      %v5540 = vpack.c.b16 %v4679, %v4672
      %v5541 = vpack.c.b16 %v4687, %v4680
      %v5542 = vpack.c.b16 %v4688, %v4681
      %v5543 = vpack.c.b16 %v4689, %v4682
      %v5544 = vpack.c.b16 %v4690, %v4683
      %v5545 = vpack.c.b16 %v4691, %v4684
      %v5546 = vpack.c.b16 %v4692, %v4685
      %v5547 = vpack.c.b16 %v4693, %v4686
      %v5548 = vpack.c.b16 %v4701, %v4694
      %v5549 = vpack.c.b16 %v4702, %v4695
      %v5550 = vpack.c.b16 %v4703, %v4696
      %v5551 = vpack.c.b16 %v4704, %v4697
      %v5552 = vpack.c.b16 %v4705, %v4698
      %v5553 = vpack.c.b16 %v4706, %v4699
      %v5554 = vpack.c.b16 %v4707, %v4700
      %v5555 = vpack.c.b16 %v4715, %v4708
      %v5556 = vpack.c.b16 %v4716, %v4709
      %v5557 = vpack.c.b16 %v4717, %v4710
      %v5558 = vpack.c.b16 %v4718, %v4711
      %v5559 = vpack.c.b16 %v4719, %v4712
      %v5560 = vpack.c.b16 %v4720, %v4713
      %v5561 = vpack.c.b16 %v4721, %v4714
      %v5562 = vpack.c.b16 %v4729, %v4722
      %v5563 = vpack.c.b16 %v4730, %v4723
      %v5564 = vpack.c.b16 %v4731, %v4724
      %v5565 = vpack.c.b16 %v4732, %v4725
      %v5566 = vpack.c.b16 %v4733, %v4726
      %v5567 = vpack.c.b16 %v4734, %v4727
      %v5568 = vpack.c.b16 %v4735, %v4728
      %v5569 = vpack.c.b16 %v4743, %v4736
      %v5570 = vpack.c.b16 %v4744, %v4737
      %v5571 = vpack.c.b16 %v4745, %v4738
      %v5572 = vpack.c.b16 %v4746, %v4739
      %v5573 = vpack.c.b16 %v4747, %v4740
      %v5574 = vpack.c.b16 %v4748, %v4741
      %v5575 = vpack.c.b16 %v4749, %v4742
      %v5576 = vpack.c.b16 %v4757, %v4750
      %v5577 = vpack.c.b16 %v4758, %v4751
      %v5578 = vpack.c.b16 %v4759, %v4752
      %v5579 = vpack.c.b16 %v4760, %v4753
      %v5580 = vpack.c.b16 %v4761, %v4754
      %v5581 = vpack.c.b16 %v4762, %v4755
      %v5582 = vpack.c.b16 %v4763, %v4756
      %v5583 = vpack.c.b16 %v4771, %v4764
      %v5584 = vpack.c.b16 %v4772, %v4765
      %v5585 = vpack.c.b16 %v4773, %v4766
      %v5586 = vpack.c.b16 %v4774, %v4767
      %v5587 = vpack.c.b16 %v4775, %v4768
      %v5588 = vpack.c.b16 %v4776, %v4769
      %v5589 = vpack.c.b16 %v4777, %v4770
      %v5590 = vpack.c.b16 %v4785, %v4778
      %v5591 = vpack.c.b16 %v4786, %v4779
      %v5592 = vpack.c.b16 %v4787, %v4780
      %v5593 = vpack.c.b16 %v4788, %v4781
      %v5594 = vpack.c.b16 %v4789, %v4782
      %v5595 = vpack.c.b16 %v4790, %v4783
      %v5596 = vpack.c.b16 %v4791, %v4784
      %v5597 = vpack.c.b16 %v4799, %v4792
      %v5598 = vpack.c.b16 %v4800, %v4793
      %v5599 = vpack.c.b16 %v4801, %v4794
      %v5600 = vpack.c.b16 %v4802, %v4795
      %v5601 = vpack.c.b16 %v4803, %v4796
      %v5602 = vpack.c.b16 %v4804, %v4797
      %v5603 = vpack.c.b16 %v4805, %v4798
      %v5604 = vpack.c.b16 %v4813, %v4806
      %v5605 = vpack.c.b16 %v4814, %v4807
      %v5606 = vpack.c.b16 %v4815, %v4808
      %v5607 = vpack.c.b16 %v4816, %v4809
      %v5608 = vpack.c.b16 %v4817, %v4810
      %v5609 = vpack.c.b16 %v4818, %v4811
      %v5610 = vpack.c.b16 %v4819, %v4812
      %v5611 = vpack.c.b16 %v4827, %v4820
      %v5612 = vpack.c.b16 %v4828, %v4821
      %v5613 = vpack.c.b16 %v4829, %v4822
      %v5614 = vpack.c.b16 %v4830, %v4823
      %v5615 = vpack.c.b16 %v4831, %v4824
      %v5616 = vpack.c.b16 %v4832, %v4825
      %v5617 = vpack.c.b16 %v4833, %v4826
      %v5618 = vpack.c.b16 %v4841, %v4834
      %v5619 = vpack.c.b16 %v4842, %v4835
      %v5620 = vpack.c.b16 %v4843, %v4836
      %v5621 = vpack.c.b16 %v4844, %v4837
      %v5622 = vpack.c.b16 %v4845, %v4838
      %v5623 = vpack.c.b16 %v4846, %v4839
      %v5624 = vpack.c.b16 %v4847, %v4840
      %v5625 = vpack.c.b16 %v4855, %v4848
      %v5626 = vpack.c.b16 %v4856, %v4849
      %v5627 = vpack.c.b16 %v4857, %v4850
      %v5628 = vpack.c.b16 %v4858, %v4851
      %v5629 = vpack.c.b16 %v4859, %v4852
      %v5630 = vpack.c.b16 %v4860, %v4853
      %v5631 = vpack.c.b16 %v4861, %v4854
      %v5632 = vpack.c.b16 %v4869, %v4862
      %v5633 = vpack.c.b16 %v4870, %v4863
      %v5634 = vpack.c.b16 %v4871, %v4864
      %v5635 = vpack.c.b16 %v4872, %v4865
      %v5636 = vpack.c.b16 %v4873, %v4866
      %v5637 = vpack.c.b16 %v4874, %v4867
      %v5638 = vpack.c.b16 %v4875, %v4868
      %v5639 = vpack.c.b16 %v4883, %v4876
      %v5640 = vpack.c.b16 %v4884, %v4877
      %v5641 = vpack.c.b16 %v4885, %v4878
      %v5642 = vpack.c.b16 %v4886, %v4879
      %v5643 = vpack.c.b16 %v4887, %v4880
      %v5644 = vpack.c.b16 %v4888, %v4881
      %v5645 = vpack.c.b16 %v4889, %v4882
      %v5646 = vpack.c.b16 %v4897, %v4890
      %v5647 = vpack.c.b16 %v4898, %v4891
      %v5648 = vpack.c.b16 %v4899, %v4892
      %v5649 = vpack.c.b16 %v4900, %v4893
      %v5650 = vpack.c.b16 %v4901, %v4894
      %v5651 = vpack.c.b16 %v4902, %v4895
      %v5652 = vpack.c.b16 %v4903, %v4896
      %v5653 = vpack.c.b16 %v4911, %v4904
      %v5654 = vpack.c.b16 %v4912, %v4905
      %v5655 = vpack.c.b16 %v4913, %v4906
      %v5656 = vpack.c.b16 %v4914, %v4907
      %v5657 = vpack.c.b16 %v4915, %v4908
      %v5658 = vpack.c.b16 %v4916, %v4909
      %v5659 = vpack.c.b16 %v4917, %v4910
      %v5660 = vpack.c.b16 %v4925, %v4918
      %v5661 = vpack.c.b16 %v4926, %v4919
      %v5662 = vpack.c.b16 %v4927, %v4920
      %v5663 = vpack.c.b16 %v4928, %v4921
      %v5664 = vpack.c.b16 %v4929, %v4922
      %v5665 = vpack.c.b16 %v4930, %v4923
      %v5666 = vpack.c.b16 %v4931, %v4924
      %v5667 = vpack.c.b16 %v4939, %v4932
      %v5668 = vpack.c.b16 %v4940, %v4933
      %v5669 = vpack.c.b16 %v4941, %v4934
      %v5670 = vpack.c.b16 %v4942, %v4935
      %v5671 = vpack.c.b16 %v4943, %v4936
      %v5672 = vpack.c.b16 %v4944, %v4937
      %v5673 = vpack.c.b16 %v4945, %v4938
      %v5674 = vpack.c.b16 %v4953, %v4946
      %v5675 = vpack.c.b16 %v4954, %v4947
      %v5676 = vpack.c.b16 %v4955, %v4948
      %v5677 = vpack.c.b16 %v4956, %v4949
      %v5678 = vpack.c.b16 %v4957, %v4950
      %v5679 = vpack.c.b16 %v4958, %v4951
      %v5680 = vpack.c.b16 %v4959, %v4952
      %v5681 = vpack.c.b16 %v4967, %v4960
      %v5682 = vpack.c.b16 %v4968, %v4961
      %v5683 = vpack.c.b16 %v4969, %v4962
      %v5684 = vpack.c.b16 %v4970, %v4963
      %v5685 = vpack.c.b16 %v4971, %v4964
      %v5686 = vpack.c.b16 %v4972, %v4965
      %v5687 = vpack.c.b16 %v4973, %v4966
      %v5688 = vpack.c.b16 %v4981, %v4974
      %v5689 = vpack.c.b16 %v4982, %v4975
      %v5690 = vpack.c.b16 %v4983, %v4976
      %v5691 = vpack.c.b16 %v4984, %v4977
      %v5692 = vpack.c.b16 %v4985, %v4978
      %v5693 = vpack.c.b16 %v4986, %v4979
      %v5694 = vpack.c.b16 %v4987, %v4980
      %v5695 = vpack.c.b16 %v4995, %v4988
      %v5696 = vpack.c.b16 %v4996, %v4989
      %v5697 = vpack.c.b16 %v4997, %v4990
      %v5698 = vpack.c.b16 %v4998, %v4991
      %v5699 = vpack.c.b16 %v4999, %v4992
      %v5700 = vpack.c.b16 %v5000, %v4993
      %v5701 = vpack.c.b16 %v5001, %v4994
      %v5702 = vpack.c.b16 %v5009, %v5002
      %v5703 = vpack.c.b16 %v5010, %v5003
      %v5704 = vpack.c.b16 %v5011, %v5004
      %v5705 = vpack.c.b16 %v5012, %v5005
      %v5706 = vpack.c.b16 %v5013, %v5006
      %v5707 = vpack.c.b16 %v5014, %v5007
      %v5708 = vpack.c.b16 %v5015, %v5008
      %v5709 = vpack.c.b16 %v5023, %v5016
      %v5710 = vpack.c.b16 %v5024, %v5017
      %v5711 = vpack.c.b16 %v5025, %v5018
      %v5712 = vpack.c.b16 %v5026, %v5019
      %v5713 = vpack.c.b16 %v5027, %v5020
      %v5714 = vpack.c.b16 %v5028, %v5021
      %v5715 = vpack.c.b16 %v5029, %v5022
      %v5716 = vpack.c.b16 %v5037, %v5030
      %v5717 = vpack.c.b16 %v5038, %v5031
      %v5718 = vpack.c.b16 %v5039, %v5032
      %v5719 = vpack.c.b16 %v5040, %v5033
      %v5720 = vpack.c.b16 %v5041, %v5034
      %v5721 = vpack.c.b16 %v5042, %v5035
      %v5722 = vpack.c.b16 %v5043, %v5036
      %v5723 = vpack.c.b16 %v5051, %v5044
      %v5724 = vpack.c.b16 %v5052, %v5045
      %v5725 = vpack.c.b16 %v5053, %v5046
      %v5726 = vpack.c.b16 %v5054, %v5047
      %v5727 = vpack.c.b16 %v5055, %v5048
      %v5728 = vpack.c.b16 %v5056, %v5049
      %v5729 = vpack.c.b16 %v5057, %v5050
      %v5730 = vpack.c.b16 %v5065, %v5058
      %v5731 = vpack.c.b16 %v5066, %v5059
      %v5732 = vpack.c.b16 %v5067, %v5060
      %v5733 = vpack.c.b16 %v5068, %v5061
      %v5734 = vpack.c.b16 %v5069, %v5062
      %v5735 = vpack.c.b16 %v5070, %v5063
      %v5736 = vpack.c.b16 %v5071, %v5064
      %v5737 = vpack.c.b16 %v5079, %v5072
      %v5738 = vpack.c.b16 %v5080, %v5073
      %v5739 = vpack.c.b16 %v5081, %v5074
      %v5740 = vpack.c.b16 %v5082, %v5075
      %v5741 = vpack.c.b16 %v5083, %v5076
      %v5742 = vpack.c.b16 %v5084, %v5077
      %v5743 = vpack.c.b16 %v5085, %v5078
      %v5744 = vpack.c.b16 %v5093, %v5086
      %v5745 = vpack.c.b16 %v5094, %v5087
      %v5746 = vpack.c.b16 %v5095, %v5088
      %v5747 = vpack.c.b16 %v5096, %v5089
      %v5748 = vpack.c.b16 %v5097, %v5090
      %v5749 = vpack.c.b16 %v5098, %v5091
      %v5750 = vpack.c.b16 %v5099, %v5092
      %v5751 = vpack.c.b16 %v5107, %v5100
      %v5752 = vpack.c.b16 %v5108, %v5101
      %v5753 = vpack.c.b16 %v5109, %v5102
      %v5754 = vpack.c.b16 %v5110, %v5103
      %v5755 = vpack.c.b16 %v5111, %v5104
      %v5756 = vpack.c.b16 %v5112, %v5105
      %v5757 = vpack.c.b16 %v5113, %v5106
      %v5758 = vpack.c.b16 %v5121, %v5114
      %v5759 = vpack.c.b16 %v5122, %v5115
      %v5760 = vpack.c.b16 %v5123, %v5116
      %v5761 = vpack.c.b16 %v5124, %v5117
      %v5762 = vpack.c.b16 %v5125, %v5118
      %v5763 = vpack.c.b16 %v5126, %v5119
      %v5764 = vpack.c.b16 %v5127, %v5120
      %v5765 = vpack.c.b16 %v5135, %v5128
      %v5766 = vpack.c.b16 %v5136, %v5129
      %v5767 = vpack.c.b16 %v5137, %v5130
      %v5768 = vpack.c.b16 %v5138, %v5131
      %v5769 = vpack.c.b16 %v5139, %v5132
      %v5770 = vpack.c.b16 %v5140, %v5133
      %v5771 = vpack.c.b16 %v5141, %v5134
      %v5772 = vpack.c.b16 %v5149, %v5142
      %v5773 = vpack.c.b16 %v5150, %v5143
      %v5774 = vpack.c.b16 %v5151, %v5144
      %v5775 = vpack.c.b16 %v5152, %v5145
      %v5776 = vpack.c.b16 %v5153, %v5146
      %v5777 = vpack.c.b16 %v5154, %v5147
      %v5778 = vpack.c.b16 %v5155, %v5148
      %v5779 = vpack.c.b16 %v5163, %v5156
      %v5780 = vpack.c.b16 %v5164, %v5157
      %v5781 = vpack.c.b16 %v5165, %v5158
      %v5782 = vpack.c.b16 %v5166, %v5159
      %v5783 = vpack.c.b16 %v5167, %v5160
      %v5784 = vpack.c.b16 %v5168, %v5161
      %v5785 = vpack.c.b16 %v5169, %v5162
      %v5786 = vpack.c.b16 %v5177, %v5170
      %v5787 = vpack.c.b16 %v5178, %v5171
      %v5788 = vpack.c.b16 %v5179, %v5172
      %v5789 = vpack.c.b16 %v5180, %v5173
      %v5790 = vpack.c.b16 %v5181, %v5174
      %v5791 = vpack.c.b16 %v5182, %v5175
      %v5792 = vpack.c.b16 %v5183, %v5176
      %v5793 = vpack.c.b16 %v5191, %v5184
      %v5794 = vpack.c.b16 %v5192, %v5185
      %v5795 = vpack.c.b16 %v5193, %v5186
      %v5796 = vpack.c.b16 %v5194, %v5187
      %v5797 = vpack.c.b16 %v5195, %v5188
      %v5798 = vpack.c.b16 %v5196, %v5189
      %v5799 = vpack.c.b16 %v5197, %v5190
      %v5800 = vpack.c.b16 %v5205, %v5198
      %v5801 = vpack.c.b16 %v5206, %v5199
      %v5802 = vpack.c.b16 %v5207, %v5200
      %v5803 = vpack.c.b16 %v5208, %v5201
      %v5804 = vpack.c.b16 %v5209, %v5202
      %v5805 = vpack.c.b16 %v5210, %v5203
      %v5806 = vpack.c.b16 %v5211, %v5204
      %v5807 = vpack.c.b16 %v5219, %v5212
      %v5808 = vpack.c.b16 %v5220, %v5213
      %v5809 = vpack.c.b16 %v5221, %v5214
      %v5810 = vpack.c.b16 %v5222, %v5215
      %v5811 = vpack.c.b16 %v5223, %v5216
      %v5812 = vpack.c.b16 %v5224, %v5217
      %v5813 = vpack.c.b16 %v5225, %v5218
      %v5814 = vpack.c.b16 %v5233, %v5226
      %v5815 = vpack.c.b16 %v5234, %v5227
      %v5816 = vpack.c.b16 %v5235, %v5228
      %v5817 = vpack.c.b16 %v5236, %v5229
      %v5818 = vpack.c.b16 %v5237, %v5230
      %v5819 = vpack.c.b16 %v5238, %v5231
      %v5820 = vpack.c.b16 %v5239, %v5232
      %v5821 = vpack.c.b16 %v5247, %v5240
      %v5822 = vpack.c.b16 %v5248, %v5241
      %v5823 = vpack.c.b16 %v5249, %v5242
      %v5824 = vpack.c.b16 %v5250, %v5243
      %v5825 = vpack.c.b16 %v5251, %v5244
      %v5826 = vpack.c.b16 %v5252, %v5245
      %v5827 = vpack.c.b16 %v5253, %v5246
      %v5828 = vpack.c.b16 %v5261, %v5254
      %v5829 = vpack.c.b16 %v5262, %v5255
      %v5830 = vpack.c.b16 %v5263, %v5256
      %v5831 = vpack.c.b16 %v5264, %v5257
      %v5832 = vpack.c.b16 %v5265, %v5258
      %v5833 = vpack.c.b16 %v5266, %v5259
      %v5834 = vpack.c.b16 %v5267, %v5260
      %v5835 = vpack.c.b16 %v5275, %v5268
      %v5836 = vpack.c.b16 %v5276, %v5269
      %v5837 = vpack.c.b16 %v5277, %v5270
      %v5838 = vpack.c.b16 %v5278, %v5271
      %v5839 = vpack.c.b16 %v5279, %v5272
      %v5840 = vpack.c.b16 %v5280, %v5273
      %v5841 = vpack.c.b16 %v5281, %v5274
      %v5842 = vpack.c.b16 %v5289, %v5282
      %v5843 = vpack.c.b16 %v5290, %v5283
      %v5844 = vpack.c.b16 %v5291, %v5284
      %v5845 = vpack.c.b16 %v5292, %v5285
      %v5846 = vpack.c.b16 %v5293, %v5286
      %v5847 = vpack.c.b16 %v5294, %v5287
      %v5848 = vpack.c.b16 %v5295, %v5288
      %v5849 = vpack.c.b16 %v5303, %v5296
      %v5850 = vpack.c.b16 %v5304, %v5297
      %v5851 = vpack.c.b16 %v5305, %v5298
      %v5852 = vpack.c.b16 %v5306, %v5299
      %v5853 = vpack.c.b16 %v5307, %v5300
      %v5854 = vpack.c.b16 %v5308, %v5301
      %v5855 = vpack.c.b16 %v5309, %v5302
      %v5856 = vpack.c.b16 %v5317, %v5310
      %v5857 = vpack.c.b16 %v5318, %v5311
      %v5858 = vpack.c.b16 %v5319, %v5312
      %v5859 = vpack.c.b16 %v5320, %v5313
      %v5860 = vpack.c.b16 %v5321, %v5314
      %v5861 = vpack.c.b16 %v5322, %v5315
      %v5862 = vpack.c.b16 %v5323, %v5316
      %v5863 = vpack.c.b16 %v5331, %v5324
      %v5864 = vpack.c.b16 %v5332, %v5325
      %v5865 = vpack.c.b16 %v5333, %v5326
      %v5866 = vpack.c.b16 %v5334, %v5327
      %v5867 = vpack.c.b16 %v5335, %v5328
      %v5868 = vpack.c.b16 %v5336, %v5329
      %v5869 = vpack.c.b16 %v5337, %v5330
      %v5870 = vpack.c.b16 %v5345, %v5338
      %v5871 = vpack.c.b16 %v5346, %v5339
      %v5872 = vpack.c.b16 %v5347, %v5340
      %v5873 = vpack.c.b16 %v5348, %v5341
      %v5874 = vpack.c.b16 %v5349, %v5342
      %v5875 = vpack.c.b16 %v5350, %v5343
      %v5876 = vpack.c.b16 %v5351, %v5344
      %v5877 = vpack.c.b16 %v5359, %v5352
      %v5878 = vpack.c.b16 %v5360, %v5353
      %v5879 = vpack.c.b16 %v5361, %v5354
      %v5880 = vpack.c.b16 %v5362, %v5355
      %v5881 = vpack.c.b16 %v5363, %v5356
      %v5882 = vpack.c.b16 %v5364, %v5357
      %v5883 = vpack.c.b16 %v5365, %v5358
      %v5884 = vpack.c.b16 %v5373, %v5366
      %v5885 = vpack.c.b16 %v5374, %v5367
      %v5886 = vpack.c.b16 %v5375, %v5368
      %v5887 = vpack.c.b16 %v5376, %v5369
      %v5888 = vpack.c.b16 %v5377, %v5370
      %v5889 = vpack.c.b16 %v5378, %v5371
      %v5890 = vpack.c.b16 %v5379, %v5372
      %v5891 = vpack.c.b16 %v5387, %v5380
      %v5892 = vpack.c.b16 %v5388, %v5381
      %v5893 = vpack.c.b16 %v5389, %v5382
      %v5894 = vpack.c.b16 %v5390, %v5383
      %v5895 = vpack.c.b16 %v5391, %v5384
      %v5896 = vpack.c.b16 %v5392, %v5385
      %v5897 = vpack.c.b16 %v5393, %v5386
      %v5898 = vpack.c.b16 %v5401, %v5394
      %v5899 = vpack.c.b16 %v5402, %v5395
      %v5900 = vpack.c.b16 %v5403, %v5396
      %v5901 = vpack.c.b16 %v5404, %v5397
      %v5902 = vpack.c.b16 %v5405, %v5398
      %v5903 = vpack.c.b16 %v5406, %v5399
      %v5904 = vpack.c.b16 %v5407, %v5400
      %v5905 = vpack.c.b16 %v5415, %v5408
      %v5906 = vpack.c.b16 %v5416, %v5409
      %v5907 = vpack.c.b16 %v5417, %v5410
      %v5908 = vpack.c.b16 %v5418, %v5411
      %v5909 = vpack.c.b16 %v5419, %v5412
      %v5910 = vpack.c.b16 %v5420, %v5413
      %v5911 = vpack.c.b16 %v5421, %v5414
      %v5912 = vpack.c.b16 %v5429, %v5422
      %v5913 = vpack.c.b16 %v5430, %v5423
      %v5914 = vpack.c.b16 %v5431, %v5424
      %v5915 = vpack.c.b16 %v5432, %v5425
      %v5916 = vpack.c.b16 %v5433, %v5426
      %v5917 = vpack.c.b16 %v5434, %v5427
      %v5918 = vpack.c.b16 %v5435, %v5428
      %v5919 = vpack.c.b16 %v5443, %v5436
      %v5920 = vpack.c.b16 %v5444, %v5437
      %v5921 = vpack.c.b16 %v5445, %v5438
      %v5922 = vpack.c.b16 %v5446, %v5439
      %v5923 = vpack.c.b16 %v5447, %v5440
      %v5924 = vpack.c.b16 %v5448, %v5441
      %v5925 = vpack.c.b16 %v5449, %v5442
      %v5926 = vpack.c.b16 %v5457, %v5450
      %v5927 = vpack.c.b16 %v5458, %v5451
      %v5928 = vpack.c.b16 %v5459, %v5452
      %v5929 = vpack.c.b16 %v5460, %v5453
      %v5930 = vpack.c.b16 %v5461, %v5454
      %v5931 = vpack.c.b16 %v5462, %v5455
      %v5932 = vpack.c.b16 %v5463, %v5456
      %v5933 = vpack.c.b16 %v5471, %v5464
      %v5934 = vpack.c.b16 %v5472, %v5465
      %v5935 = vpack.c.b16 %v5473, %v5466
      %v5936 = vpack.c.b16 %v5474, %v5467
      %v5937 = vpack.c.b16 %v5475, %v5468
      %v5938 = vpack.c.b16 %v5476, %v5469
      %v5939 = vpack.c.b16 %v5477, %v5470
      %v5940 = vpack.c.b16 %v5485, %v5478
      %v5941 = vpack.c.b16 %v5486, %v5479
      %v5942 = vpack.c.b16 %v5487, %v5480
      %v5943 = vpack.c.b16 %v5488, %v5481
      %v5944 = vpack.c.b16 %v5489, %v5482
      %v5945 = vpack.c.b16 %v5490, %v5483
      %v5946 = vpack.c.b16 %v5491, %v5484
      %v5947 = vpack.c.b16 %v5499, %v5492
      %v5948 = vpack.c.b16 %v5500, %v5493
      %v5949 = vpack.c.b16 %v5501, %v5494
      %v5950 = vpack.c.b16 %v5502, %v5495
      %v5951 = vpack.c.b16 %v5503, %v5496
      %v5952 = vpack.c.b16 %v5504, %v5497
      %v5953 = vpack.c.b16 %v5505, %v5498
      %6402 = vmatpush.bf16.msra.mxu0 %v5555
      %6403 = vmatpush.bf16.msra.mxu0 %v5548
      %6404 = vmatpush.bf16.msra.mxu0 %v5541
      %6405 = vmatpush.bf16.msra.mxu0 %v5534
      %6406 = vmatpush.bf16.msra.mxu0 %v5527
      %6407 = vmatpush.bf16.msra.mxu0 %v5520
      %6408 = vmatpush.bf16.msra.mxu0 %v5513
      %6409 = vmatpush.bf16.msra.mxu0 %v5506
      %6410 = vmatmul.bf16.gmra.mxu0 %v3562
      %v6411 = vpop.f32.mrf.mxu0
      %v6412 = vadd.f32 %v4084, %v6411
      %v6413 = vpop.f32.mrf.mxu0
      %6414 = vdwg.mxu0
      %6415 = vmatpush.bf16.msra.mxu0 %v5611
      %6416 = vmatpush.bf16.msra.mxu0 %v5604
      %6417 = vmatpush.bf16.msra.mxu0 %v5597
      %6418 = vmatpush.bf16.msra.mxu0 %v5590
      %6419 = vmatpush.bf16.msra.mxu0 %v5583
      %6420 = vmatpush.bf16.msra.mxu0 %v5576
      %6421 = vmatpush.bf16.msra.mxu0 %v5569
      %6422 = vmatpush.bf16.msra.mxu0 %v5562
      %6423 = vmatmul.bf16.gmra.mxu0 %v3563
      %v6424 = vpop.f32.mrf.mxu0
      %v6425 = vadd.f32 %v6412, %v6424
      %v6426 = vpop.f32.mrf.mxu0
      %6427 = vdwg.mxu0
      %6428 = vmatpush.bf16.msra.mxu0 %v5667
      %6429 = vmatpush.bf16.msra.mxu0 %v5660
      %6430 = vmatpush.bf16.msra.mxu0 %v5653
      %6431 = vmatpush.bf16.msra.mxu0 %v5646
      %6432 = vmatpush.bf16.msra.mxu0 %v5639
      %6433 = vmatpush.bf16.msra.mxu0 %v5632
      %6434 = vmatpush.bf16.msra.mxu0 %v5625
      %6435 = vmatpush.bf16.msra.mxu0 %v5618
      %6436 = vmatmul.bf16.gmra.mxu0 %v3564
      %v6437 = vpop.f32.mrf.mxu0
      %v6438 = vadd.f32 %v6425, %v6437
      %v6439 = vpop.f32.mrf.mxu0
      %6440 = vdwg.mxu0
      %6441 = vmatpush.bf16.msra.mxu0 %v5723
      %6442 = vmatpush.bf16.msra.mxu0 %v5716
      %6443 = vmatpush.bf16.msra.mxu0 %v5709
      %6444 = vmatpush.bf16.msra.mxu0 %v5702
      %6445 = vmatpush.bf16.msra.mxu0 %v5695
      %6446 = vmatpush.bf16.msra.mxu0 %v5688
      %6447 = vmatpush.bf16.msra.mxu0 %v5681
      %6448 = vmatpush.bf16.msra.mxu0 %v5674
      %6449 = vmatmul.bf16.gmra.mxu0 %v3565
      %v6450 = vpop.f32.mrf.mxu0
      %v6451 = vadd.f32 %v6438, %v6450
      %v6452 = vpop.f32.mrf.mxu0
      %6453 = vdwg.mxu0
      %6454 = vmatpush.bf16.msra.mxu0 %v5779
      %6455 = vmatpush.bf16.msra.mxu0 %v5772
      %6456 = vmatpush.bf16.msra.mxu0 %v5765
      %6457 = vmatpush.bf16.msra.mxu0 %v5758
      %6458 = vmatpush.bf16.msra.mxu0 %v5751
      %6459 = vmatpush.bf16.msra.mxu0 %v5744
      %6460 = vmatpush.bf16.msra.mxu0 %v5737
      %6461 = vmatpush.bf16.msra.mxu0 %v5730
      %6462 = vmatmul.bf16.gmra.mxu0 %v3566
      %v6463 = vpop.f32.mrf.mxu0
      %v6464 = vadd.f32 %v6451, %v6463
      %v6465 = vpop.f32.mrf.mxu0
      %6466 = vdwg.mxu0
      %6467 = vmatpush.bf16.msra.mxu0 %v5835
      %6468 = vmatpush.bf16.msra.mxu0 %v5828
      %6469 = vmatpush.bf16.msra.mxu0 %v5821
      %6470 = vmatpush.bf16.msra.mxu0 %v5814
      %6471 = vmatpush.bf16.msra.mxu0 %v5807
      %6472 = vmatpush.bf16.msra.mxu0 %v5800
      %6473 = vmatpush.bf16.msra.mxu0 %v5793
      %6474 = vmatpush.bf16.msra.mxu0 %v5786
      %6475 = vmatmul.bf16.gmra.mxu0 %v3567
      %v6476 = vpop.f32.mrf.mxu0
      %v6477 = vadd.f32 %v6464, %v6476
      %v6478 = vpop.f32.mrf.mxu0
      %6479 = vdwg.mxu0
      %6480 = vmatpush.bf16.msra.mxu0 %v5891
      %6481 = vmatpush.bf16.msra.mxu0 %v5884
      %6482 = vmatpush.bf16.msra.mxu0 %v5877
      %6483 = vmatpush.bf16.msra.mxu0 %v5870
      %6484 = vmatpush.bf16.msra.mxu0 %v5863
      %6485 = vmatpush.bf16.msra.mxu0 %v5856
      %6486 = vmatpush.bf16.msra.mxu0 %v5849
      %6487 = vmatpush.bf16.msra.mxu0 %v5842
      %6488 = vmatmul.bf16.gmra.mxu0 %v3568
      %v6489 = vpop.f32.mrf.mxu0
      %v6490 = vadd.f32 %v6477, %v6489
      %v6491 = vpop.f32.mrf.mxu0
      %6492 = vdwg.mxu0
      %6493 = vmatpush.bf16.msra.mxu0 %v5947
      %6494 = vmatpush.bf16.msra.mxu0 %v5940
      %6495 = vmatpush.bf16.msra.mxu0 %v5933
      %6496 = vmatpush.bf16.msra.mxu0 %v5926
      %6497 = vmatpush.bf16.msra.mxu0 %v5919
      %6498 = vmatpush.bf16.msra.mxu0 %v5912
      %6499 = vmatpush.bf16.msra.mxu0 %v5905
      %6500 = vmatpush.bf16.msra.mxu0 %v5898
      %6501 = vmatmul.bf16.gmra.mxu0 %v3569
      %v6502 = vpop.f32.mrf.mxu0
      %v6503 = vadd.f32 %v6490, %v6502
      %v6504 = vpop.f32.mrf.mxu0
      %6505 = vdwg.mxu0
      %6506 = vmatpush.bf16.msra.mxu0 %v5556
      %6507 = vmatpush.bf16.msra.mxu0 %v5549
      %6508 = vmatpush.bf16.msra.mxu0 %v5542
      %6509 = vmatpush.bf16.msra.mxu0 %v5535
      %6510 = vmatpush.bf16.msra.mxu0 %v5528
      %6511 = vmatpush.bf16.msra.mxu0 %v5521
      %6512 = vmatpush.bf16.msra.mxu0 %v5514
      %6513 = vmatpush.bf16.msra.mxu0 %v5507
      %6514 = vmatmul.bf16.gmra.mxu0 %v3562
      %v6515 = vpop.f32.mrf.mxu0
      %v6516 = vadd.f32 %v4085, %v6515
      %v6517 = vpop.f32.mrf.mxu0
      %6518 = vdwg.mxu0
      %6519 = vmatpush.bf16.msra.mxu0 %v5612
      %6520 = vmatpush.bf16.msra.mxu0 %v5605
      %6521 = vmatpush.bf16.msra.mxu0 %v5598
      %6522 = vmatpush.bf16.msra.mxu0 %v5591
      %6523 = vmatpush.bf16.msra.mxu0 %v5584
      %6524 = vmatpush.bf16.msra.mxu0 %v5577
      %6525 = vmatpush.bf16.msra.mxu0 %v5570
      %6526 = vmatpush.bf16.msra.mxu0 %v5563
      %6527 = vmatmul.bf16.gmra.mxu0 %v3563
      %v6528 = vpop.f32.mrf.mxu0
      %v6529 = vadd.f32 %v6516, %v6528
      %v6530 = vpop.f32.mrf.mxu0
      %6531 = vdwg.mxu0
      %6532 = vmatpush.bf16.msra.mxu0 %v5668
      %6533 = vmatpush.bf16.msra.mxu0 %v5661
      %6534 = vmatpush.bf16.msra.mxu0 %v5654
      %6535 = vmatpush.bf16.msra.mxu0 %v5647
      %6536 = vmatpush.bf16.msra.mxu0 %v5640
      %6537 = vmatpush.bf16.msra.mxu0 %v5633
      %6538 = vmatpush.bf16.msra.mxu0 %v5626
      %6539 = vmatpush.bf16.msra.mxu0 %v5619
      %6540 = vmatmul.bf16.gmra.mxu0 %v3564
      %v6541 = vpop.f32.mrf.mxu0
      %v6542 = vadd.f32 %v6529, %v6541
      %v6543 = vpop.f32.mrf.mxu0
      %6544 = vdwg.mxu0
      %6545 = vmatpush.bf16.msra.mxu0 %v5724
      %6546 = vmatpush.bf16.msra.mxu0 %v5717
      %6547 = vmatpush.bf16.msra.mxu0 %v5710
      %6548 = vmatpush.bf16.msra.mxu0 %v5703
      %6549 = vmatpush.bf16.msra.mxu0 %v5696
      %6550 = vmatpush.bf16.msra.mxu0 %v5689
      %6551 = vmatpush.bf16.msra.mxu0 %v5682
      %6552 = vmatpush.bf16.msra.mxu0 %v5675
      %6553 = vmatmul.bf16.gmra.mxu0 %v3565
      %v6554 = vpop.f32.mrf.mxu0
      %v6555 = vadd.f32 %v6542, %v6554
      %v6556 = vpop.f32.mrf.mxu0
      %6557 = vdwg.mxu0
      %6558 = vmatpush.bf16.msra.mxu0 %v5780
      %6559 = vmatpush.bf16.msra.mxu0 %v5773
      %6560 = vmatpush.bf16.msra.mxu0 %v5766
      %6561 = vmatpush.bf16.msra.mxu0 %v5759
      %6562 = vmatpush.bf16.msra.mxu0 %v5752
      %6563 = vmatpush.bf16.msra.mxu0 %v5745
      %6564 = vmatpush.bf16.msra.mxu0 %v5738
      %6565 = vmatpush.bf16.msra.mxu0 %v5731
      %6566 = vmatmul.bf16.gmra.mxu0 %v3566
      %v6567 = vpop.f32.mrf.mxu0
      %v6568 = vadd.f32 %v6555, %v6567
      %v6569 = vpop.f32.mrf.mxu0
      %6570 = vdwg.mxu0
      %6571 = vmatpush.bf16.msra.mxu0 %v5836
      %6572 = vmatpush.bf16.msra.mxu0 %v5829
      %6573 = vmatpush.bf16.msra.mxu0 %v5822
      %6574 = vmatpush.bf16.msra.mxu0 %v5815
      %6575 = vmatpush.bf16.msra.mxu0 %v5808
      %6576 = vmatpush.bf16.msra.mxu0 %v5801
      %6577 = vmatpush.bf16.msra.mxu0 %v5794
      %6578 = vmatpush.bf16.msra.mxu0 %v5787
      %6579 = vmatmul.bf16.gmra.mxu0 %v3567
      %v6580 = vpop.f32.mrf.mxu0
      %v6581 = vadd.f32 %v6568, %v6580
      %v6582 = vpop.f32.mrf.mxu0
      %6583 = vdwg.mxu0
      %6584 = vmatpush.bf16.msra.mxu0 %v5892
      %6585 = vmatpush.bf16.msra.mxu0 %v5885
      %6586 = vmatpush.bf16.msra.mxu0 %v5878
      %6587 = vmatpush.bf16.msra.mxu0 %v5871
      %6588 = vmatpush.bf16.msra.mxu0 %v5864
      %6589 = vmatpush.bf16.msra.mxu0 %v5857
      %6590 = vmatpush.bf16.msra.mxu0 %v5850
      %6591 = vmatpush.bf16.msra.mxu0 %v5843
      %6592 = vmatmul.bf16.gmra.mxu0 %v3568
      %v6593 = vpop.f32.mrf.mxu0
      %v6594 = vadd.f32 %v6581, %v6593
      %v6595 = vpop.f32.mrf.mxu0
      %6596 = vdwg.mxu0
      %6597 = vmatpush.bf16.msra.mxu0 %v5948
      %6598 = vmatpush.bf16.msra.mxu0 %v5941
      %6599 = vmatpush.bf16.msra.mxu0 %v5934
      %6600 = vmatpush.bf16.msra.mxu0 %v5927
      %6601 = vmatpush.bf16.msra.mxu0 %v5920
      %6602 = vmatpush.bf16.msra.mxu0 %v5913
      %6603 = vmatpush.bf16.msra.mxu0 %v5906
      %6604 = vmatpush.bf16.msra.mxu0 %v5899
      %6605 = vmatmul.bf16.gmra.mxu0 %v3569
      %v6606 = vpop.f32.mrf.mxu0
      %v6607 = vadd.f32 %v6594, %v6606
      %v6608 = vpop.f32.mrf.mxu0
      %6609 = vdwg.mxu0
      %6610 = vmatpush.bf16.msra.mxu0 %v5557
      %6611 = vmatpush.bf16.msra.mxu0 %v5550
      %6612 = vmatpush.bf16.msra.mxu0 %v5543
      %6613 = vmatpush.bf16.msra.mxu0 %v5536
      %6614 = vmatpush.bf16.msra.mxu0 %v5529
      %6615 = vmatpush.bf16.msra.mxu0 %v5522
      %6616 = vmatpush.bf16.msra.mxu0 %v5515
      %6617 = vmatpush.bf16.msra.mxu0 %v5508
      %6618 = vmatmul.bf16.gmra.mxu0 %v3562
      %v6619 = vpop.f32.mrf.mxu0
      %v6620 = vadd.f32 %v4086, %v6619
      %v6621 = vpop.f32.mrf.mxu0
      %6622 = vdwg.mxu0
      %6623 = vmatpush.bf16.msra.mxu0 %v5613
      %6624 = vmatpush.bf16.msra.mxu0 %v5606
      %6625 = vmatpush.bf16.msra.mxu0 %v5599
      %6626 = vmatpush.bf16.msra.mxu0 %v5592
      %6627 = vmatpush.bf16.msra.mxu0 %v5585
      %6628 = vmatpush.bf16.msra.mxu0 %v5578
      %6629 = vmatpush.bf16.msra.mxu0 %v5571
      %6630 = vmatpush.bf16.msra.mxu0 %v5564
      %6631 = vmatmul.bf16.gmra.mxu0 %v3563
      %v6632 = vpop.f32.mrf.mxu0
      %v6633 = vadd.f32 %v6620, %v6632
      %v6634 = vpop.f32.mrf.mxu0
      %6635 = vdwg.mxu0
      %6636 = vmatpush.bf16.msra.mxu0 %v5669
      %6637 = vmatpush.bf16.msra.mxu0 %v5662
      %6638 = vmatpush.bf16.msra.mxu0 %v5655
      %6639 = vmatpush.bf16.msra.mxu0 %v5648
      %6640 = vmatpush.bf16.msra.mxu0 %v5641
      %6641 = vmatpush.bf16.msra.mxu0 %v5634
      %6642 = vmatpush.bf16.msra.mxu0 %v5627
      %6643 = vmatpush.bf16.msra.mxu0 %v5620
      %6644 = vmatmul.bf16.gmra.mxu0 %v3564
      %v6645 = vpop.f32.mrf.mxu0
      %v6646 = vadd.f32 %v6633, %v6645
      %v6647 = vpop.f32.mrf.mxu0
      %6648 = vdwg.mxu0
      %6649 = vmatpush.bf16.msra.mxu0 %v5725
      %6650 = vmatpush.bf16.msra.mxu0 %v5718
      %6651 = vmatpush.bf16.msra.mxu0 %v5711
      %6652 = vmatpush.bf16.msra.mxu0 %v5704
      %6653 = vmatpush.bf16.msra.mxu0 %v5697
      %6654 = vmatpush.bf16.msra.mxu0 %v5690
      %6655 = vmatpush.bf16.msra.mxu0 %v5683
      %6656 = vmatpush.bf16.msra.mxu0 %v5676
      %6657 = vmatmul.bf16.gmra.mxu0 %v3565
      %v6658 = vpop.f32.mrf.mxu0
      %v6659 = vadd.f32 %v6646, %v6658
      %v6660 = vpop.f32.mrf.mxu0
      %6661 = vdwg.mxu0
      %6662 = vmatpush.bf16.msra.mxu0 %v5781
      %6663 = vmatpush.bf16.msra.mxu0 %v5774
      %6664 = vmatpush.bf16.msra.mxu0 %v5767
      %6665 = vmatpush.bf16.msra.mxu0 %v5760
      %6666 = vmatpush.bf16.msra.mxu0 %v5753
      %6667 = vmatpush.bf16.msra.mxu0 %v5746
      %6668 = vmatpush.bf16.msra.mxu0 %v5739
      %6669 = vmatpush.bf16.msra.mxu0 %v5732
      %6670 = vmatmul.bf16.gmra.mxu0 %v3566
      %v6671 = vpop.f32.mrf.mxu0
      %v6672 = vadd.f32 %v6659, %v6671
      %v6673 = vpop.f32.mrf.mxu0
      %6674 = vdwg.mxu0
      %6675 = vmatpush.bf16.msra.mxu0 %v5837
      %6676 = vmatpush.bf16.msra.mxu0 %v5830
      %6677 = vmatpush.bf16.msra.mxu0 %v5823
      %6678 = vmatpush.bf16.msra.mxu0 %v5816
      %6679 = vmatpush.bf16.msra.mxu0 %v5809
      %6680 = vmatpush.bf16.msra.mxu0 %v5802
      %6681 = vmatpush.bf16.msra.mxu0 %v5795
      %6682 = vmatpush.bf16.msra.mxu0 %v5788
      %6683 = vmatmul.bf16.gmra.mxu0 %v3567
      %v6684 = vpop.f32.mrf.mxu0
      %v6685 = vadd.f32 %v6672, %v6684
      %v6686 = vpop.f32.mrf.mxu0
      %6687 = vdwg.mxu0
      %6688 = vmatpush.bf16.msra.mxu0 %v5893
      %6689 = vmatpush.bf16.msra.mxu0 %v5886
      %6690 = vmatpush.bf16.msra.mxu0 %v5879
      %6691 = vmatpush.bf16.msra.mxu0 %v5872
      %6692 = vmatpush.bf16.msra.mxu0 %v5865
      %6693 = vmatpush.bf16.msra.mxu0 %v5858
      %6694 = vmatpush.bf16.msra.mxu0 %v5851
      %6695 = vmatpush.bf16.msra.mxu0 %v5844
      %6696 = vmatmul.bf16.gmra.mxu0 %v3568
      %v6697 = vpop.f32.mrf.mxu0
      %v6698 = vadd.f32 %v6685, %v6697
      %v6699 = vpop.f32.mrf.mxu0
      %6700 = vdwg.mxu0
      %6701 = vmatpush.bf16.msra.mxu0 %v5949
      %6702 = vmatpush.bf16.msra.mxu0 %v5942
      %6703 = vmatpush.bf16.msra.mxu0 %v5935
      %6704 = vmatpush.bf16.msra.mxu0 %v5928
      %6705 = vmatpush.bf16.msra.mxu0 %v5921
      %6706 = vmatpush.bf16.msra.mxu0 %v5914
      %6707 = vmatpush.bf16.msra.mxu0 %v5907
      %6708 = vmatpush.bf16.msra.mxu0 %v5900
      %6709 = vmatmul.bf16.gmra.mxu0 %v3569
      %v6710 = vpop.f32.mrf.mxu0
      %v6711 = vadd.f32 %v6698, %v6710
      %v6712 = vpop.f32.mrf.mxu0
      %6713 = vdwg.mxu0
      %6714 = vmatpush.bf16.msra.mxu0 %v5558
      %6715 = vmatpush.bf16.msra.mxu0 %v5551
      %6716 = vmatpush.bf16.msra.mxu0 %v5544
      %6717 = vmatpush.bf16.msra.mxu0 %v5537
      %6718 = vmatpush.bf16.msra.mxu0 %v5530
      %6719 = vmatpush.bf16.msra.mxu0 %v5523
      %6720 = vmatpush.bf16.msra.mxu0 %v5516
      %6721 = vmatpush.bf16.msra.mxu0 %v5509
      %6722 = vmatmul.bf16.gmra.mxu0 %v3562
      %v6723 = vpop.f32.mrf.mxu0
      %v6724 = vadd.f32 %v4087, %v6723
      %v6725 = vpop.f32.mrf.mxu0
      %6726 = vdwg.mxu0
      %6727 = vmatpush.bf16.msra.mxu0 %v5614
      %6728 = vmatpush.bf16.msra.mxu0 %v5607
      %6729 = vmatpush.bf16.msra.mxu0 %v5600
      %6730 = vmatpush.bf16.msra.mxu0 %v5593
      %6731 = vmatpush.bf16.msra.mxu0 %v5586
      %6732 = vmatpush.bf16.msra.mxu0 %v5579
      %6733 = vmatpush.bf16.msra.mxu0 %v5572
      %6734 = vmatpush.bf16.msra.mxu0 %v5565
      %6735 = vmatmul.bf16.gmra.mxu0 %v3563
      %v6736 = vpop.f32.mrf.mxu0
      %v6737 = vadd.f32 %v6724, %v6736
      %v6738 = vpop.f32.mrf.mxu0
      %6739 = vdwg.mxu0
      %6740 = vmatpush.bf16.msra.mxu0 %v5670
      %6741 = vmatpush.bf16.msra.mxu0 %v5663
      %6742 = vmatpush.bf16.msra.mxu0 %v5656
      %6743 = vmatpush.bf16.msra.mxu0 %v5649
      %6744 = vmatpush.bf16.msra.mxu0 %v5642
      %6745 = vmatpush.bf16.msra.mxu0 %v5635
      %6746 = vmatpush.bf16.msra.mxu0 %v5628
      %6747 = vmatpush.bf16.msra.mxu0 %v5621
      %6748 = vmatmul.bf16.gmra.mxu0 %v3564
      %v6749 = vpop.f32.mrf.mxu0
      %v6750 = vadd.f32 %v6737, %v6749
      %v6751 = vpop.f32.mrf.mxu0
      %6752 = vdwg.mxu0
      %6753 = vmatpush.bf16.msra.mxu0 %v5726
      %6754 = vmatpush.bf16.msra.mxu0 %v5719
      %6755 = vmatpush.bf16.msra.mxu0 %v5712
      %6756 = vmatpush.bf16.msra.mxu0 %v5705
      %6757 = vmatpush.bf16.msra.mxu0 %v5698
      %6758 = vmatpush.bf16.msra.mxu0 %v5691
      %6759 = vmatpush.bf16.msra.mxu0 %v5684
      %6760 = vmatpush.bf16.msra.mxu0 %v5677
      %6761 = vmatmul.bf16.gmra.mxu0 %v3565
      %v6762 = vpop.f32.mrf.mxu0
      %v6763 = vadd.f32 %v6750, %v6762
      %v6764 = vpop.f32.mrf.mxu0
      %6765 = vdwg.mxu0
      %6766 = vmatpush.bf16.msra.mxu0 %v5782
      %6767 = vmatpush.bf16.msra.mxu0 %v5775
      %6768 = vmatpush.bf16.msra.mxu0 %v5768
      %6769 = vmatpush.bf16.msra.mxu0 %v5761
      %6770 = vmatpush.bf16.msra.mxu0 %v5754
      %6771 = vmatpush.bf16.msra.mxu0 %v5747
      %6772 = vmatpush.bf16.msra.mxu0 %v5740
      %6773 = vmatpush.bf16.msra.mxu0 %v5733
      %6774 = vmatmul.bf16.gmra.mxu0 %v3566
      %v6775 = vpop.f32.mrf.mxu0
      %v6776 = vadd.f32 %v6763, %v6775
      %v6777 = vpop.f32.mrf.mxu0
      %6778 = vdwg.mxu0
      %6779 = vmatpush.bf16.msra.mxu0 %v5838
      %6780 = vmatpush.bf16.msra.mxu0 %v5831
      %6781 = vmatpush.bf16.msra.mxu0 %v5824
      %6782 = vmatpush.bf16.msra.mxu0 %v5817
      %6783 = vmatpush.bf16.msra.mxu0 %v5810
      %6784 = vmatpush.bf16.msra.mxu0 %v5803
      %6785 = vmatpush.bf16.msra.mxu0 %v5796
      %6786 = vmatpush.bf16.msra.mxu0 %v5789
      %6787 = vmatmul.bf16.gmra.mxu0 %v3567
      %v6788 = vpop.f32.mrf.mxu0
      %v6789 = vadd.f32 %v6776, %v6788
      %v6790 = vpop.f32.mrf.mxu0
      %6791 = vdwg.mxu0
      %6792 = vmatpush.bf16.msra.mxu0 %v5894
      %6793 = vmatpush.bf16.msra.mxu0 %v5887
      %6794 = vmatpush.bf16.msra.mxu0 %v5880
      %6795 = vmatpush.bf16.msra.mxu0 %v5873
      %6796 = vmatpush.bf16.msra.mxu0 %v5866
      %6797 = vmatpush.bf16.msra.mxu0 %v5859
      %6798 = vmatpush.bf16.msra.mxu0 %v5852
      %6799 = vmatpush.bf16.msra.mxu0 %v5845
      %6800 = vmatmul.bf16.gmra.mxu0 %v3568
      %v6801 = vpop.f32.mrf.mxu0
      %v6802 = vadd.f32 %v6789, %v6801
      %v6803 = vpop.f32.mrf.mxu0
      %6804 = vdwg.mxu0
      %6805 = vmatpush.bf16.msra.mxu0 %v5950
      %6806 = vmatpush.bf16.msra.mxu0 %v5943
      %6807 = vmatpush.bf16.msra.mxu0 %v5936
      %6808 = vmatpush.bf16.msra.mxu0 %v5929
      %6809 = vmatpush.bf16.msra.mxu0 %v5922
      %6810 = vmatpush.bf16.msra.mxu0 %v5915
      %6811 = vmatpush.bf16.msra.mxu0 %v5908
      %6812 = vmatpush.bf16.msra.mxu0 %v5901
      %6813 = vmatmul.bf16.gmra.mxu0 %v3569
      %v6814 = vpop.f32.mrf.mxu0
      %v6815 = vadd.f32 %v6802, %v6814
      %v6816 = vpop.f32.mrf.mxu0
      %6817 = vdwg.mxu0
      %6818 = vmatpush.bf16.msra.mxu0 %v5559
      %6819 = vmatpush.bf16.msra.mxu0 %v5552
      %6820 = vmatpush.bf16.msra.mxu0 %v5545
      %6821 = vmatpush.bf16.msra.mxu0 %v5538
      %6822 = vmatpush.bf16.msra.mxu0 %v5531
      %6823 = vmatpush.bf16.msra.mxu0 %v5524
      %6824 = vmatpush.bf16.msra.mxu0 %v5517
      %6825 = vmatpush.bf16.msra.mxu0 %v5510
      %6826 = vmatmul.bf16.gmra.mxu0 %v3562
      %v6827 = vpop.f32.mrf.mxu0
      %v6828 = vadd.f32 %v4088, %v6827
      %v6829 = vpop.f32.mrf.mxu0
      %6830 = vdwg.mxu0
      %6831 = vmatpush.bf16.msra.mxu0 %v5615
      %6832 = vmatpush.bf16.msra.mxu0 %v5608
      %6833 = vmatpush.bf16.msra.mxu0 %v5601
      %6834 = vmatpush.bf16.msra.mxu0 %v5594
      %6835 = vmatpush.bf16.msra.mxu0 %v5587
      %6836 = vmatpush.bf16.msra.mxu0 %v5580
      %6837 = vmatpush.bf16.msra.mxu0 %v5573
      %6838 = vmatpush.bf16.msra.mxu0 %v5566
      %6839 = vmatmul.bf16.gmra.mxu0 %v3563
      %v6840 = vpop.f32.mrf.mxu0
      %v6841 = vadd.f32 %v6828, %v6840
      %v6842 = vpop.f32.mrf.mxu0
      %6843 = vdwg.mxu0
      %6844 = vmatpush.bf16.msra.mxu0 %v5671
      %6845 = vmatpush.bf16.msra.mxu0 %v5664
      %6846 = vmatpush.bf16.msra.mxu0 %v5657
      %6847 = vmatpush.bf16.msra.mxu0 %v5650
      %6848 = vmatpush.bf16.msra.mxu0 %v5643
      %6849 = vmatpush.bf16.msra.mxu0 %v5636
      %6850 = vmatpush.bf16.msra.mxu0 %v5629
      %6851 = vmatpush.bf16.msra.mxu0 %v5622
      %6852 = vmatmul.bf16.gmra.mxu0 %v3564
      %v6853 = vpop.f32.mrf.mxu0
      %v6854 = vadd.f32 %v6841, %v6853
      %v6855 = vpop.f32.mrf.mxu0
      %6856 = vdwg.mxu0
      %6857 = vmatpush.bf16.msra.mxu0 %v5727
      %6858 = vmatpush.bf16.msra.mxu0 %v5720
      %6859 = vmatpush.bf16.msra.mxu0 %v5713
      %6860 = vmatpush.bf16.msra.mxu0 %v5706
      %6861 = vmatpush.bf16.msra.mxu0 %v5699
      %6862 = vmatpush.bf16.msra.mxu0 %v5692
      %6863 = vmatpush.bf16.msra.mxu0 %v5685
      %6864 = vmatpush.bf16.msra.mxu0 %v5678
      %6865 = vmatmul.bf16.gmra.mxu0 %v3565
      %v6866 = vpop.f32.mrf.mxu0
      %v6867 = vadd.f32 %v6854, %v6866
      %v6868 = vpop.f32.mrf.mxu0
      %6869 = vdwg.mxu0
      %6870 = vmatpush.bf16.msra.mxu0 %v5783
      %6871 = vmatpush.bf16.msra.mxu0 %v5776
      %6872 = vmatpush.bf16.msra.mxu0 %v5769
      %6873 = vmatpush.bf16.msra.mxu0 %v5762
      %6874 = vmatpush.bf16.msra.mxu0 %v5755
      %6875 = vmatpush.bf16.msra.mxu0 %v5748
      %6876 = vmatpush.bf16.msra.mxu0 %v5741
      %6877 = vmatpush.bf16.msra.mxu0 %v5734
      %6878 = vmatmul.bf16.gmra.mxu0 %v3566
      %v6879 = vpop.f32.mrf.mxu0
      %v6880 = vadd.f32 %v6867, %v6879
      %v6881 = vpop.f32.mrf.mxu0
      %6882 = vdwg.mxu0
      %6883 = vmatpush.bf16.msra.mxu0 %v5839
      %6884 = vmatpush.bf16.msra.mxu0 %v5832
      %6885 = vmatpush.bf16.msra.mxu0 %v5825
      %6886 = vmatpush.bf16.msra.mxu0 %v5818
      %6887 = vmatpush.bf16.msra.mxu0 %v5811
      %6888 = vmatpush.bf16.msra.mxu0 %v5804
      %6889 = vmatpush.bf16.msra.mxu0 %v5797
      %6890 = vmatpush.bf16.msra.mxu0 %v5790
      %6891 = vmatmul.bf16.gmra.mxu0 %v3567
      %v6892 = vpop.f32.mrf.mxu0
      %v6893 = vadd.f32 %v6880, %v6892
      %v6894 = vpop.f32.mrf.mxu0
      %6895 = vdwg.mxu0
      %6896 = vmatpush.bf16.msra.mxu0 %v5895
      %6897 = vmatpush.bf16.msra.mxu0 %v5888
      %6898 = vmatpush.bf16.msra.mxu0 %v5881
      %6899 = vmatpush.bf16.msra.mxu0 %v5874
      %6900 = vmatpush.bf16.msra.mxu0 %v5867
      %6901 = vmatpush.bf16.msra.mxu0 %v5860
      %6902 = vmatpush.bf16.msra.mxu0 %v5853
      %6903 = vmatpush.bf16.msra.mxu0 %v5846
      %6904 = vmatmul.bf16.gmra.mxu0 %v3568
      %v6905 = vpop.f32.mrf.mxu0
      %v6906 = vadd.f32 %v6893, %v6905
      %v6907 = vpop.f32.mrf.mxu0
      %6908 = vdwg.mxu0
      %6909 = vmatpush.bf16.msra.mxu0 %v5951
      %6910 = vmatpush.bf16.msra.mxu0 %v5944
      %6911 = vmatpush.bf16.msra.mxu0 %v5937
      %6912 = vmatpush.bf16.msra.mxu0 %v5930
      %6913 = vmatpush.bf16.msra.mxu0 %v5923
      %6914 = vmatpush.bf16.msra.mxu0 %v5916
      %6915 = vmatpush.bf16.msra.mxu0 %v5909
      %6916 = vmatpush.bf16.msra.mxu0 %v5902
      %6917 = vmatmul.bf16.gmra.mxu0 %v3569
      %v6918 = vpop.f32.mrf.mxu0
      %v6919 = vadd.f32 %v6906, %v6918
      %v6920 = vpop.f32.mrf.mxu0
      %6921 = vdwg.mxu0
      %6922 = vmatpush.bf16.msra.mxu0 %v5560
      %6923 = vmatpush.bf16.msra.mxu0 %v5553
      %6924 = vmatpush.bf16.msra.mxu0 %v5546
      %6925 = vmatpush.bf16.msra.mxu0 %v5539
      %6926 = vmatpush.bf16.msra.mxu0 %v5532
      %6927 = vmatpush.bf16.msra.mxu0 %v5525
      %6928 = vmatpush.bf16.msra.mxu0 %v5518
      %6929 = vmatpush.bf16.msra.mxu0 %v5511
      %6930 = vmatmul.bf16.gmra.mxu0 %v3562
      %v6931 = vpop.f32.mrf.mxu0
      %v6932 = vadd.f32 %v4089, %v6931
      %v6933 = vpop.f32.mrf.mxu0
      %6934 = vdwg.mxu0
      %6935 = vmatpush.bf16.msra.mxu0 %v5616
      %6936 = vmatpush.bf16.msra.mxu0 %v5609
      %6937 = vmatpush.bf16.msra.mxu0 %v5602
      %6938 = vmatpush.bf16.msra.mxu0 %v5595
      %6939 = vmatpush.bf16.msra.mxu0 %v5588
      %6940 = vmatpush.bf16.msra.mxu0 %v5581
      %6941 = vmatpush.bf16.msra.mxu0 %v5574
      %6942 = vmatpush.bf16.msra.mxu0 %v5567
      %6943 = vmatmul.bf16.gmra.mxu0 %v3563
      %v6944 = vpop.f32.mrf.mxu0
      %v6945 = vadd.f32 %v6932, %v6944
      %v6946 = vpop.f32.mrf.mxu0
      %6947 = vdwg.mxu0
      %6948 = vmatpush.bf16.msra.mxu0 %v5672
      %6949 = vmatpush.bf16.msra.mxu0 %v5665
      %6950 = vmatpush.bf16.msra.mxu0 %v5658
      %6951 = vmatpush.bf16.msra.mxu0 %v5651
      %6952 = vmatpush.bf16.msra.mxu0 %v5644
      %6953 = vmatpush.bf16.msra.mxu0 %v5637
      %6954 = vmatpush.bf16.msra.mxu0 %v5630
      %6955 = vmatpush.bf16.msra.mxu0 %v5623
      %6956 = vmatmul.bf16.gmra.mxu0 %v3564
      %v6957 = vpop.f32.mrf.mxu0
      %v6958 = vadd.f32 %v6945, %v6957
      %v6959 = vpop.f32.mrf.mxu0
      %6960 = vdwg.mxu0
      %6961 = vmatpush.bf16.msra.mxu0 %v5728
      %6962 = vmatpush.bf16.msra.mxu0 %v5721
      %6963 = vmatpush.bf16.msra.mxu0 %v5714
      %6964 = vmatpush.bf16.msra.mxu0 %v5707
      %6965 = vmatpush.bf16.msra.mxu0 %v5700
      %6966 = vmatpush.bf16.msra.mxu0 %v5693
      %6967 = vmatpush.bf16.msra.mxu0 %v5686
      %6968 = vmatpush.bf16.msra.mxu0 %v5679
      %6969 = vmatmul.bf16.gmra.mxu0 %v3565
      %v6970 = vpop.f32.mrf.mxu0
      %v6971 = vadd.f32 %v6958, %v6970
      %v6972 = vpop.f32.mrf.mxu0
      %6973 = vdwg.mxu0
      %6974 = vmatpush.bf16.msra.mxu0 %v5784
      %6975 = vmatpush.bf16.msra.mxu0 %v5777
      %6976 = vmatpush.bf16.msra.mxu0 %v5770
      %6977 = vmatpush.bf16.msra.mxu0 %v5763
      %6978 = vmatpush.bf16.msra.mxu0 %v5756
      %6979 = vmatpush.bf16.msra.mxu0 %v5749
      %6980 = vmatpush.bf16.msra.mxu0 %v5742
      %6981 = vmatpush.bf16.msra.mxu0 %v5735
      %6982 = vmatmul.bf16.gmra.mxu0 %v3566
      %v6983 = vpop.f32.mrf.mxu0
      %v6984 = vadd.f32 %v6971, %v6983
      %v6985 = vpop.f32.mrf.mxu0
      %6986 = vdwg.mxu0
      %6987 = vmatpush.bf16.msra.mxu0 %v5840
      %6988 = vmatpush.bf16.msra.mxu0 %v5833
      %6989 = vmatpush.bf16.msra.mxu0 %v5826
      %6990 = vmatpush.bf16.msra.mxu0 %v5819
      %6991 = vmatpush.bf16.msra.mxu0 %v5812
      %6992 = vmatpush.bf16.msra.mxu0 %v5805
      %6993 = vmatpush.bf16.msra.mxu0 %v5798
      %6994 = vmatpush.bf16.msra.mxu0 %v5791
      %6995 = vmatmul.bf16.gmra.mxu0 %v3567
      %v6996 = vpop.f32.mrf.mxu0
      %v6997 = vadd.f32 %v6984, %v6996
      %v6998 = vpop.f32.mrf.mxu0
      %6999 = vdwg.mxu0
      %7000 = vmatpush.bf16.msra.mxu0 %v5896
      %7001 = vmatpush.bf16.msra.mxu0 %v5889
      %7002 = vmatpush.bf16.msra.mxu0 %v5882
      %7003 = vmatpush.bf16.msra.mxu0 %v5875
      %7004 = vmatpush.bf16.msra.mxu0 %v5868
      %7005 = vmatpush.bf16.msra.mxu0 %v5861
      %7006 = vmatpush.bf16.msra.mxu0 %v5854
      %7007 = vmatpush.bf16.msra.mxu0 %v5847
      %7008 = vmatmul.bf16.gmra.mxu0 %v3568
      %v7009 = vpop.f32.mrf.mxu0
      %v7010 = vadd.f32 %v6997, %v7009
      %v7011 = vpop.f32.mrf.mxu0
      %7012 = vdwg.mxu0
      %7013 = vmatpush.bf16.msra.mxu0 %v5952
      %7014 = vmatpush.bf16.msra.mxu0 %v5945
      %7015 = vmatpush.bf16.msra.mxu0 %v5938
      %7016 = vmatpush.bf16.msra.mxu0 %v5931
      %7017 = vmatpush.bf16.msra.mxu0 %v5924
      %7018 = vmatpush.bf16.msra.mxu0 %v5917
      %7019 = vmatpush.bf16.msra.mxu0 %v5910
      %7020 = vmatpush.bf16.msra.mxu0 %v5903
      %7021 = vmatmul.bf16.gmra.mxu0 %v3569
      %v7022 = vpop.f32.mrf.mxu0
      %v7023 = vadd.f32 %v7010, %v7022
      %v7024 = vpop.f32.mrf.mxu0
      %7025 = vdwg.mxu0
      %7026 = vmatpush.bf16.msra.mxu0 %v5561
      %7027 = vmatpush.bf16.msra.mxu0 %v5554
      %7028 = vmatpush.bf16.msra.mxu0 %v5547
      %7029 = vmatpush.bf16.msra.mxu0 %v5540
      %7030 = vmatpush.bf16.msra.mxu0 %v5533
      %7031 = vmatpush.bf16.msra.mxu0 %v5526
      %7032 = vmatpush.bf16.msra.mxu0 %v5519
      %7033 = vmatpush.bf16.msra.mxu0 %v5512
      %7034 = vmatmul.bf16.gmra.mxu0 %v3562
      %v7035 = vpop.f32.mrf.mxu0
      %v7036 = vadd.f32 %v4090, %v7035
      %v7037 = vpop.f32.mrf.mxu0
      %7038 = vdwg.mxu0
      %7039 = vmatpush.bf16.msra.mxu0 %v5617
      %7040 = vmatpush.bf16.msra.mxu0 %v5610
      %7041 = vmatpush.bf16.msra.mxu0 %v5603
      %7042 = vmatpush.bf16.msra.mxu0 %v5596
      %7043 = vmatpush.bf16.msra.mxu0 %v5589
      %7044 = vmatpush.bf16.msra.mxu0 %v5582
      %7045 = vmatpush.bf16.msra.mxu0 %v5575
      %7046 = vmatpush.bf16.msra.mxu0 %v5568
      %7047 = vmatmul.bf16.gmra.mxu0 %v3563
      %v7048 = vpop.f32.mrf.mxu0
      %v7049 = vadd.f32 %v7036, %v7048
      %v7050 = vpop.f32.mrf.mxu0
      %7051 = vdwg.mxu0
      %7052 = vmatpush.bf16.msra.mxu0 %v5673
      %7053 = vmatpush.bf16.msra.mxu0 %v5666
      %7054 = vmatpush.bf16.msra.mxu0 %v5659
      %7055 = vmatpush.bf16.msra.mxu0 %v5652
      %7056 = vmatpush.bf16.msra.mxu0 %v5645
      %7057 = vmatpush.bf16.msra.mxu0 %v5638
      %7058 = vmatpush.bf16.msra.mxu0 %v5631
      %7059 = vmatpush.bf16.msra.mxu0 %v5624
      %7060 = vmatmul.bf16.gmra.mxu0 %v3564
      %v7061 = vpop.f32.mrf.mxu0
      %v7062 = vadd.f32 %v7049, %v7061
      %v7063 = vpop.f32.mrf.mxu0
      %7064 = vdwg.mxu0
      %7065 = vmatpush.bf16.msra.mxu0 %v5729
      %7066 = vmatpush.bf16.msra.mxu0 %v5722
      %7067 = vmatpush.bf16.msra.mxu0 %v5715
      %7068 = vmatpush.bf16.msra.mxu0 %v5708
      %7069 = vmatpush.bf16.msra.mxu0 %v5701
      %7070 = vmatpush.bf16.msra.mxu0 %v5694
      %7071 = vmatpush.bf16.msra.mxu0 %v5687
      %7072 = vmatpush.bf16.msra.mxu0 %v5680
      %7073 = vmatmul.bf16.gmra.mxu0 %v3565
      %v7074 = vpop.f32.mrf.mxu0
      %v7075 = vadd.f32 %v7062, %v7074
      %v7076 = vpop.f32.mrf.mxu0
      %7077 = vdwg.mxu0
      %7078 = vmatpush.bf16.msra.mxu0 %v5785
      %7079 = vmatpush.bf16.msra.mxu0 %v5778
      %7080 = vmatpush.bf16.msra.mxu0 %v5771
      %7081 = vmatpush.bf16.msra.mxu0 %v5764
      %7082 = vmatpush.bf16.msra.mxu0 %v5757
      %7083 = vmatpush.bf16.msra.mxu0 %v5750
      %7084 = vmatpush.bf16.msra.mxu0 %v5743
      %7085 = vmatpush.bf16.msra.mxu0 %v5736
      %7086 = vmatmul.bf16.gmra.mxu0 %v3566
      %v7087 = vpop.f32.mrf.mxu0
      %v7088 = vadd.f32 %v7075, %v7087
      %v7089 = vpop.f32.mrf.mxu0
      %7090 = vdwg.mxu0
      %7091 = vmatpush.bf16.msra.mxu0 %v5841
      %7092 = vmatpush.bf16.msra.mxu0 %v5834
      %7093 = vmatpush.bf16.msra.mxu0 %v5827
      %7094 = vmatpush.bf16.msra.mxu0 %v5820
      %7095 = vmatpush.bf16.msra.mxu0 %v5813
      %7096 = vmatpush.bf16.msra.mxu0 %v5806
      %7097 = vmatpush.bf16.msra.mxu0 %v5799
      %7098 = vmatpush.bf16.msra.mxu0 %v5792
      %7099 = vmatmul.bf16.gmra.mxu0 %v3567
      %v7100 = vpop.f32.mrf.mxu0
      %v7101 = vadd.f32 %v7088, %v7100
      %v7102 = vpop.f32.mrf.mxu0
      %7103 = vdwg.mxu0
      %7104 = vmatpush.bf16.msra.mxu0 %v5897
      %7105 = vmatpush.bf16.msra.mxu0 %v5890
      %7106 = vmatpush.bf16.msra.mxu0 %v5883
      %7107 = vmatpush.bf16.msra.mxu0 %v5876
      %7108 = vmatpush.bf16.msra.mxu0 %v5869
      %7109 = vmatpush.bf16.msra.mxu0 %v5862
      %7110 = vmatpush.bf16.msra.mxu0 %v5855
      %7111 = vmatpush.bf16.msra.mxu0 %v5848
      %7112 = vmatmul.bf16.gmra.mxu0 %v3568
      %v7113 = vpop.f32.mrf.mxu0
      %v7114 = vadd.f32 %v7101, %v7113
      %v7115 = vpop.f32.mrf.mxu0
      %7116 = vdwg.mxu0
      %7117 = vmatpush.bf16.msra.mxu0 %v5953
      %7118 = vmatpush.bf16.msra.mxu0 %v5946
      %7119 = vmatpush.bf16.msra.mxu0 %v5939
      %7120 = vmatpush.bf16.msra.mxu0 %v5932
      %7121 = vmatpush.bf16.msra.mxu0 %v5925
      %7122 = vmatpush.bf16.msra.mxu0 %v5918
      %7123 = vmatpush.bf16.msra.mxu0 %v5911
      %7124 = vmatpush.bf16.msra.mxu0 %v5904
      %7125 = vmatmul.bf16.gmra.mxu0 %v3569
      %v7126 = vpop.f32.mrf.mxu0
      %v7127 = vadd.f32 %v7114, %v7126
      %v7128 = vpop.f32.mrf.mxu0
      %7129 = vdwg.mxu0
      %v7130 = vtanh.pop %v6503
      %v7131 = vtanh.pop %v6607
      %v7132 = vtanh.pop %v6711
      %v7133 = vtanh.pop %v6815
      %v7134 = vtanh.pop %v6919
      %v7135 = vtanh.pop %v7023
      %v7136 = vtanh.pop %v7127
      %7137 = vst [vmem:[%s275] sm:$0xff] %v7130
      %7138 = vst [vmem:[%s275 + $0x8] sm:$0xff] %v7131
      %7139 = vst [vmem:[%s275 + $0x10] sm:$0xff] %v7132
      %7140 = vst [vmem:[%s275 + $0x18] sm:$0xff] %v7133
      %7141 = vst [vmem:[%s275 + $0x20] sm:$0xff] %v7134
      %7142 = vst [vmem:[%s275 + $0x28] sm:$0xff] %v7135
      %vm7143 = vcmask 130048
      %7144 = vst.msk [vmem:[%s275 + $0x30] sm:$0xff] %vm7143, %v7136
      %p7145 = scmp.lt.s32.totalorder %s18, 3
      %s7146 = scalar_select %p7145, %s18, 3
      %s7147 = smul.addr %s7146, 7
      %s7148 = smul.addr %s7147, 8
      %s7149 = scalar_lea.vmem %s7, %s7148
      // Predicated region
      $region49: #{generator_forward.1} parent=47 // pred_check
        %p7150 = pneg %p188
      $region50: #{generator_forward.1} parent=47 // pred_check_branch
        %7152 = sbr.rel (%p7150) target = $region52
      $region51: #{generator_forward.1} parent=47 // pred_region
        _
      $region52: #{generator_forward.1} parent=47 // pred_fallthru
        _
    $region48: #{generator_forward.1} parent=5 // pred_fallthru
      _
    %p7153 = scmp.le.s32.totalorder 2, %s13
    // Predicated region
    $region53: #{generator_forward.1} parent=5 // pred_check
      %p7154 = pneg %p7153
    $region54: #{generator_forward.1} parent=5 // pred_check_branch
      %7156 = sbr.rel (%p7154) target = $region56
    $region55: #{generator_forward.1} parent=5 // pred_region
      %s7157 = ssub.s32 %s13, 2
      // Predicated region
      $region57: #{generator_forward.1} parent=55 // pred_check
        %p7158 = pneg %p194
      $region58: #{generator_forward.1} parent=55 // pred_check_branch
        %7160 = sbr.rel (%p7158) target = $region60
      $region59: #{generator_forward.1} parent=55 // pred_region
        %p7161 = scmp.lt.s32.totalorder %s19, 3
        %s7162 = scalar_select %p7161, %s19, 3
        %s7163 = smul.addr %s7162, 7
        %s7164 = smul.addr %s7163, 8
        %s7165 = scalar_lea.vmem %s7, %s7164
      $region60: #{generator_forward.1} parent=55 // pred_fallthru
        _
    $region56: #{generator_forward.1} parent=5 // pred_fallthru
      _
  $region6: #{generator_forward.1} parent=0 // loop_footer
    %s17 = sadd.s32 1, %s13
  $region7: #{generator_forward.1} parent=0 // loop_footer_branch
    %12 = sbr.rel target = $region3
  $region8: #{generator_forward.1} parent=0 // loop_exit
    _

</llo_original>
